<compile_context>
chip_gen: v5e
topology: v5e:2x2
jax: 0.10.0
libtpu: 0.0.40
codegen_flags: <defaults>
</compile_context>

<pallas_src>
import functools

import jax
import jax.numpy as jnp
from jax.experimental import pallas as pl
from jax.experimental.pallas import tpu as pltpu

EPS = 1e-5
NEG_SLOPE = 0.2
C_PAD = 128                       # lane width / channel padding

K1H, K1W, S1 = 3, 3, 2            # conv1: 1 -> 16,  3x3, stride 2
K2H, K2W, S2 = 5, 5, 2            # conv2: 16 -> 32, 5x5, stride 2
K3H, K3W, S3 = 5, 5, 2            # conv3: 32 -> 64, 5x5, stride 2
K1 = K1H * K1W                    # 9 conv1 patch values
CB = 16                           # conv1 channels == per-tap lane block
PACK = C_PAD // CB                # 8 taps / positions packed per 128-lane row
TAPS2 = K2H * K2W                 # 25 conv2 taps
TAPS2_PAD = PACK * ((TAPS2 + PACK - 1) // PACK)   # 32 tap slots
NGROUPS = TAPS2_PAD // PACK       # 4 packed tap groups
POS3 = K3H * K3W                  # 25 conv2-output positions seen by conv3

_VMEM = pl.BlockSpec(memory_space=pltpu.MemorySpace.VMEM)


def _round_up(x, m):
    return (x + m - 1) // m * m


def _leaky(y):
    return jnp.maximum(y, NEG_SLOPE * y)


# ---------------------------------------------------------------------------
# Fused Pallas kernel
# ---------------------------------------------------------------------------
def fused_discriminator_kernel(p1u_ref, p1e_ref, t_ref,
                               w1_ref, g1_ref, b1_ref,
                               w2_ref, g2_ref, b2_ref,
                               w3_ref, g3_ref, b3_ref,
                               wl_ref, bl_ref,
                               o_ref, acc2_ref, y2_ref,
                               *, m1, pad1):
    """Whole Discriminator forward for one batch, fully VMEM-resident.

    m1   : true number of conv1 output positions (N*13*13) for BN1 statistics.
    pad1 : number of zero-padded position slots in p1u (corrected out of the variance).
    """
    n = o_ref.shape[0]                    # batch
    m2 = acc2_ref.shape[0]                # 25 * n conv2 output rows, (pos, batch) order
    inv_m1 = 1.0 / m1
    inv_m2 = 1.0 / m2
    inv_n = 1.0 / n

    w1 = w1_ref[...]                      # (128,128) bf16, block-diagonal 8 x (16->16)
    tmat = t_ref[...]                     # (128,128) f32: period-16 lane reduce + tile

    # ---- conv1 BatchNorm statistics over the unique N*13*13 positions -----------
    # p1u packs 8 positions per row; block-diagonal w1 keeps slots independent,
    # so output lane 16*s + c holds conv1 channel c of position slot s.
    y1u = jnp.dot(p1u_ref[...], w1, preferred_element_type=jnp.float32)
    sum1 = jnp.dot(jnp.sum(y1u, axis=0, keepdims=True), tmat,
                   preferred_element_type=jnp.float32)            # per-channel, tiled 8x
    mean1 = sum1 * inv_m1
    d1 = y1u - mean1
    csq1 = jnp.dot(jnp.sum(d1 * d1, axis=0, keepdims=True), tmat,
                   preferred_element_type=jnp.float32)
    # zero-padded position slots contribute mean^2 each to the centered sum: remove.
    var1 = jnp.maximum((csq1 - pad1 * mean1 * mean1) * inv_m1, 0.0)
    scale1 = g1_ref[...] * jax.lax.rsqrt(var1 + EPS)
    shift1 = b1_ref[...] - mean1 * scale1
    # Fold the BN scale into the conv1 weight columns once (outside the hot loop).
    w1s = (w1.astype(jnp.float32) * scale1).astype(jnp.bfloat16)

    # ---- conv1 (+BN+LReLU) and conv2: 8 taps per matmul, accumulated in VMEM ----
    # Only 4 static iterations; the accumulator lives in a scratch ref so the live
    # set per iteration is one (25N,128) temporary.
    for g in range(NGROUPS):
        y1g = jnp.dot(p1e_ref[g], w1s, preferred_element_type=jnp.float32) + shift1
        y1g = _leaky(y1g)
        part = jnp.dot(y1g.astype(jnp.bfloat16), w2_ref[g],
                       preferred_element_type=jnp.float32)
        if g == 0:
            acc2_ref[...] = part
        else:
            acc2_ref[...] += part

    # ---- conv2 BatchNorm (two-pass variance) + LeakyReLU -------------------------
    acc2 = acc2_ref[...]
    mean2 = jnp.sum(acc2, axis=0, keepdims=True) * inv_m2
    d2 = acc2 - mean2
    var2 = jnp.maximum(jnp.sum(d2 * d2, axis=0, keepdims=True) * inv_m2, 0.0)
    scale2 = g2_ref[...] * jax.lax.rsqrt(var2 + EPS)
    shift2 = b2_ref[...] - mean2 * scale2
    y2_ref[...] = _leaky(acc2 * scale2 + shift2).astype(jnp.bfloat16)

    # ---- conv3: rows are (pos, batch)-ordered, so tap q is a contiguous slice ----
    acc3 = jnp.zeros((n, C_PAD), jnp.float32)
    for q in range(POS3):
        slab = y2_ref[pl.ds(q * n, n), :]
        acc3 = acc3 + jnp.dot(slab, w3_ref[q], preferred_element_type=jnp.float32)

    # ---- conv3 BatchNorm (two-pass) + LeakyReLU ----------------------------------
    mean3 = jnp.sum(acc3, axis=0, keepdims=True) * inv_n
    d3 = acc3 - mean3
    var3 = jnp.maximum(jnp.sum(d3 * d3, axis=0, keepdims=True) * inv_n, 0.0)
    scale3 = g3_ref[...] * jax.lax.rsqrt(var3 + EPS)
    shift3 = b3_ref[...] - mean3 * scale3
    y3 = _leaky(acc3 * scale3 + shift3)

    # ---- Linear(64, 1): lane-padded output, column 0 carries the logit ----------
    o_ref[...] = jnp.dot(y3.astype(jnp.bfloat16), wl_ref[...],
                         preferred_element_type=jnp.float32) + bl_ref[...]


# ---------------------------------------------------------------------------
# JAX glue: lane-packed im2col of the raw image + parameter packing
# ---------------------------------------------------------------------------
def _build_patches(image):
    """image (N,1,28,28) f32 -> lane-packed conv1 patch buffers (bf16).

    p1u: (rows, 128)      unique conv1 patches, 8 positions x 16 values per row
                          (conv1 BN statistics).  Also returns (m1, pad_slots).
    p1e: (4, 25N, 128)    conv1 patches expanded per conv2 tap, 8 taps packed along
                          lanes; rows ordered (conv2 output position, batch).
    """
    n, cin, h, w = image.shape
    assert cin == 1
    oh1 = (h - K1H) // S1 + 1
    ow1 = (w - K1W) // S1 + 1
    oh2 = (oh1 - K2H) // S2 + 1
    ow2 = (ow1 - K2W) // S2 + 1
    oh3 = (oh2 - K3H) // S3 + 1
    ow3 = (ow2 - K3W) // S3 + 1
    # Flatten + Linear(64,1) requires conv3 to emit a single position (28x28 inputs).
    assert (oh2, ow2) == (K3H, K3W) and (oh3, ow3) == (1, 1)

    cols = []
    for i in range(K1H):
        for j in range(K1W):
            cols.append(image[:, 0, i:i + S1 * oh1:S1, j:j + S1 * ow1:S1])
    p1 = jnp.stack(cols, axis=-1)                               # (N,13,13,9)
    p1 = jnp.pad(p1, ((0, 0), (0, 0), (0, 0), (0, CB - K1)))    # (N,13,13,16)

    # Unique positions, 8 per 128-lane row (zero-padded slots are tracked exactly;
    # a zero patch produces exactly zero conv1 output since conv biases are folded
    # away, so only the variance needs a pad correction).
    m1 = n * oh1 * ow1
    rows1 = _round_up(pl.cdiv(m1, PACK), 8)
    pad_slots = rows1 * PACK - m1
    p1u = p1.reshape(m1, CB)
    p1u = jnp.pad(p1u, ((0, pad_slots), (0, 0))).reshape(rows1, C_PAD)

    # conv2-tap-expanded patches, 8 taps packed per 128-lane row, rows = (pos, batch).
    taps = []
    for di in range(K2H):
        for dj in range(K2W):
            s = p1[:, di:di + S2 * oh2:S2, dj:dj + S2 * ow2:S2, :]   # (N,5,5,16)
            taps.append(jnp.transpose(s, (1, 2, 0, 3)).reshape(oh2 * ow2 * n, CB))
    taps += [jnp.zeros_like(taps[0])] * (TAPS2_PAD - TAPS2)          # 7 fake taps
    p1e = jnp.stack(taps, axis=0)                                    # (32, 25N, 16)
    p1e = p1e.reshape(NGROUPS, PACK, oh2 * ow2 * n, CB)
    p1e = jnp.transpose(p1e, (0, 2, 1, 3)).reshape(NGROUPS, oh2 * ow2 * n, C_PAD)
    return p1u.astype(jnp.bfloat16), p1e.astype(jnp.bfloat16), m1, pad_slots


def _prep_params(params):
    """PyTorch-layout weights -> lane-packed / channels-last, 128-lane padded, bf16."""
    w1, _, g1, be1 = params["block1"]   # conv biases cancel under training-mode BN
    w2, _, g2, be2 = params["block2"]
    w3, _, g3, be3 = params["block3"]
    wl, bl = params["linear"]

    def pad_row(v):
        return jnp.zeros((1, C_PAD), jnp.float32).at[0, :v.shape[0]].set(
            v.astype(jnp.float32))

    def tile_row(v):   # conv1 gamma/beta tiled 8x to match the packed lane layout
        return jnp.tile(v.astype(jnp.float32), C_PAD // v.shape[0]).reshape(1, C_PAD)

    c1 = w1.shape[0]                                               # 16
    w1m = jnp.transpose(w1, (2, 3, 1, 0)).reshape(K1, c1)          # [i*3+j, cout]
    w1blk = jnp.zeros((CB, CB), jnp.float32).at[:K1, :c1].set(w1m.astype(jnp.float32))
    w1bd = jnp.kron(jnp.eye(PACK, dtype=jnp.float32), w1blk).astype(jnp.bfloat16)

    c2, c1_ = w2.shape[0], w2.shape[1]                             # 32, 16
    w2m = jnp.transpose(w2, (2, 3, 1, 0)).reshape(TAPS2, c1_, c2)  # [tap, cin, cout]
    w2m = jnp.pad(w2m, ((0, TAPS2_PAD - TAPS2), (0, CB - c1_), (0, 0)))
    w2g = w2m.reshape(NGROUPS, PACK * CB, c2)                      # taps stacked on K
    w2p = jnp.zeros((NGROUPS, C_PAD, C_PAD), jnp.bfloat16).at[:, :, :c2].set(
        w2g.astype(jnp.bfloat16))

    c3, c2_ = w3.shape[0], w3.shape[1]                             # 64, 32
    w3m = jnp.transpose(w3, (2, 3, 1, 0)).reshape(POS3, c2_, c3)   # [pos, cin, cout]
    w3p = jnp.zeros((POS3, C_PAD, C_PAD), jnp.bfloat16).at[:, :c2_, :c3].set(
        w3m.astype(jnp.bfloat16))

    f = wl.shape[1]                                                # 64
    wlp = jnp.zeros((C_PAD, C_PAD), jnp.bfloat16).at[:f, 0].set(
        wl[0].astype(jnp.bfloat16))
    blp = jnp.zeros((1, C_PAD), jnp.float32).at[0, 0].set(bl[0].astype(jnp.float32))

    # Period-16 lane reduce-and-tile operator for the packed conv1 statistics:
    # (sums @ T)[l] = sum over the 8 slots of channel (l % 16), already tiled 8x.
    lane = jnp.arange(C_PAD)
    tmat = (lane[:, None] % CB == lane[None, :] % CB).astype(jnp.float32)

    return (tmat, w1bd, tile_row(g1), tile_row(be1),
            w2p, pad_row(g2), pad_row(be2),
            w3p, pad_row(g3), pad_row(be3),
            wlp, blp)


@jax.jit
def discriminator_forward(image, params):
    n = image.shape[0]
    p1u, p1e, m1, pad_slots = _build_patches(image)
    prepped = _prep_params(params)

    m2 = POS3 * n
    operands = (p1u, p1e) + prepped
    scratch_shapes = [pltpu.VMEM((m2, C_PAD), jnp.float32),    # conv2 accumulator
                      pltpu.VMEM((m2, C_PAD), jnp.bfloat16)]   # conv2 activations

    # VMEM budget and advisory cost estimate sized from the real buffers.
    in_bytes = sum(int(a.size) * a.dtype.itemsize for a in operands)
    out_bytes = n * C_PAD * 4
    scratch_bytes = m2 * C_PAD * (4 + 2)
    total_bytes = in_bytes + out_bytes + scratch_bytes
    vmem_limit = int(min(64 << 20, max(32 << 20, 2 * total_bytes + (8 << 20))))
    flops = 2 * C_PAD * C_PAD * (p1u.shape[0] + 2 * NGROUPS * m2 + POS3 * n + n + 2)
    cost = pl.CostEstimate(flops=flops, transcendentals=3 * C_PAD,
                           bytes_accessed=total_bytes)

    kernel = functools.partial(fused_discriminator_kernel, m1=m1, pad1=pad_slots)
    out = pl.pallas_call(
        kernel,
        out_shape=jax.ShapeDtypeStruct((n, C_PAD), jnp.float32),
        in_specs=[_VMEM] * len(operands),
        out_specs=_VMEM,
        scratch_shapes=scratch_shapes,
        compiler_params=pltpu.CompilerParams(vmem_limit_bytes=vmem_limit),
        cost_estimate=cost,
    )(*operands)
    # TODO(synk): for large training batches (N >~ 512) add a row-blocked grid with
    # partial BN statistics reduced across blocks (dimension_semantics=("parallel",))
    # so the working set stays within v7x's 64 MiB VMEM and both TensorCores are used.
    return out[:, :1]                                              # (N, 1) logits


# ---------------------------------------------------------------------------
# Deterministic parameter init (shapes follow the PyTorch module's __init__)
# ---------------------------------------------------------------------------
def init_params(key):
    def conv_params(key, cin, cout, kh, kw):
        kw_, kb_ = jax.random.split(key)
        fan_in = cin * kh * kw
        bound = 1.0 / jnp.sqrt(fan_in)
        w = jax.random.uniform(kw_, (cout, cin, kh, kw), jnp.float32, -bound, bound)
        b = jax.random.uniform(kb_, (cout,), jnp.float32, -bound, bound)
        gamma = jnp.ones((cout,), jnp.float32)   # BatchNorm2d default weight
        beta = jnp.zeros((cout,), jnp.float32)   # BatchNorm2d default bias
        return (w, b, gamma, beta)

    k1, k2, k3, k4, k5 = jax.random.split(key, 5)
    bound = 1.0 / jnp.sqrt(64.0)
    return {
        "block1": conv_params(k1, 1, 16, 3, 3),
        "block2": conv_params(k2, 16, 32, 5, 5),
        "block3": conv_params(k3, 32, 64, 5, 5),
        "linear": (
            jax.random.uniform(k4, (1, 64), jnp.float32, -bound, bound),
            jax.random.uniform(k5, (1,), jnp.float32, -bound, bound),
        ),
    }


if __name__ == "__main__":
    key = jax.random.PRNGKey(0)
    k_params, k_img = jax.random.split(key)
    params = init_params(k_params)

    # MNIST-like input: 28x28 -> 13x13 -> 5x5 -> 1x1, so Flatten yields 64 features.
    image = jax.random.normal(k_img, (2, 1, 28, 28), dtype=jnp.float32)

    out = discriminator_forward(image, params)
    jax.block_until_ready(out)
    assert out.shape == (2, 1), out.shape
    print("KERNEL_OK")
</pallas_src>

<mosaic_0001>
module attributes {stable_mosaic.version = 11 : i64} {
  func.func @fused_discriminator_kernel(%arg0: memref<48x128xbf16, #tpu.memory_space<vmem>>, %arg1: memref<4x50x128xbf16, #tpu.memory_space<vmem>>, %arg2: memref<128x128xf32, #tpu.memory_space<vmem>>, %arg3: memref<128x128xbf16, #tpu.memory_space<vmem>>, %arg4: memref<1x128xf32, #tpu.memory_space<vmem>>, %arg5: memref<1x128xf32, #tpu.memory_space<vmem>>, %arg6: memref<4x128x128xbf16, #tpu.memory_space<vmem>>, %arg7: memref<1x128xf32, #tpu.memory_space<vmem>>, %arg8: memref<1x128xf32, #tpu.memory_space<vmem>>, %arg9: memref<25x128x128xbf16, #tpu.memory_space<vmem>>, %arg10: memref<1x128xf32, #tpu.memory_space<vmem>>, %arg11: memref<1x128xf32, #tpu.memory_space<vmem>>, %arg12: memref<128x128xbf16, #tpu.memory_space<vmem>>, %arg13: memref<1x128xf32, #tpu.memory_space<vmem>>, %arg14: memref<2x128xf32, #tpu.memory_space<vmem>>, %arg15: memref<50x128xf32, #tpu.memory_space<vmem>>, %arg16: memref<50x128xbf16, #tpu.memory_space<vmem>>) attributes {dimension_semantics = [], scalar_prefetch = 0 : i64, scratch_operands = 2 : i64, tpu.core_type = #tpu.core_type<tc>} {
    %c0 = arith.constant 0 : index
    %c0_0 = arith.constant 0 : index
    %0 = vector.load %arg3[%c0, %c0_0] : memref<128x128xbf16, #tpu.memory_space<vmem>>, vector<128x128xbf16>
    %c0_1 = arith.constant 0 : index
    %c0_2 = arith.constant 0 : index
    %1 = vector.load %arg2[%c0_1, %c0_2] : memref<128x128xf32, #tpu.memory_space<vmem>>, vector<128x128xf32>
    %c0_3 = arith.constant 0 : index
    %c0_4 = arith.constant 0 : index
    %2 = vector.load %arg0[%c0_3, %c0_4] : memref<48x128xbf16, #tpu.memory_space<vmem>>, vector<48x128xbf16>
    %cst = arith.constant dense<0.000000e+00> : vector<48x128xf32>
    %3 = tpu.matmul %2, %0, %cst {dimension_numbers = #tpu.dot_dimension_numbers<[1], [0], [0], [1], [0, 0, 1, 1], [], []>} : vector<48x128xbf16>, vector<128x128xbf16>, vector<48x128xf32> -> vector<48x128xf32>
    %cst_5 = arith.constant dense<0.000000e+00> : vector<128xf32>
    %4 = vector.multi_reduction <add>, %3, %cst_5 [0] : vector<48x128xf32> to vector<128xf32>
    %5 = vector.shape_cast %4 : vector<128xf32> to vector<1x128xf32>
    %cst_6 = arith.constant dense<0.000000e+00> : vector<1x128xf32>
    %6 = tpu.matmul %5, %1, %cst_6 {dimension_numbers = #tpu.dot_dimension_numbers<[1], [0], [0], [1], [0, 0, 1, 1], [], []>} : vector<1x128xf32>, vector<128x128xf32>, vector<1x128xf32> -> vector<1x128xf32>
    %cst_7 = arith.constant 2.958580e-03 : f32
    %7 = vector.broadcast %cst_7 : f32 to vector<1x128xf32>
    %8 = arith.mulf %6, %7 : vector<1x128xf32>
    %9 = vector.broadcast %8 : vector<1x128xf32> to vector<48x128xf32>
    %10 = arith.subf %3, %9 : vector<48x128xf32>
    %11 = arith.mulf %10, %10 : vector<48x128xf32>
    %cst_8 = arith.constant dense<0.000000e+00> : vector<128xf32>
    %12 = vector.multi_reduction <add>, %11, %cst_8 [0] : vector<48x128xf32> to vector<128xf32>
    %13 = vector.shape_cast %12 : vector<128xf32> to vector<1x128xf32>
    %cst_9 = arith.constant dense<0.000000e+00> : vector<1x128xf32>
    %14 = tpu.matmul %13, %1, %cst_9 {dimension_numbers = #tpu.dot_dimension_numbers<[1], [0], [0], [1], [0, 0, 1, 1], [], []>} : vector<1x128xf32>, vector<128x128xf32>, vector<1x128xf32> -> vector<1x128xf32>
    %cst_10 = arith.constant 4.600000e+01 : f32
    %15 = vector.broadcast %cst_10 : f32 to vector<1x128xf32>
    %16 = arith.mulf %15, %8 : vector<1x128xf32>
    %17 = arith.mulf %16, %8 : vector<1x128xf32>
    %18 = arith.subf %14, %17 : vector<1x128xf32>
    %cst_11 = arith.constant 2.958580e-03 : f32
    %19 = vector.broadcast %cst_11 : f32 to vector<1x128xf32>
    %20 = arith.mulf %18, %19 : vector<1x128xf32>
    %cst_12 = arith.constant 0.000000e+00 : f32
    %21 = vector.broadcast %cst_12 : f32 to vector<1x128xf32>
    %22 = arith.maximumf %20, %21 : vector<1x128xf32>
    %c0_13 = arith.constant 0 : index
    %c0_14 = arith.constant 0 : index
    %23 = vector.load %arg4[%c0_13, %c0_14] : memref<1x128xf32, #tpu.memory_space<vmem>>, vector<1x128xf32>
    %cst_15 = arith.constant 9.99999974E-6 : f32
    %24 = vector.broadcast %cst_15 : f32 to vector<1x128xf32>
    %25 = arith.addf %22, %24 : vector<1x128xf32>
    %26 = math.rsqrt %25 : vector<1x128xf32>
    %27 = arith.mulf %23, %26 : vector<1x128xf32>
    %c0_16 = arith.constant 0 : index
    %c0_17 = arith.constant 0 : index
    %28 = vector.load %arg5[%c0_16, %c0_17] : memref<1x128xf32, #tpu.memory_space<vmem>>, vector<1x128xf32>
    %29 = arith.mulf %8, %27 : vector<1x128xf32>
    %30 = arith.subf %28, %29 : vector<1x128xf32>
    %31 = arith.extf %0 : vector<128x128xbf16> to vector<128x128xf32>
    %32 = vector.broadcast %27 : vector<1x128xf32> to vector<128x128xf32>
    %33 = arith.mulf %31, %32 : vector<128x128xf32>
    %34 = arith.truncf %33 : vector<128x128xf32> to vector<128x128xbf16>
    %c0_18 = arith.constant 0 : index
    %c0_19 = arith.constant 0 : index
    %c0_20 = arith.constant 0 : index
    %35 = vector.load %arg1[%c0_18, %c0_19, %c0_20] : memref<4x50x128xbf16, #tpu.memory_space<vmem>>, vector<1x50x128xbf16>
    %36 = vector.shape_cast %35 : vector<1x50x128xbf16> to vector<50x128xbf16>
    %cst_21 = arith.constant dense<0.000000e+00> : vector<50x128xf32>
    %37 = tpu.matmul %36, %34, %cst_21 {dimension_numbers = #tpu.dot_dimension_numbers<[1], [0], [0], [1], [0, 0, 1, 1], [], []>} : vector<50x128xbf16>, vector<128x128xbf16>, vector<50x128xf32> -> vector<50x128xf32>
    %38 = vector.broadcast %30 : vector<1x128xf32> to vector<50x128xf32>
    %39 = arith.addf %37, %38 : vector<50x128xf32>
    %cst_22 = arith.constant 2.000000e-01 : f32
    %40 = vector.broadcast %cst_22 : f32 to vector<50x128xf32>
    %41 = arith.mulf %40, %39 : vector<50x128xf32>
    %42 = arith.maximumf %39, %41 : vector<50x128xf32>
    %43 = arith.truncf %42 : vector<50x128xf32> to vector<50x128xbf16>
    %c0_23 = arith.constant 0 : index
    %c0_24 = arith.constant 0 : index
    %c0_25 = arith.constant 0 : index
    %44 = vector.load %arg6[%c0_23, %c0_24, %c0_25] : memref<4x128x128xbf16, #tpu.memory_space<vmem>>, vector<1x128x128xbf16>
    %45 = vector.shape_cast %44 : vector<1x128x128xbf16> to vector<128x128xbf16>
    %cst_26 = arith.constant dense<0.000000e+00> : vector<50x128xf32>
    %46 = tpu.matmul %43, %45, %cst_26 {dimension_numbers = #tpu.dot_dimension_numbers<[1], [0], [0], [1], [0, 0, 1, 1], [], []>} : vector<50x128xbf16>, vector<128x128xbf16>, vector<50x128xf32> -> vector<50x128xf32>
    %c0_27 = arith.constant 0 : index
    %c0_28 = arith.constant 0 : index
    %47 = vector.load %arg15[%c0_27, %c0_28] : memref<50x128xf32, #tpu.memory_space<vmem>>, vector<50x128xf32>
    tpu.vector_store %arg15[%c0_27, %c0_28], %46 {strides = array<i32>} : memref<50x128xf32, #tpu.memory_space<vmem>>, vector<50x128xf32>,
    %c1 = arith.constant 1 : index
    %c0_29 = arith.constant 0 : index
    %c0_30 = arith.constant 0 : index
    %48 = vector.load %arg1[%c1, %c0_29, %c0_30] : memref<4x50x128xbf16, #tpu.memory_space<vmem>>, vector<1x50x128xbf16>
    %49 = vector.shape_cast %48 : vector<1x50x128xbf16> to vector<50x128xbf16>
    %cst_31 = arith.constant dense<0.000000e+00> : vector<50x128xf32>
    %50 = tpu.matmul %49, %34, %cst_31 {dimension_numbers = #tpu.dot_dimension_numbers<[1], [0], [0], [1], [0, 0, 1, 1], [], []>} : vector<50x128xbf16>, vector<128x128xbf16>, vector<50x128xf32> -> vector<50x128xf32>
    %51 = vector.broadcast %30 : vector<1x128xf32> to vector<50x128xf32>
    %52 = arith.addf %50, %51 : vector<50x128xf32>
    %cst_32 = arith.constant 2.000000e-01 : f32
    %53 = vector.broadcast %cst_32 : f32 to vector<50x128xf32>
    %54 = arith.mulf %53, %52 : vector<50x128xf32>
    %55 = arith.maximumf %52, %54 : vector<50x128xf32>
    %56 = arith.truncf %55 : vector<50x128xf32> to vector<50x128xbf16>
    %c1_33 = arith.constant 1 : index
    %c0_34 = arith.constant 0 : index
    %c0_35 = arith.constant 0 : index
    %57 = vector.load %arg6[%c1_33, %c0_34, %c0_35] : memref<4x128x128xbf16, #tpu.memory_space<vmem>>, vector<1x128x128xbf16>
    %58 = vector.shape_cast %57 : vector<1x128x128xbf16> to vector<128x128xbf16>
    %cst_36 = arith.constant dense<0.000000e+00> : vector<50x128xf32>
    %59 = tpu.matmul %56, %58, %cst_36 {dimension_numbers = #tpu.dot_dimension_numbers<[1], [0], [0], [1], [0, 0, 1, 1], [], []>} : vector<50x128xbf16>, vector<128x128xbf16>, vector<50x128xf32> -> vector<50x128xf32>
    %c0_37 = arith.constant 0 : index
    %c0_38 = arith.constant 0 : index
    %60 = vector.load %arg15[%c0_37, %c0_38] : memref<50x128xf32, #tpu.memory_space<vmem>>, vector<50x128xf32>
    %61 = arith.addf %60, %59 : vector<50x128xf32>
    %c0_39 = arith.constant 0 : index
    %c0_40 = arith.constant 0 : index
    %62 = vector.load %arg15[%c0_39, %c0_40] : memref<50x128xf32, #tpu.memory_space<vmem>>, vector<50x128xf32>
    tpu.vector_store %arg15[%c0_39, %c0_40], %61 {strides = array<i32>} : memref<50x128xf32, #tpu.memory_space<vmem>>, vector<50x128xf32>,
    %c2 = arith.constant 2 : index
    %c0_41 = arith.constant 0 : index
    %c0_42 = arith.constant 0 : index
    %63 = vector.load %arg1[%c2, %c0_41, %c0_42] : memref<4x50x128xbf16, #tpu.memory_space<vmem>>, vector<1x50x128xbf16>
    %64 = vector.shape_cast %63 : vector<1x50x128xbf16> to vector<50x128xbf16>
    %cst_43 = arith.constant dense<0.000000e+00> : vector<50x128xf32>
    %65 = tpu.matmul %64, %34, %cst_43 {dimension_numbers = #tpu.dot_dimension_numbers<[1], [0], [0], [1], [0, 0, 1, 1], [], []>} : vector<50x128xbf16>, vector<128x128xbf16>, vector<50x128xf32> -> vector<50x128xf32>
    %66 = vector.broadcast %30 : vector<1x128xf32> to vector<50x128xf32>
    %67 = arith.addf %65, %66 : vector<50x128xf32>
    %cst_44 = arith.constant 2.000000e-01 : f32
    %68 = vector.broadcast %cst_44 : f32 to vector<50x128xf32>
    %69 = arith.mulf %68, %67 : vector<50x128xf32>
    %70 = arith.maximumf %67, %69 : vector<50x128xf32>
    %71 = arith.truncf %70 : vector<50x128xf32> to vector<50x128xbf16>
    %c2_45 = arith.constant 2 : index
    %c0_46 = arith.constant 0 : index
    %c0_47 = arith.constant 0 : index
    %72 = vector.load %arg6[%c2_45, %c0_46, %c0_47] : memref<4x128x128xbf16, #tpu.memory_space<vmem>>, vector<1x128x128xbf16>
    %73 = vector.shape_cast %72 : vector<1x128x128xbf16> to vector<128x128xbf16>
    %cst_48 = arith.constant dense<0.000000e+00> : vector<50x128xf32>
    %74 = tpu.matmul %71, %73, %cst_48 {dimension_numbers = #tpu.dot_dimension_numbers<[1], [0], [0], [1], [0, 0, 1, 1], [], []>} : vector<50x128xbf16>, vector<128x128xbf16>, vector<50x128xf32> -> vector<50x128xf32>
    %c0_49 = arith.constant 0 : index
    %c0_50 = arith.constant 0 : index
    %75 = vector.load %arg15[%c0_49, %c0_50] : memref<50x128xf32, #tpu.memory_space<vmem>>, vector<50x128xf32>
    %76 = arith.addf %75, %74 : vector<50x128xf32>
    %c0_51 = arith.constant 0 : index
    %c0_52 = arith.constant 0 : index
    %77 = vector.load %arg15[%c0_51, %c0_52] : memref<50x128xf32, #tpu.memory_space<vmem>>, vector<50x128xf32>
    tpu.vector_store %arg15[%c0_51, %c0_52], %76 {strides = array<i32>} : memref<50x128xf32, #tpu.memory_space<vmem>>, vector<50x128xf32>,
    %c3 = arith.constant 3 : index
    %c0_53 = arith.constant 0 : index
    %c0_54 = arith.constant 0 : index
    %78 = vector.load %arg1[%c3, %c0_53, %c0_54] : memref<4x50x128xbf16, #tpu.memory_space<vmem>>, vector<1x50x128xbf16>
    %79 = vector.shape_cast %78 : vector<1x50x128xbf16> to vector<50x128xbf16>
    %cst_55 = arith.constant dense<0.000000e+00> : vector<50x128xf32>
    %80 = tpu.matmul %79, %34, %cst_55 {dimension_numbers = #tpu.dot_dimension_numbers<[1], [0], [0], [1], [0, 0, 1, 1], [], []>} : vector<50x128xbf16>, vector<128x128xbf16>, vector<50x128xf32> -> vector<50x128xf32>
    %81 = vector.broadcast %30 : vector<1x128xf32> to vector<50x128xf32>
    %82 = arith.addf %80, %81 : vector<50x128xf32>
    %cst_56 = arith.constant 2.000000e-01 : f32
    %83 = vector.broadcast %cst_56 : f32 to vector<50x128xf32>
    %84 = arith.mulf %83, %82 : vector<50x128xf32>
    %85 = arith.maximumf %82, %84 : vector<50x128xf32>
    %86 = arith.truncf %85 : vector<50x128xf32> to vector<50x128xbf16>
    %c3_57 = arith.constant 3 : index
    %c0_58 = arith.constant 0 : index
    %c0_59 = arith.constant 0 : index
    %87 = vector.load %arg6[%c3_57, %c0_58, %c0_59] : memref<4x128x128xbf16, #tpu.memory_space<vmem>>, vector<1x128x128xbf16>
    %88 = vector.shape_cast %87 : vector<1x128x128xbf16> to vector<128x128xbf16>
    %cst_60 = arith.constant dense<0.000000e+00> : vector<50x128xf32>
    %89 = tpu.matmul %86, %88, %cst_60 {dimension_numbers = #tpu.dot_dimension_numbers<[1], [0], [0], [1], [0, 0, 1, 1], [], []>} : vector<50x128xbf16>, vector<128x128xbf16>, vector<50x128xf32> -> vector<50x128xf32>
    %c0_61 = arith.constant 0 : index
    %c0_62 = arith.constant 0 : index
    %90 = vector.load %arg15[%c0_61, %c0_62] : memref<50x128xf32, #tpu.memory_space<vmem>>, vector<50x128xf32>
    %91 = arith.addf %90, %89 : vector<50x128xf32>
    %c0_63 = arith.constant 0 : index
    %c0_64 = arith.constant 0 : index
    %92 = vector.load %arg15[%c0_63, %c0_64] : memref<50x128xf32, #tpu.memory_space<vmem>>, vector<50x128xf32>
    tpu.vector_store %arg15[%c0_63, %c0_64], %91 {strides = array<i32>} : memref<50x128xf32, #tpu.memory_space<vmem>>, vector<50x128xf32>,
    %c0_65 = arith.constant 0 : index
    %c0_66 = arith.constant 0 : index
    %93 = vector.load %arg15[%c0_65, %c0_66] : memref<50x128xf32, #tpu.memory_space<vmem>>, vector<50x128xf32>
    %cst_67 = arith.constant dense<0.000000e+00> : vector<128xf32>
    %94 = vector.multi_reduction <add>, %93, %cst_67 [0] : vector<50x128xf32> to vector<128xf32>
    %95 = vector.shape_cast %94 : vector<128xf32> to vector<1x128xf32>
    %cst_68 = arith.constant 2.000000e-02 : f32
    %96 = vector.broadcast %cst_68 : f32 to vector<1x128xf32>
    %97 = arith.mulf %95, %96 : vector<1x128xf32>
    %98 = vector.broadcast %97 : vector<1x128xf32> to vector<50x128xf32>
    %99 = arith.subf %93, %98 : vector<50x128xf32>
    %100 = arith.mulf %99, %99 : vector<50x128xf32>
    %cst_69 = arith.constant dense<0.000000e+00> : vector<128xf32>
    %101 = vector.multi_reduction <add>, %100, %cst_69 [0] : vector<50x128xf32> to vector<128xf32>
    %102 = vector.shape_cast %101 : vector<128xf32> to vector<1x128xf32>
    %cst_70 = arith.constant 2.000000e-02 : f32
    %103 = vector.broadcast %cst_70 : f32 to vector<1x128xf32>
    %104 = arith.mulf %102, %103 : vector<1x128xf32>
    %cst_71 = arith.constant 0.000000e+00 : f32
    %105 = vector.broadcast %cst_71 : f32 to vector<1x128xf32>
    %106 = arith.maximumf %104, %105 : vector<1x128xf32>
    %c0_72 = arith.constant 0 : index
    %c0_73 = arith.constant 0 : index
    %107 = vector.load %arg7[%c0_72, %c0_73] : memref<1x128xf32, #tpu.memory_space<vmem>>, vector<1x128xf32>
    %cst_74 = arith.constant 9.99999974E-6 : f32
    %108 = vector.broadcast %cst_74 : f32 to vector<1x128xf32>
    %109 = arith.addf %106, %108 : vector<1x128xf32>
    %110 = math.rsqrt %109 : vector<1x128xf32>
    %111 = arith.mulf %107, %110 : vector<1x128xf32>
    %c0_75 = arith.constant 0 : index
    %c0_76 = arith.constant 0 : index
    %112 = vector.load %arg8[%c0_75, %c0_76] : memref<1x128xf32, #tpu.memory_space<vmem>>, vector<1x128xf32>
    %113 = arith.mulf %97, %111 : vector<1x128xf32>
    %114 = arith.subf %112, %113 : vector<1x128xf32>
    %115 = vector.broadcast %111 : vector<1x128xf32> to vector<50x128xf32>
    %116 = arith.mulf %93, %115 : vector<50x128xf32>
    %117 = vector.broadcast %114 : vector<1x128xf32> to vector<50x128xf32>
    %118 = arith.addf %116, %117 : vector<50x128xf32>
    %cst_77 = arith.constant 2.000000e-01 : f32
    %119 = vector.broadcast %cst_77 : f32 to vector<50x128xf32>
    %120 = arith.mulf %119, %118 : vector<50x128xf32>
    %121 = arith.maximumf %118, %120 : vector<50x128xf32>
    %122 = arith.truncf %121 : vector<50x128xf32> to vector<50x128xbf16>
    %c0_78 = arith.constant 0 : index
    %c0_79 = arith.constant 0 : index
    %123 = vector.load %arg16[%c0_78, %c0_79] : memref<50x128xbf16, #tpu.memory_space<vmem>>, vector<50x128xbf16>
    tpu.vector_store %arg16[%c0_78, %c0_79], %122 {strides = array<i32>} : memref<50x128xbf16, #tpu.memory_space<vmem>>, vector<50x128xbf16>,
    %cst_80 = arith.constant 0.000000e+00 : f32
    %124 = vector.broadcast %cst_80 : f32 to vector<2x128xf32>
    %c0_81 = arith.constant 0 : index
    %c0_82 = arith.constant 0 : index
    %125 = vector.load %arg16[%c0_81, %c0_82] : memref<50x128xbf16, #tpu.memory_space<vmem>>, vector<2x128xbf16>
    %c0_83 = arith.constant 0 : index
    %c0_84 = arith.constant 0 : index
    %c0_85 = arith.constant 0 : index
    %126 = vector.load %arg9[%c0_83, %c0_84, %c0_85] : memref<25x128x128xbf16, #tpu.memory_space<vmem>>, vector<1x128x128xbf16>
    %127 = vector.shape_cast %126 : vector<1x128x128xbf16> to vector<128x128xbf16>
    %cst_86 = arith.constant dense<0.000000e+00> : vector<2x128xf32>
    %128 = tpu.matmul %125, %127, %cst_86 {dimension_numbers = #tpu.dot_dimension_numbers<[1], [0], [0], [1], [0, 0, 1, 1], [], []>} : vector<2x128xbf16>, vector<128x128xbf16>, vector<2x128xf32> -> vector<2x128xf32>
    %129 = arith.addf %124, %128 : vector<2x128xf32>
    %c2_87 = arith.constant 2 : index
    %c0_88 = arith.constant 0 : index
    %130 = vector.load %arg16[%c2_87, %c0_88] : memref<50x128xbf16, #tpu.memory_space<vmem>>, vector<2x128xbf16>
    %c1_89 = arith.constant 1 : index
    %c0_90 = arith.constant 0 : index
    %c0_91 = arith.constant 0 : index
    %131 = vector.load %arg9[%c1_89, %c0_90, %c0_91] : memref<25x128x128xbf16, #tpu.memory_space<vmem>>, vector<1x128x128xbf16>
    %132 = vector.shape_cast %131 : vector<1x128x128xbf16> to vector<128x128xbf16>
    %cst_92 = arith.constant dense<0.000000e+00> : vector<2x128xf32>
    %133 = tpu.matmul %130, %132, %cst_92 {dimension_numbers = #tpu.dot_dimension_numbers<[1], [0], [0], [1], [0, 0, 1, 1], [], []>} : vector<2x128xbf16>, vector<128x128xbf16>, vector<2x128xf32> -> vector<2x128xf32>
    %134 = arith.addf %129, %133 : vector<2x128xf32>
    %c4 = arith.constant 4 : index
    %c0_93 = arith.constant 0 : index
    %135 = vector.load %arg16[%c4, %c0_93] : memref<50x128xbf16, #tpu.memory_space<vmem>>, vector<2x128xbf16>
    %c2_94 = arith.constant 2 : index
    %c0_95 = arith.constant 0 : index
    %c0_96 = arith.constant 0 : index
    %136 = vector.load %arg9[%c2_94, %c0_95, %c0_96] : memref<25x128x128xbf16, #tpu.memory_space<vmem>>, vector<1x128x128xbf16>
    %137 = vector.shape_cast %136 : vector<1x128x128xbf16> to vector<128x128xbf16>
    %cst_97 = arith.constant dense<0.000000e+00> : vector<2x128xf32>
    %138 = tpu.matmul %135, %137, %cst_97 {dimension_numbers = #tpu.dot_dimension_numbers<[1], [0], [0], [1], [0, 0, 1, 1], [], []>} : vector<2x128xbf16>, vector<128x128xbf16>, vector<2x128xf32> -> vector<2x128xf32>
    %139 = arith.addf %134, %138 : vector<2x128xf32>
    %c6 = arith.constant 6 : index
    %c0_98 = arith.constant 0 : index
    %140 = vector.load %arg16[%c6, %c0_98] : memref<50x128xbf16, #tpu.memory_space<vmem>>, vector<2x128xbf16>
    %c3_99 = arith.constant 3 : index
    %c0_100 = arith.constant 0 : index
    %c0_101 = arith.constant 0 : index
    %141 = vector.load %arg9[%c3_99, %c0_100, %c0_101] : memref<25x128x128xbf16, #tpu.memory_space<vmem>>, vector<1x128x128xbf16>
    %142 = vector.shape_cast %141 : vector<1x128x128xbf16> to vector<128x128xbf16>
    %cst_102 = arith.constant dense<0.000000e+00> : vector<2x128xf32>
    %143 = tpu.matmul %140, %142, %cst_102 {dimension_numbers = #tpu.dot_dimension_numbers<[1], [0], [0], [1], [0, 0, 1, 1], [], []>} : vector<2x128xbf16>, vector<128x128xbf16>, vector<2x128xf32> -> vector<2x128xf32>
    %144 = arith.addf %139, %143 : vector<2x128xf32>
    %c8 = arith.constant 8 : index
    %c0_103 = arith.constant 0 : index
    %145 = vector.load %arg16[%c8, %c0_103] : memref<50x128xbf16, #tpu.memory_space<vmem>>, vector<2x128xbf16>
    %c4_104 = arith.constant 4 : index
    %c0_105 = arith.constant 0 : index
    %c0_106 = arith.constant 0 : index
    %146 = vector.load %arg9[%c4_104, %c0_105, %c0_106] : memref<25x128x128xbf16, #tpu.memory_space<vmem>>, vector<1x128x128xbf16>
    %147 = vector.shape_cast %146 : vector<1x128x128xbf16> to vector<128x128xbf16>
    %cst_107 = arith.constant dense<0.000000e+00> : vector<2x128xf32>
    %148 = tpu.matmul %145, %147, %cst_107 {dimension_numbers = #tpu.dot_dimension_numbers<[1], [0], [0], [1], [0, 0, 1, 1], [], []>} : vector<2x128xbf16>, vector<128x128xbf16>, vector<2x128xf32> -> vector<2x128xf32>
    %149 = arith.addf %144, %148 : vector<2x128xf32>
    %c10 = arith.constant 10 : index
    %c0_108 = arith.constant 0 : index
    %150 = vector.load %arg16[%c10, %c0_108] : memref<50x128xbf16, #tpu.memory_space<vmem>>, vector<2x128xbf16>
    %c5 = arith.constant 5 : index
    %c0_109 = arith.constant 0 : index
    %c0_110 = arith.constant 0 : index
    %151 = vector.load %arg9[%c5, %c0_109, %c0_110] : memref<25x128x128xbf16, #tpu.memory_space<vmem>>, vector<1x128x128xbf16>
    %152 = vector.shape_cast %151 : vector<1x128x128xbf16> to vector<128x128xbf16>
    %cst_111 = arith.constant dense<0.000000e+00> : vector<2x128xf32>
    %153 = tpu.matmul %150, %152, %cst_111 {dimension_numbers = #tpu.dot_dimension_numbers<[1], [0], [0], [1], [0, 0, 1, 1], [], []>} : vector<2x128xbf16>, vector<128x128xbf16>, vector<2x128xf32> -> vector<2x128xf32>
    %154 = arith.addf %149, %153 : vector<2x128xf32>
    %c12 = arith.constant 12 : index
    %c0_112 = arith.constant 0 : index
    %155 = vector.load %arg16[%c12, %c0_112] : memref<50x128xbf16, #tpu.memory_space<vmem>>, vector<2x128xbf16>
    %c6_113 = arith.constant 6 : index
    %c0_114 = arith.constant 0 : index
    %c0_115 = arith.constant 0 : index
    %156 = vector.load %arg9[%c6_113, %c0_114, %c0_115] : memref<25x128x128xbf16, #tpu.memory_space<vmem>>, vector<1x128x128xbf16>
    %157 = vector.shape_cast %156 : vector<1x128x128xbf16> to vector<128x128xbf16>
    %cst_116 = arith.constant dense<0.000000e+00> : vector<2x128xf32>
    %158 = tpu.matmul %155, %157, %cst_116 {dimension_numbers = #tpu.dot_dimension_numbers<[1], [0], [0], [1], [0, 0, 1, 1], [], []>} : vector<2x128xbf16>, vector<128x128xbf16>, vector<2x128xf32> -> vector<2x128xf32>
    %159 = arith.addf %154, %158 : vector<2x128xf32>
    %c14 = arith.constant 14 : index
    %c0_117 = arith.constant 0 : index
    %160 = vector.load %arg16[%c14, %c0_117] : memref<50x128xbf16, #tpu.memory_space<vmem>>, vector<2x128xbf16>
    %c7 = arith.constant 7 : index
    %c0_118 = arith.constant 0 : index
    %c0_119 = arith.constant 0 : index
    %161 = vector.load %arg9[%c7, %c0_118, %c0_119] : memref<25x128x128xbf16, #tpu.memory_space<vmem>>, vector<1x128x128xbf16>
    %162 = vector.shape_cast %161 : vector<1x128x128xbf16> to vector<128x128xbf16>
    %cst_120 = arith.constant dense<0.000000e+00> : vector<2x128xf32>
    %163 = tpu.matmul %160, %162, %cst_120 {dimension_numbers = #tpu.dot_dimension_numbers<[1], [0], [0], [1], [0, 0, 1, 1], [], []>} : vector<2x128xbf16>, vector<128x128xbf16>, vector<2x128xf32> -> vector<2x128xf32>
    %164 = arith.addf %159, %163 : vector<2x128xf32>
    %c16 = arith.constant 16 : index
    %c0_121 = arith.constant 0 : index
    %165 = vector.load %arg16[%c16, %c0_121] : memref<50x128xbf16, #tpu.memory_space<vmem>>, vector<2x128xbf16>
    %c8_122 = arith.constant 8 : index
    %c0_123 = arith.constant 0 : index
    %c0_124 = arith.constant 0 : index
    %166 = vector.load %arg9[%c8_122, %c0_123, %c0_124] : memref<25x128x128xbf16, #tpu.memory_space<vmem>>, vector<1x128x128xbf16>
    %167 = vector.shape_cast %166 : vector<1x128x128xbf16> to vector<128x128xbf16>
    %cst_125 = arith.constant dense<0.000000e+00> : vector<2x128xf32>
    %168 = tpu.matmul %165, %167, %cst_125 {dimension_numbers = #tpu.dot_dimension_numbers<[1], [0], [0], [1], [0, 0, 1, 1], [], []>} : vector<2x128xbf16>, vector<128x128xbf16>, vector<2x128xf32> -> vector<2x128xf32>
    %169 = arith.addf %164, %168 : vector<2x128xf32>
    %c18 = arith.constant 18 : index
    %c0_126 = arith.constant 0 : index
    %170 = vector.load %arg16[%c18, %c0_126] : memref<50x128xbf16, #tpu.memory_space<vmem>>, vector<2x128xbf16>
    %c9 = arith.constant 9 : index
    %c0_127 = arith.constant 0 : index
    %c0_128 = arith.constant 0 : index
    %171 = vector.load %arg9[%c9, %c0_127, %c0_128] : memref<25x128x128xbf16, #tpu.memory_space<vmem>>, vector<1x128x128xbf16>
    %172 = vector.shape_cast %171 : vector<1x128x128xbf16> to vector<128x128xbf16>
    %cst_129 = arith.constant dense<0.000000e+00> : vector<2x128xf32>
    %173 = tpu.matmul %170, %172, %cst_129 {dimension_numbers = #tpu.dot_dimension_numbers<[1], [0], [0], [1], [0, 0, 1, 1], [], []>} : vector<2x128xbf16>, vector<128x128xbf16>, vector<2x128xf32> -> vector<2x128xf32>
    %174 = arith.addf %169, %173 : vector<2x128xf32>
    %c20 = arith.constant 20 : index
    %c0_130 = arith.constant 0 : index
    %175 = vector.load %arg16[%c20, %c0_130] : memref<50x128xbf16, #tpu.memory_space<vmem>>, vector<2x128xbf16>
    %c10_131 = arith.constant 10 : index
    %c0_132 = arith.constant 0 : index
    %c0_133 = arith.constant 0 : index
    %176 = vector.load %arg9[%c10_131, %c0_132, %c0_133] : memref<25x128x128xbf16, #tpu.memory_space<vmem>>, vector<1x128x128xbf16>
    %177 = vector.shape_cast %176 : vector<1x128x128xbf16> to vector<128x128xbf16>
    %cst_134 = arith.constant dense<0.000000e+00> : vector<2x128xf32>
    %178 = tpu.matmul %175, %177, %cst_134 {dimension_numbers = #tpu.dot_dimension_numbers<[1], [0], [0], [1], [0, 0, 1, 1], [], []>} : vector<2x128xbf16>, vector<128x128xbf16>, vector<2x128xf32> -> vector<2x128xf32>
    %179 = arith.addf %174, %178 : vector<2x128xf32>
    %c22 = arith.constant 22 : index
    %c0_135 = arith.constant 0 : index
    %180 = vector.load %arg16[%c22, %c0_135] : memref<50x128xbf16, #tpu.memory_space<vmem>>, vector<2x128xbf16>
    %c11 = arith.constant 11 : index
    %c0_136 = arith.constant 0 : index
    %c0_137 = arith.constant 0 : index
    %181 = vector.load %arg9[%c11, %c0_136, %c0_137] : memref<25x128x128xbf16, #tpu.memory_space<vmem>>, vector<1x128x128xbf16>
    %182 = vector.shape_cast %181 : vector<1x128x128xbf16> to vector<128x128xbf16>
    %cst_138 = arith.constant dense<0.000000e+00> : vector<2x128xf32>
    %183 = tpu.matmul %180, %182, %cst_138 {dimension_numbers = #tpu.dot_dimension_numbers<[1], [0], [0], [1], [0, 0, 1, 1], [], []>} : vector<2x128xbf16>, vector<128x128xbf16>, vector<2x128xf32> -> vector<2x128xf32>
    %184 = arith.addf %179, %183 : vector<2x128xf32>
    %c24 = arith.constant 24 : index
    %c0_139 = arith.constant 0 : index
    %185 = vector.load %arg16[%c24, %c0_139] : memref<50x128xbf16, #tpu.memory_space<vmem>>, vector<2x128xbf16>
    %c12_140 = arith.constant 12 : index
    %c0_141 = arith.constant 0 : index
    %c0_142 = arith.constant 0 : index
    %186 = vector.load %arg9[%c12_140, %c0_141, %c0_142] : memref<25x128x128xbf16, #tpu.memory_space<vmem>>, vector<1x128x128xbf16>
    %187 = vector.shape_cast %186 : vector<1x128x128xbf16> to vector<128x128xbf16>
    %cst_143 = arith.constant dense<0.000000e+00> : vector<2x128xf32>
    %188 = tpu.matmul %185, %187, %cst_143 {dimension_numbers = #tpu.dot_dimension_numbers<[1], [0], [0], [1], [0, 0, 1, 1], [], []>} : vector<2x128xbf16>, vector<128x128xbf16>, vector<2x128xf32> -> vector<2x128xf32>
    %189 = arith.addf %184, %188 : vector<2x128xf32>
    %c26 = arith.constant 26 : index
    %c0_144 = arith.constant 0 : index
    %190 = vector.load %arg16[%c26, %c0_144] : memref<50x128xbf16, #tpu.memory_space<vmem>>, vector<2x128xbf16>
    %c13 = arith.constant 13 : index
    %c0_145 = arith.constant 0 : index
    %c0_146 = arith.constant 0 : index
    %191 = vector.load %arg9[%c13, %c0_145, %c0_146] : memref<25x128x128xbf16, #tpu.memory_space<vmem>>, vector<1x128x128xbf16>
    %192 = vector.shape_cast %191 : vector<1x128x128xbf16> to vector<128x128xbf16>
    %cst_147 = arith.constant dense<0.000000e+00> : vector<2x128xf32>
    %193 = tpu.matmul %190, %192, %cst_147 {dimension_numbers = #tpu.dot_dimension_numbers<[1], [0], [0], [1], [0, 0, 1, 1], [], []>} : vector<2x128xbf16>, vector<128x128xbf16>, vector<2x128xf32> -> vector<2x128xf32>
    %194 = arith.addf %189, %193 : vector<2x128xf32>
    %c28 = arith.constant 28 : index
    %c0_148 = arith.constant 0 : index
    %195 = vector.load %arg16[%c28, %c0_148] : memref<50x128xbf16, #tpu.memory_space<vmem>>, vector<2x128xbf16>
    %c14_149 = arith.constant 14 : index
    %c0_150 = arith.constant 0 : index
    %c0_151 = arith.constant 0 : index
    %196 = vector.load %arg9[%c14_149, %c0_150, %c0_151] : memref<25x128x128xbf16, #tpu.memory_space<vmem>>, vector<1x128x128xbf16>
    %197 = vector.shape_cast %196 : vector<1x128x128xbf16> to vector<128x128xbf16>
    %cst_152 = arith.constant dense<0.000000e+00> : vector<2x128xf32>
    %198 = tpu.matmul %195, %197, %cst_152 {dimension_numbers = #tpu.dot_dimension_numbers<[1], [0], [0], [1], [0, 0, 1, 1], [], []>} : vector<2x128xbf16>, vector<128x128xbf16>, vector<2x128xf32> -> vector<2x128xf32>
    %199 = arith.addf %194, %198 : vector<2x128xf32>
    %c30 = arith.constant 30 : index
    %c0_153 = arith.constant 0 : index
    %200 = vector.load %arg16[%c30, %c0_153] : memref<50x128xbf16, #tpu.memory_space<vmem>>, vector<2x128xbf16>
    %c15 = arith.constant 15 : index
    %c0_154 = arith.constant 0 : index
    %c0_155 = arith.constant 0 : index
    %201 = vector.load %arg9[%c15, %c0_154, %c0_155] : memref<25x128x128xbf16, #tpu.memory_space<vmem>>, vector<1x128x128xbf16>
    %202 = vector.shape_cast %201 : vector<1x128x128xbf16> to vector<128x128xbf16>
    %cst_156 = arith.constant dense<0.000000e+00> : vector<2x128xf32>
    %203 = tpu.matmul %200, %202, %cst_156 {dimension_numbers = #tpu.dot_dimension_numbers<[1], [0], [0], [1], [0, 0, 1, 1], [], []>} : vector<2x128xbf16>, vector<128x128xbf16>, vector<2x128xf32> -> vector<2x128xf32>
    %204 = arith.addf %199, %203 : vector<2x128xf32>
    %c32 = arith.constant 32 : index
    %c0_157 = arith.constant 0 : index
    %205 = vector.load %arg16[%c32, %c0_157] : memref<50x128xbf16, #tpu.memory_space<vmem>>, vector<2x128xbf16>
    %c16_158 = arith.constant 16 : index
    %c0_159 = arith.constant 0 : index
    %c0_160 = arith.constant 0 : index
    %206 = vector.load %arg9[%c16_158, %c0_159, %c0_160] : memref<25x128x128xbf16, #tpu.memory_space<vmem>>, vector<1x128x128xbf16>
    %207 = vector.shape_cast %206 : vector<1x128x128xbf16> to vector<128x128xbf16>
    %cst_161 = arith.constant dense<0.000000e+00> : vector<2x128xf32>
    %208 = tpu.matmul %205, %207, %cst_161 {dimension_numbers = #tpu.dot_dimension_numbers<[1], [0], [0], [1], [0, 0, 1, 1], [], []>} : vector<2x128xbf16>, vector<128x128xbf16>, vector<2x128xf32> -> vector<2x128xf32>
    %209 = arith.addf %204, %208 : vector<2x128xf32>
    %c34 = arith.constant 34 : index
    %c0_162 = arith.constant 0 : index
    %210 = vector.load %arg16[%c34, %c0_162] : memref<50x128xbf16, #tpu.memory_space<vmem>>, vector<2x128xbf16>
    %c17 = arith.constant 17 : index
    %c0_163 = arith.constant 0 : index
    %c0_164 = arith.constant 0 : index
    %211 = vector.load %arg9[%c17, %c0_163, %c0_164] : memref<25x128x128xbf16, #tpu.memory_space<vmem>>, vector<1x128x128xbf16>
    %212 = vector.shape_cast %211 : vector<1x128x128xbf16> to vector<128x128xbf16>
    %cst_165 = arith.constant dense<0.000000e+00> : vector<2x128xf32>
    %213 = tpu.matmul %210, %212, %cst_165 {dimension_numbers = #tpu.dot_dimension_numbers<[1], [0], [0], [1], [0, 0, 1, 1], [], []>} : vector<2x128xbf16>, vector<128x128xbf16>, vector<2x128xf32> -> vector<2x128xf32>
    %214 = arith.addf %209, %213 : vector<2x128xf32>
    %c36 = arith.constant 36 : index
    %c0_166 = arith.constant 0 : index
    %215 = vector.load %arg16[%c36, %c0_166] : memref<50x128xbf16, #tpu.memory_space<vmem>>, vector<2x128xbf16>
    %c18_167 = arith.constant 18 : index
    %c0_168 = arith.constant 0 : index
    %c0_169 = arith.constant 0 : index
    %216 = vector.load %arg9[%c18_167, %c0_168, %c0_169] : memref<25x128x128xbf16, #tpu.memory_space<vmem>>, vector<1x128x128xbf16>
    %217 = vector.shape_cast %216 : vector<1x128x128xbf16> to vector<128x128xbf16>
    %cst_170 = arith.constant dense<0.000000e+00> : vector<2x128xf32>
    %218 = tpu.matmul %215, %217, %cst_170 {dimension_numbers = #tpu.dot_dimension_numbers<[1], [0], [0], [1], [0, 0, 1, 1], [], []>} : vector<2x128xbf16>, vector<128x128xbf16>, vector<2x128xf32> -> vector<2x128xf32>
    %219 = arith.addf %214, %218 : vector<2x128xf32>
    %c38 = arith.constant 38 : index
    %c0_171 = arith.constant 0 : index
    %220 = vector.load %arg16[%c38, %c0_171] : memref<50x128xbf16, #tpu.memory_space<vmem>>, vector<2x128xbf16>
    %c19 = arith.constant 19 : index
    %c0_172 = arith.constant 0 : index
    %c0_173 = arith.constant 0 : index
    %221 = vector.load %arg9[%c19, %c0_172, %c0_173] : memref<25x128x128xbf16, #tpu.memory_space<vmem>>, vector<1x128x128xbf16>
    %222 = vector.shape_cast %221 : vector<1x128x128xbf16> to vector<128x128xbf16>
    %cst_174 = arith.constant dense<0.000000e+00> : vector<2x128xf32>
    %223 = tpu.matmul %220, %222, %cst_174 {dimension_numbers = #tpu.dot_dimension_numbers<[1], [0], [0], [1], [0, 0, 1, 1], [], []>} : vector<2x128xbf16>, vector<128x128xbf16>, vector<2x128xf32> -> vector<2x128xf32>
    %224 = arith.addf %219, %223 : vector<2x128xf32>
    %c40 = arith.constant 40 : index
    %c0_175 = arith.constant 0 : index
    %225 = vector.load %arg16[%c40, %c0_175] : memref<50x128xbf16, #tpu.memory_space<vmem>>, vector<2x128xbf16>
    %c20_176 = arith.constant 20 : index
    %c0_177 = arith.constant 0 : index
    %c0_178 = arith.constant 0 : index
    %226 = vector.load %arg9[%c20_176, %c0_177, %c0_178] : memref<25x128x128xbf16, #tpu.memory_space<vmem>>, vector<1x128x128xbf16>
    %227 = vector.shape_cast %226 : vector<1x128x128xbf16> to vector<128x128xbf16>
    %cst_179 = arith.constant dense<0.000000e+00> : vector<2x128xf32>
    %228 = tpu.matmul %225, %227, %cst_179 {dimension_numbers = #tpu.dot_dimension_numbers<[1], [0], [0], [1], [0, 0, 1, 1], [], []>} : vector<2x128xbf16>, vector<128x128xbf16>, vector<2x128xf32> -> vector<2x128xf32>
    %229 = arith.addf %224, %228 : vector<2x128xf32>
    %c42 = arith.constant 42 : index
    %c0_180 = arith.constant 0 : index
    %230 = vector.load %arg16[%c42, %c0_180] : memref<50x128xbf16, #tpu.memory_space<vmem>>, vector<2x128xbf16>
    %c21 = arith.constant 21 : index
    %c0_181 = arith.constant 0 : index
    %c0_182 = arith.constant 0 : index
    %231 = vector.load %arg9[%c21, %c0_181, %c0_182] : memref<25x128x128xbf16, #tpu.memory_space<vmem>>, vector<1x128x128xbf16>
    %232 = vector.shape_cast %231 : vector<1x128x128xbf16> to vector<128x128xbf16>
    %cst_183 = arith.constant dense<0.000000e+00> : vector<2x128xf32>
    %233 = tpu.matmul %230, %232, %cst_183 {dimension_numbers = #tpu.dot_dimension_numbers<[1], [0], [0], [1], [0, 0, 1, 1], [], []>} : vector<2x128xbf16>, vector<128x128xbf16>, vector<2x128xf32> -> vector<2x128xf32>
    %234 = arith.addf %229, %233 : vector<2x128xf32>
    %c44 = arith.constant 44 : index
    %c0_184 = arith.constant 0 : index
    %235 = vector.load %arg16[%c44, %c0_184] : memref<50x128xbf16, #tpu.memory_space<vmem>>, vector<2x128xbf16>
    %c22_185 = arith.constant 22 : index
    %c0_186 = arith.constant 0 : index
    %c0_187 = arith.constant 0 : index
    %236 = vector.load %arg9[%c22_185, %c0_186, %c0_187] : memref<25x128x128xbf16, #tpu.memory_space<vmem>>, vector<1x128x128xbf16>
    %237 = vector.shape_cast %236 : vector<1x128x128xbf16> to vector<128x128xbf16>
    %cst_188 = arith.constant dense<0.000000e+00> : vector<2x128xf32>
    %238 = tpu.matmul %235, %237, %cst_188 {dimension_numbers = #tpu.dot_dimension_numbers<[1], [0], [0], [1], [0, 0, 1, 1], [], []>} : vector<2x128xbf16>, vector<128x128xbf16>, vector<2x128xf32> -> vector<2x128xf32>
    %239 = arith.addf %234, %238 : vector<2x128xf32>
    %c46 = arith.constant 46 : index
    %c0_189 = arith.constant 0 : index
    %240 = vector.load %arg16[%c46, %c0_189] : memref<50x128xbf16, #tpu.memory_space<vmem>>, vector<2x128xbf16>
    %c23 = arith.constant 23 : index
    %c0_190 = arith.constant 0 : index
    %c0_191 = arith.constant 0 : index
    %241 = vector.load %arg9[%c23, %c0_190, %c0_191] : memref<25x128x128xbf16, #tpu.memory_space<vmem>>, vector<1x128x128xbf16>
    %242 = vector.shape_cast %241 : vector<1x128x128xbf16> to vector<128x128xbf16>
    %cst_192 = arith.constant dense<0.000000e+00> : vector<2x128xf32>
    %243 = tpu.matmul %240, %242, %cst_192 {dimension_numbers = #tpu.dot_dimension_numbers<[1], [0], [0], [1], [0, 0, 1, 1], [], []>} : vector<2x128xbf16>, vector<128x128xbf16>, vector<2x128xf32> -> vector<2x128xf32>
    %244 = arith.addf %239, %243 : vector<2x128xf32>
    %c48 = arith.constant 48 : index
    %c0_193 = arith.constant 0 : index
    %245 = vector.load %arg16[%c48, %c0_193] : memref<50x128xbf16, #tpu.memory_space<vmem>>, vector<2x128xbf16>
    %c24_194 = arith.constant 24 : index
    %c0_195 = arith.constant 0 : index
    %c0_196 = arith.constant 0 : index
    %246 = vector.load %arg9[%c24_194, %c0_195, %c0_196] : memref<25x128x128xbf16, #tpu.memory_space<vmem>>, vector<1x128x128xbf16>
    %247 = vector.shape_cast %246 : vector<1x128x128xbf16> to vector<128x128xbf16>
    %cst_197 = arith.constant dense<0.000000e+00> : vector<2x128xf32>
    %248 = tpu.matmul %245, %247, %cst_197 {dimension_numbers = #tpu.dot_dimension_numbers<[1], [0], [0], [1], [0, 0, 1, 1], [], []>} : vector<2x128xbf16>, vector<128x128xbf16>, vector<2x128xf32> -> vector<2x128xf32>
    %249 = arith.addf %244, %248 : vector<2x128xf32>
    %cst_198 = arith.constant dense<0.000000e+00> : vector<128xf32>
    %250 = vector.multi_reduction <add>, %249, %cst_198 [0] : vector<2x128xf32> to vector<128xf32>
    %251 = vector.shape_cast %250 : vector<128xf32> to vector<1x128xf32>
    %cst_199 = arith.constant 5.000000e-01 : f32
    %252 = vector.broadcast %cst_199 : f32 to vector<1x128xf32>
    %253 = arith.mulf %251, %252 : vector<1x128xf32>
    %254 = vector.broadcast %253 : vector<1x128xf32> to vector<2x128xf32>
    %255 = arith.subf %249, %254 : vector<2x128xf32>
    %256 = arith.mulf %255, %255 : vector<2x128xf32>
    %cst_200 = arith.constant dense<0.000000e+00> : vector<128xf32>
    %257 = vector.multi_reduction <add>, %256, %cst_200 [0] : vector<2x128xf32> to vector<128xf32>
    %258 = vector.shape_cast %257 : vector<128xf32> to vector<1x128xf32>
    %cst_201 = arith.constant 5.000000e-01 : f32
    %259 = vector.broadcast %cst_201 : f32 to vector<1x128xf32>
    %260 = arith.mulf %258, %259 : vector<1x128xf32>
    %cst_202 = arith.constant 0.000000e+00 : f32
    %261 = vector.broadcast %cst_202 : f32 to vector<1x128xf32>
    %262 = arith.maximumf %260, %261 : vector<1x128xf32>
    %c0_203 = arith.constant 0 : index
    %c0_204 = arith.constant 0 : index
    %263 = vector.load %arg10[%c0_203, %c0_204] : memref<1x128xf32, #tpu.memory_space<vmem>>, vector<1x128xf32>
    %cst_205 = arith.constant 9.99999974E-6 : f32
    %264 = vector.broadcast %cst_205 : f32 to vector<1x128xf32>
    %265 = arith.addf %262, %264 : vector<1x128xf32>
    %266 = math.rsqrt %265 : vector<1x128xf32>
    %267 = arith.mulf %263, %266 : vector<1x128xf32>
    %c0_206 = arith.constant 0 : index
    %c0_207 = arith.constant 0 : index
    %268 = vector.load %arg11[%c0_206, %c0_207] : memref<1x128xf32, #tpu.memory_space<vmem>>, vector<1x128xf32>
    %269 = arith.mulf %253, %267 : vector<1x128xf32>
    %270 = arith.subf %268, %269 : vector<1x128xf32>
    %271 = vector.broadcast %267 : vector<1x128xf32> to vector<2x128xf32>
    %272 = arith.mulf %249, %271 : vector<2x128xf32>
    %273 = vector.broadcast %270 : vector<1x128xf32> to vector<2x128xf32>
    %274 = arith.addf %272, %273 : vector<2x128xf32>
    %cst_208 = arith.constant 2.000000e-01 : f32
    %275 = vector.broadcast %cst_208 : f32 to vector<2x128xf32>
    %276 = arith.mulf %275, %274 : vector<2x128xf32>
    %277 = arith.maximumf %274, %276 : vector<2x128xf32>
    %278 = arith.truncf %277 : vector<2x128xf32> to vector<2x128xbf16>
    %c0_209 = arith.constant 0 : index
    %c0_210 = arith.constant 0 : index
    %279 = vector.load %arg12[%c0_209, %c0_210] : memref<128x128xbf16, #tpu.memory_space<vmem>>, vector<128x128xbf16>
    %cst_211 = arith.constant dense<0.000000e+00> : vector<2x128xf32>
    %280 = tpu.matmul %278, %279, %cst_211 {dimension_numbers = #tpu.dot_dimension_numbers<[1], [0], [0], [1], [0, 0, 1, 1], [], []>} : vector<2x128xbf16>, vector<128x128xbf16>, vector<2x128xf32> -> vector<2x128xf32>
    %c0_212 = arith.constant 0 : index
    %c0_213 = arith.constant 0 : index
    %281 = vector.load %arg13[%c0_212, %c0_213] : memref<1x128xf32, #tpu.memory_space<vmem>>, vector<1x128xf32>
    %282 = vector.broadcast %281 : vector<1x128xf32> to vector<2x128xf32>
    %283 = arith.addf %280, %282 : vector<2x128xf32>
    %c0_214 = arith.constant 0 : index
    %c0_215 = arith.constant 0 : index
    %284 = vector.load %arg14[%c0_214, %c0_215] : memref<2x128xf32, #tpu.memory_space<vmem>>, vector<2x128xf32>
    tpu.vector_store %arg14[%c0_214, %c0_215], %283 {strides = array<i32>} : memref<2x128xf32, #tpu.memory_space<vmem>>, vector<2x128xf32>,
    return
  }
}

</mosaic_0001>

<llo_original>
// kernel: tile.13
$region0: #{tile.13}
  #allocation0 [shape = 's32[1]{0}', space=sflag, size = 0x4, scoped, tag = 'scoped memory for tile.13']
  %s0 = inlined_call_operand.vmem [shape: f32[16], index: 0, kind: input, shape index: {}]
  %s1 = inlined_call_operand.vmem [shape: f32[8,16], index: 1, kind: output, shape index: {}]
  // Predicated region
  $region2: #{tile.13} parent=0 // pred_check
    _
  $region3: #{tile.13} parent=0 // pred_check_branch
    %3 = sbr.rel (0) target = $region5
  $region4: #{tile.13} parent=0 // pred_region
    _
  $region5: #{tile.13} parent=0 // pred_fallthru
    _
  %v4 = vld [vmem:[%s0] ss:$0 sm:$0xff]
  %5 = vst [vmem:[%s1] sm:$0xff] %v4

// kernel: tile.14
$region0: #{tile.14}
  %s0 = inlined_call_operand.vmem [shape: f32[8,16], index: 0, kind: input, shape index: {}]
  %s1 = inlined_call_operand.vmem [shape: f32[1,128], index: 1, kind: output, shape index: {}]
  $region1: #{tile.14} parent=0
    #allocation0 [shape = 'u8[4096]{0}', space=vmem, size = 0x1000, scoped, tag = 'scoped mem for output reshape']
    %v2 = vld [vmem:[%s0] sm:$0x1]
    %vm3 = vcmask 130048
    %4 = vst.msk [vmem:[#allocation0] sm:$0x1] %vm3, %v2
    %s5 = scalar_lea.vmem %s0, 7
    %v6 = vld [vmem:[%s5] sm:$0x1]
    %7 = vrot.lane.b32.xlu0 %v6, 112
    %v8 = vpop.permute.xlu0 %7
    %vm9 = vcmask 1048448
    %10 = vst.msk [vmem:[#allocation0] sm:$0x1] %vm9, %v8
    %s11 = scalar_lea.vmem %s0, 6
    %v12 = vld [vmem:[%s11] sm:$0x1]
    %13 = vrot.lane.b32.xlu0 %v12, 96
    %v14 = vpop.permute.xlu0 %13
    %vm15 = vcmask 917248
    %16 = vst.msk [vmem:[#allocation0] sm:$0x1] %vm15, %v14
    %s17 = scalar_lea.vmem %s0, 5
    %v18 = vld [vmem:[%s17] sm:$0x1]
    %19 = vrot.lane.b32.xlu0 %v18, 80
    %v20 = vpop.permute.xlu0 %19
    %vm21 = vcmask 786048
    %22 = vst.msk [vmem:[#allocation0] sm:$0x1] %vm21, %v20
    %s23 = scalar_lea.vmem %s0, 4
    %v24 = vld [vmem:[%s23] sm:$0x1]
    %25 = vrot.lane.b32.xlu0 %v24, 64
    %v26 = vpop.permute.xlu0 %25
    %vm27 = vcmask 654848
    %28 = vst.msk [vmem:[#allocation0] sm:$0x1] %vm27, %v26
    %s29 = scalar_lea.vmem %s0, 3
    %v30 = vld [vmem:[%s29] sm:$0x1]
    %31 = vrot.lane.b32.xlu0 %v30, 48
    %v32 = vpop.permute.xlu0 %31
    %vm33 = vcmask 523648
    %34 = vst.msk [vmem:[#allocation0] sm:$0x1] %vm33, %v32
    %s35 = scalar_lea.vmem %s0, 2
    %v36 = vld [vmem:[%s35] sm:$0x1]
    %37 = vrot.lane.b32.xlu0 %v36, 32
    %v38 = vpop.permute.xlu0 %37
    %vm39 = vcmask 392448
    %40 = vst.msk [vmem:[#allocation0] sm:$0x1] %vm39, %v38
    %s41 = scalar_lea.vmem %s0, 1
    %v42 = vld [vmem:[%s41] sm:$0x1]
    %43 = vrot.lane.b32.xlu0 %v42, 16
    %v44 = vpop.permute.xlu0 %43
    %vm45 = vcmask 261248
    %46 = vst.msk [vmem:[#allocation0] sm:$0x1] %vm45, %v44
    %s48 = ssub.s32 2, 1
    %v49 = vld [vmem:[#allocation0] sm:%s48]
    %s51 = ssub.s32 2, 1
    %52 = vst [vmem:[%s1] sm:%s51] %v49

// kernel: discriminator_forward.1
$region0: #{discriminator_forward.1}
  #allocation0 [shape = 'u32[]', space=smem, size = 0x4, offset = 0x4, fixed_abs, tag = 'smem constant byte address 0x4 - core index']
  #allocation1 [shape = 'u32[72,128]{1,0:T(1,128)}', space=vmem, size = 0x9000, scoped, tag = 'internal scratch']
  #allocation2 [shape = 'f32[50,128]{1,0:T(8,128)}', space=vmem, size = 0x7000, scoped, tag = 'scratch operand']
  #allocation3 [shape = 'bf16[50,128]{1,0:T(8,128)(2,1)}', space=vmem, size = 0x3800, scoped, tag = 'scratch operand']
  %s0 = inlined_call_operand.vmem [shape: bf16[48,128], index: 0, kind: input, shape index: {}]
  %s1 = inlined_call_operand.vmem [shape: bf16[4,50,128], index: 1, kind: input, shape index: {}]
  %s2 = inlined_call_operand.vmem [shape: f32[128,128], index: 2, kind: input, shape index: {}]
  %s3 = inlined_call_operand.vmem [shape: bf16[128,128], index: 3, kind: input, shape index: {}]
  %s4 = inlined_call_operand.vmem [shape: f32[1,128], index: 4, kind: input, shape index: {}]
  %s5 = inlined_call_operand.vmem [shape: f32[1,128], index: 5, kind: input, shape index: {}]
  %s6 = inlined_call_operand.vmem [shape: bf16[4,128,128], index: 6, kind: input, shape index: {}]
  %s7 = inlined_call_operand.vmem [shape: f32[1,128], index: 7, kind: input, shape index: {}]
  %s8 = inlined_call_operand.vmem [shape: f32[1,128], index: 8, kind: input, shape index: {}]
  %s9 = inlined_call_operand.vmem [shape: bf16[25,128,128], index: 9, kind: input, shape index: {}]
  %s10 = inlined_call_operand.vmem [shape: f32[1,128], index: 10, kind: input, shape index: {}]
  %s11 = inlined_call_operand.vmem [shape: f32[1,128], index: 11, kind: input, shape index: {}]
  %s12 = inlined_call_operand.vmem [shape: bf16[128,128], index: 12, kind: input, shape index: {}]
  %s13 = inlined_call_operand.vmem [shape: f32[1,128], index: 13, kind: input, shape index: {}]
  %s14 = inlined_call_operand.vmem [shape: f32[2,128], index: 14, kind: output, shape index: {}]
  %s15 = sld [smem:[#allocation0]]
  $region66: #{discriminator_forward.1} parent=0
    _
  %s17 = ssub.s32 1, %s15
  %s18 = scalar_select 0, %s17, %s15
  // Predicated region
  $region2: #{discriminator_forward.1} parent=0 // pred_check
    _
  $region3: #{discriminator_forward.1} parent=0 // pred_check_branch
    %20 = sbr.rel (0) target = $region5
  $region4: #{discriminator_forward.1} parent=0 // pred_region
    _
  $region5: #{discriminator_forward.1} parent=0 // pred_fallthru
    _
  // Predicated region
  $region6: #{discriminator_forward.1} parent=0 // pred_check
    _
  $region7: #{discriminator_forward.1} parent=0 // pred_check_branch
    %22 = sbr.rel (0) target = $region9
  $region8: #{discriminator_forward.1} parent=0 // pred_region
    _
  $region9: #{discriminator_forward.1} parent=0 // pred_fallthru
    _
  // Predicated region
  $region10: #{discriminator_forward.1} parent=0 // pred_check
    _
  $region11: #{discriminator_forward.1} parent=0 // pred_check_branch
    %24 = sbr.rel (0) target = $region13
  $region12: #{discriminator_forward.1} parent=0 // pred_region
    _
  $region13: #{discriminator_forward.1} parent=0 // pred_fallthru
    _
  // Predicated region
  $region14: #{discriminator_forward.1} parent=0 // pred_check
    _
  $region15: #{discriminator_forward.1} parent=0 // pred_check_branch
    %26 = sbr.rel (0) target = $region17
  $region16: #{discriminator_forward.1} parent=0 // pred_region
    _
  $region17: #{discriminator_forward.1} parent=0 // pred_fallthru
    _
  // Predicated region
  $region18: #{discriminator_forward.1} parent=0 // pred_check
    _
  $region19: #{discriminator_forward.1} parent=0 // pred_check_branch
    %28 = sbr.rel (0) target = $region21
  $region20: #{discriminator_forward.1} parent=0 // pred_region
    _
  $region21: #{discriminator_forward.1} parent=0 // pred_fallthru
    _
  // Predicated region
  $region22: #{discriminator_forward.1} parent=0 // pred_check
    _
  $region23: #{discriminator_forward.1} parent=0 // pred_check_branch
    %30 = sbr.rel (0) target = $region25
  $region24: #{discriminator_forward.1} parent=0 // pred_region
    _
  $region25: #{discriminator_forward.1} parent=0 // pred_fallthru
    _
  // Predicated region
  $region26: #{discriminator_forward.1} parent=0 // pred_check
    _
  $region27: #{discriminator_forward.1} parent=0 // pred_check_branch
    %32 = sbr.rel (0) target = $region29
  $region28: #{discriminator_forward.1} parent=0 // pred_region
    _
  $region29: #{discriminator_forward.1} parent=0 // pred_fallthru
    _
  // Predicated region
  $region30: #{discriminator_forward.1} parent=0 // pred_check
    _
  $region31: #{discriminator_forward.1} parent=0 // pred_check_branch
    %34 = sbr.rel (0) target = $region33
  $region32: #{discriminator_forward.1} parent=0 // pred_region
    _
  $region33: #{discriminator_forward.1} parent=0 // pred_fallthru
    _
  // Predicated region
  $region34: #{discriminator_forward.1} parent=0 // pred_check
    _
  $region35: #{discriminator_forward.1} parent=0 // pred_check_branch
    %36 = sbr.rel (0) target = $region37
  $region36: #{discriminator_forward.1} parent=0 // pred_region
    _
  $region37: #{discriminator_forward.1} parent=0 // pred_fallthru
    _
  // Predicated region
  $region38: #{discriminator_forward.1} parent=0 // pred_check
    _
  $region39: #{discriminator_forward.1} parent=0 // pred_check_branch
    %38 = sbr.rel (0) target = $region41
  $region40: #{discriminator_forward.1} parent=0 // pred_region
    _
  $region41: #{discriminator_forward.1} parent=0 // pred_fallthru
    _
  // Predicated region
  $region42: #{discriminator_forward.1} parent=0 // pred_check
    _
  $region43: #{discriminator_forward.1} parent=0 // pred_check_branch
    %40 = sbr.rel (0) target = $region45
  $region44: #{discriminator_forward.1} parent=0 // pred_region
    _
  $region45: #{discriminator_forward.1} parent=0 // pred_fallthru
    _
  // Predicated region
  $region46: #{discriminator_forward.1} parent=0 // pred_check
    _
  $region47: #{discriminator_forward.1} parent=0 // pred_check_branch
    %42 = sbr.rel (0) target = $region49
  $region48: #{discriminator_forward.1} parent=0 // pred_region
    _
  $region49: #{discriminator_forward.1} parent=0 // pred_fallthru
    _
  // Predicated region
  $region50: #{discriminator_forward.1} parent=0 // pred_check
    _
  $region51: #{discriminator_forward.1} parent=0 // pred_check_branch
    %44 = sbr.rel (0) target = $region53
  $region52: #{discriminator_forward.1} parent=0 // pred_region
    _
  $region53: #{discriminator_forward.1} parent=0 // pred_fallthru
    _
  // Predicated region
  $region54: #{discriminator_forward.1} parent=0 // pred_check
    _
  $region55: #{discriminator_forward.1} parent=0 // pred_check_branch
    %46 = sbr.rel (0) target = $region57
  $region56: #{discriminator_forward.1} parent=0 // pred_region
    _
  $region57: #{discriminator_forward.1} parent=0 // pred_fallthru
    _
  %v47 = vld [vmem:[%s3] sm:$0xf]
  %v48 = vld [vmem:[%s3 + $0x4] sm:$0xf]
  %v49 = vld [vmem:[%s3 + $0x8] sm:$0xf]
  %v50 = vld [vmem:[%s3 + $0xc] sm:$0xf]
  %v51 = vld [vmem:[%s3 + $0x10] sm:$0xf]
  %v52 = vld [vmem:[%s3 + $0x14] sm:$0xf]
  %v53 = vld [vmem:[%s3 + $0x18] sm:$0xf]
  %v54 = vld [vmem:[%s3 + $0x1c] sm:$0xf]
  %v55 = vld [vmem:[%s3 + $0x20] sm:$0xf]
  %v56 = vld [vmem:[%s3 + $0x24] sm:$0xf]
  %v57 = vld [vmem:[%s3 + $0x28] sm:$0xf]
  %v58 = vld [vmem:[%s3 + $0x2c] sm:$0xf]
  %v59 = vld [vmem:[%s3 + $0x30] sm:$0xf]
  %v60 = vld [vmem:[%s3 + $0x34] sm:$0xf]
  %v61 = vld [vmem:[%s3 + $0x38] sm:$0xf]
  %v62 = vld [vmem:[%s3 + $0x3c] sm:$0xf]
  %v63 = vld [vmem:[%s2] sm:$0xff]
  %v64 = vld [vmem:[%s2 + $0x8] sm:$0xff]
  %v65 = vld [vmem:[%s2 + $0x10] sm:$0xff]
  %v66 = vld [vmem:[%s2 + $0x18] sm:$0xff]
  %v67 = vld [vmem:[%s2 + $0x20] sm:$0xff]
  %v68 = vld [vmem:[%s2 + $0x28] sm:$0xff]
  %v69 = vld [vmem:[%s2 + $0x30] sm:$0xff]
  %v70 = vld [vmem:[%s2 + $0x38] sm:$0xff]
  %v71 = vld [vmem:[%s2 + $0x40] sm:$0xff]
  %v72 = vld [vmem:[%s2 + $0x48] sm:$0xff]
  %v73 = vld [vmem:[%s2 + $0x50] sm:$0xff]
  %v74 = vld [vmem:[%s2 + $0x58] sm:$0xff]
  %v75 = vld [vmem:[%s2 + $0x60] sm:$0xff]
  %v76 = vld [vmem:[%s2 + $0x68] sm:$0xff]
  %v77 = vld [vmem:[%s2 + $0x70] sm:$0xff]
  %v78 = vld [vmem:[%s2 + $0x78] sm:$0xff]
  %v79 = vld [vmem:[%s0] sm:$0xf]
  %v80 = vld [vmem:[%s0 + $0x4] sm:$0xf]
  %v81 = vld [vmem:[%s0 + $0x8] sm:$0xf]
  %v82 = vld [vmem:[%s0 + $0xc] sm:$0xf]
  %v83 = vld [vmem:[%s0 + $0x10] sm:$0xf]
  %v84 = vld [vmem:[%s0 + $0x14] sm:$0xf]
  %v91 = vunpack.c.l.b16 %v79
  %v92 = vunpack.c.l.b16 %v80
  %v93 = vunpack.c.l.b16 %v81
  %v94 = vunpack.c.l.b16 %v82
  %v95 = vunpack.c.l.b16 %v83
  %v96 = vunpack.c.l.b16 %v84
  %v97 = vpack.c.b16 %v92, %v91
  %v98 = vpack.c.b16 %v94, %v93
  %v99 = vpack.c.b16 %v96, %v95
  %v119 = vunpack.c.l.b16 %v47
  %v120 = vunpack.c.l.b16 %v48
  %v121 = vunpack.c.l.b16 %v49
  %v122 = vunpack.c.l.b16 %v50
  %v123 = vunpack.c.l.b16 %v51
  %v124 = vunpack.c.l.b16 %v52
  %v125 = vunpack.c.l.b16 %v53
  %v126 = vunpack.c.l.b16 %v54
  %v127 = vunpack.c.l.b16 %v55
  %v128 = vunpack.c.l.b16 %v56
  %v129 = vunpack.c.l.b16 %v57
  %v130 = vunpack.c.l.b16 %v58
  %v131 = vunpack.c.l.b16 %v59
  %v132 = vunpack.c.l.b16 %v60
  %v133 = vunpack.c.l.b16 %v61
  %v134 = vunpack.c.l.b16 %v62
  %v135 = vpack.c.b16 %v120, %v119
  %v136 = vpack.c.b16 %v122, %v121
  %v137 = vpack.c.b16 %v124, %v123
  %v138 = vpack.c.b16 %v126, %v125
  %v139 = vpack.c.b16 %v128, %v127
  %v140 = vpack.c.b16 %v130, %v129
  %v141 = vpack.c.b16 %v132, %v131
  %v142 = vpack.c.b16 %v134, %v133
  %151 = vmatpush.bf16.msra.mxu0 %v142
  %152 = vmatpush.bf16.msra.mxu0 %v141
  %153 = vmatpush.bf16.msra.mxu0 %v140
  %154 = vmatpush.bf16.msra.mxu0 %v139
  %155 = vmatpush.bf16.msra.mxu0 %v138
  %156 = vmatpush.bf16.msra.mxu0 %v137
  %157 = vmatpush.bf16.msra.mxu0 %v136
  %158 = vmatpush.bf16.msra.mxu0 %v135
  %159 = vmatmul.bf16.gmra.mxu0 %v97
  %v160 = vpop.f32.mrf.mxu0
  %v161 = vadd.f32 0.0, %v160
  %v162 = vpop.f32.mrf.mxu0
  %v163 = vadd.f32 0.0, %v162
  %164 = vmatmul.bf16.gmra.mxu0 %v98
  %v165 = vpop.f32.mrf.mxu0
  %v166 = vadd.f32 0.0, %v165
  %v167 = vpop.f32.mrf.mxu0
  %v168 = vadd.f32 0.0, %v167
  %169 = vmatmul.bf16.gmra.mxu0 %v99
  %v170 = vpop.f32.mrf.mxu0
  %v171 = vadd.f32 0.0, %v170
  %v172 = vpop.f32.mrf.mxu0
  %v173 = vadd.f32 0.0, %v172
  %174 = vdwg.mxu0
  %v175 = vadd.f32 %v161, %v163
  %v176 = vadd.f32 %v175, %v166
  %v177 = vadd.f32 %v176, %v168
  %v178 = vadd.f32 %v177, %v171
  %v179 = vadd.f32 %v178, %v173
  %v180 = vrot.slane %v179, 4
  %v181 = vadd.f32 %v179, %v180
  %v182 = vrot.slane %v181, 2
  %v183 = vadd.f32 %v181, %v182
  %v184 = vrot.slane %v183, 1
  %v185 = vadd.f32 %v183, %v184
  %186 = vmatpush.msra.mxu0 %v78
  %187 = vmatpush.msra.mxu0 %v77
  %188 = vmatpush.msra.mxu0 %v76
  %189 = vmatpush.msra.mxu0 %v75
  %190 = vmatpush.msra.mxu0 %v74
  %191 = vmatpush.msra.mxu0 %v73
  %192 = vmatpush.msra.mxu0 %v72
  %193 = vmatpush.msra.mxu0 %v71
  %194 = vmatpush.msra.mxu0 %v70
  %195 = vmatpush.msra.mxu0 %v69
  %196 = vmatpush.msra.mxu0 %v68
  %197 = vmatpush.msra.mxu0 %v67
  %198 = vmatpush.msra.mxu0 %v66
  %199 = vmatpush.msra.mxu0 %v65
  %200 = vmatpush.msra.mxu0 %v64
  %201 = vmatpush.msra.mxu0 %v63
  %202 = vmatmul.f32.gmra.mxu0 %v185
  %v203 = vpop.f32.mrf.mxu0
  %v204 = vadd.f32 0.0, %v203
  %205 = vdwg.mxu0
  %v206 = vmul.f32 %v204, 0.00295858
  %v207 = vperm.slane %v206, 0
  %v208 = vsub.f32 %v161, %v207
  %v209 = vsub.f32 %v163, %v207
  %v210 = vsub.f32 %v166, %v207
  %v211 = vsub.f32 %v168, %v207
  %v212 = vsub.f32 %v171, %v207
  %v213 = vsub.f32 %v173, %v207
  %v214 = vmul.f32 %v208, %v208
  %v215 = vmul.f32 %v209, %v209
  %v216 = vmul.f32 %v210, %v210
  %v217 = vmul.f32 %v211, %v211
  %v218 = vmul.f32 %v212, %v212
  %v219 = vmul.f32 %v213, %v213
  %v220 = vadd.f32 %v214, %v215
  %v221 = vadd.f32 %v220, %v216
  %v222 = vadd.f32 %v221, %v217
  %v223 = vadd.f32 %v222, %v218
  %v224 = vadd.f32 %v223, %v219
  %v225 = vrot.slane %v224, 4
  %v226 = vadd.f32 %v224, %v225
  %v227 = vrot.slane %v226, 2
  %v228 = vadd.f32 %v226, %v227
  %v229 = vrot.slane %v228, 1
  %v230 = vadd.f32 %v228, %v229
  %231 = vmatpush.msra.mxu0 %v78
  %232 = vmatpush.msra.mxu0 %v77
  %233 = vmatpush.msra.mxu0 %v76
  %234 = vmatpush.msra.mxu0 %v75
  %235 = vmatpush.msra.mxu0 %v74
  %236 = vmatpush.msra.mxu0 %v73
  %237 = vmatpush.msra.mxu0 %v72
  %238 = vmatpush.msra.mxu0 %v71
  %239 = vmatpush.msra.mxu0 %v70
  %240 = vmatpush.msra.mxu0 %v69
  %241 = vmatpush.msra.mxu0 %v68
  %242 = vmatpush.msra.mxu0 %v67
  %243 = vmatpush.msra.mxu0 %v66
  %244 = vmatpush.msra.mxu0 %v65
  %245 = vmatpush.msra.mxu0 %v64
  %246 = vmatpush.msra.mxu0 %v63
  %247 = vmatmul.f32.gmra.mxu0 %v230
  %v248 = vpop.f32.mrf.mxu0
  %v249 = vadd.f32 0.0, %v248
  %250 = vdwg.mxu0
  %v251 = vmul.f32 %v206, 46.0
  %v252 = vmul.f32 %v251, %v206
  %v253 = vsub.f32 %v249, %v252
  %v254 = vmul.f32 %v253, 0.00295858
  %v255 = vmax.f32 %v254, 0.0
  %v256 = vld [vmem:[%s4] sm:$0x1]
  %v257 = vadd.f32 %v255, 1e-05
  %v258 = vrsqrt.pop %v257
  %v259 = vmul.f32 %v258, %v257
  %v260 = vmul.f32 %v259, %v258
  %v261 = vmul.f32 0.5, %v260
  %v262 = vsub.f32 1.5, %v261
  %v263 = vmul.f32 %v258, %v262
  %vm264 = vweird.f32 %v257
  %vm265 = vweird.f32 %v258
  %vm266 = vmor %vm264, %vm265
  %v267 = vsel %vm266, %v258, %v263
  %v268 = vmul.f32 %v256, %v267
  %v269 = vld [vmem:[%s5] sm:$0x1]
  %v270 = vmul.f32 %v206, %v268
  %v271 = vsub.f32 %v269, %v270
  %v272 = vunpack.c.l.bf16 %v47
  %v273 = vunpack.c.l.bf16 %v48
  %v274 = vunpack.c.l.bf16 %v49
  %v275 = vunpack.c.l.bf16 %v50
  %v276 = vunpack.c.l.bf16 %v51
  %v277 = vunpack.c.l.bf16 %v52
  %v278 = vunpack.c.l.bf16 %v53
  %v279 = vunpack.c.l.bf16 %v54
  %v280 = vunpack.c.l.bf16 %v55
  %v281 = vunpack.c.l.bf16 %v56
  %v282 = vunpack.c.l.bf16 %v57
  %v283 = vunpack.c.l.bf16 %v58
  %v284 = vunpack.c.l.bf16 %v59
  %v285 = vunpack.c.l.bf16 %v60
  %v286 = vunpack.c.l.bf16 %v61
  %v287 = vunpack.c.l.bf16 %v62
  %v289 = vperm.slane %v268, 0
  %v291 = vmul.f32 %v272, %v289
  %v292 = vmul.f32 %v273, %v289
  %v293 = vmul.f32 %v274, %v289
  %v294 = vmul.f32 %v275, %v289
  %v295 = vmul.f32 %v276, %v289
  %v296 = vmul.f32 %v277, %v289
  %v297 = vmul.f32 %v278, %v289
  %v298 = vmul.f32 %v279, %v289
  %v299 = vmul.f32 %v280, %v289
  %v300 = vmul.f32 %v281, %v289
  %v301 = vmul.f32 %v282, %v289
  %v302 = vmul.f32 %v283, %v289
  %v303 = vmul.f32 %v284, %v289
  %v304 = vmul.f32 %v285, %v289
  %v305 = vmul.f32 %v286, %v289
  %v306 = vmul.f32 %v287, %v289
  %v307 = vpack.c.bf16 %v292, %v291
  %v308 = vpack.c.bf16 %v294, %v293
  %v309 = vpack.c.bf16 %v296, %v295
  %v310 = vpack.c.bf16 %v298, %v297
  %v311 = vpack.c.bf16 %v300, %v299
  %v312 = vpack.c.bf16 %v302, %v301
  %v313 = vpack.c.bf16 %v304, %v303
  %v314 = vpack.c.bf16 %v306, %v305
  %v315 = vld [vmem:[%s1] sm:$0xf]
  %v316 = vld [vmem:[%s1 + $0x4] sm:$0xf]
  %v317 = vld [vmem:[%s1 + $0x8] sm:$0xf]
  %v318 = vld [vmem:[%s1 + $0xc] sm:$0xf]
  %v319 = vld [vmem:[%s1 + $0x10] sm:$0xf]
  %v320 = vld [vmem:[%s1 + $0x14] sm:$0xf]
  %v321 = vld [vmem:[%s1 + $0x18] sm:$0x1]
  %v323 = vperm.slane %v271, 0
  %v332 = vunpack.c.l.b16 %v315
  %v333 = vunpack.c.l.b16 %v316
  %v334 = vunpack.c.l.b16 %v317
  %v335 = vunpack.c.l.b16 %v318
  %v336 = vunpack.c.l.b16 %v319
  %v337 = vunpack.c.l.b16 %v320
  %v338 = vunpack.c.l.b16 %v321
  %v339 = vpack.c.b16 %v333, %v332
  %v340 = vpack.c.b16 %v335, %v334
  %v341 = vpack.c.b16 %v337, %v336
  %v342 = vpack.c.b16 %v338, %v338
  %347 = vmatpush.bf16.msra.mxu0 %v314
  %348 = vmatpush.bf16.msra.mxu0 %v313
  %349 = vmatpush.bf16.msra.mxu0 %v312
  %350 = vmatpush.bf16.msra.mxu0 %v311
  %351 = vmatpush.bf16.msra.mxu0 %v310
  %352 = vmatpush.bf16.msra.mxu0 %v309
  %353 = vmatpush.bf16.msra.mxu0 %v308
  %354 = vmatpush.bf16.msra.mxu0 %v307
  %355 = vmatmul.bf16.gmra.mxu0 %v339
  %v356 = vpop.f32.mrf.mxu0
  %v357 = vadd.f32 %v323, %v356
  %v358 = vpop.f32.mrf.mxu0
  %v359 = vadd.f32 %v323, %v358
  %360 = vmatmul.bf16.gmra.mxu0 %v340
  %v361 = vpop.f32.mrf.mxu0
  %v362 = vadd.f32 %v323, %v361
  %v363 = vpop.f32.mrf.mxu0
  %v364 = vadd.f32 %v323, %v363
  %365 = vmatmul.bf16.gmra.mxu0 %v341
  %v366 = vpop.f32.mrf.mxu0
  %v367 = vadd.f32 %v323, %v366
  %v368 = vpop.f32.mrf.mxu0
  %v369 = vadd.f32 %v323, %v368
  %370 = vmatmul.bf16.gmra.mxu0 %v342
  %v371 = vpop.f32.mrf.mxu0
  %v372 = vadd.f32 %v323, %v371
  %v373 = vpop.f32.mrf.mxu0
  %374 = vdwg.mxu0
  %v375 = vmul.f32 %v357, 0.2
  %v376 = vmul.f32 %v359, 0.2
  %v377 = vmul.f32 %v362, 0.2
  %v378 = vmul.f32 %v364, 0.2
  %v379 = vmul.f32 %v367, 0.2
  %v380 = vmul.f32 %v369, 0.2
  %v381 = vmul.f32 %v372, 0.2
  %v382 = vmax.f32 %v357, %v375
  %v383 = vmax.f32 %v359, %v376
  %v384 = vmax.f32 %v362, %v377
  %v385 = vmax.f32 %v364, %v378
  %v386 = vmax.f32 %v367, %v379
  %v387 = vmax.f32 %v369, %v380
  %v388 = vmax.f32 %v372, %v381
  %v389 = vpack.c.bf16 %v383, %v382
  %v390 = vpack.c.bf16 %v385, %v384
  %v391 = vpack.c.bf16 %v387, %v386
  %v392 = vpack.c.bf16 %v388, %v388
  %v393 = vld [vmem:[%s6] sm:$0xf]
  %v394 = vld [vmem:[%s6 + $0x4] sm:$0xf]
  %v395 = vld [vmem:[%s6 + $0x8] sm:$0xf]
  %v396 = vld [vmem:[%s6 + $0xc] sm:$0xf]
  %v397 = vld [vmem:[%s6 + $0x10] sm:$0xf]
  %v398 = vld [vmem:[%s6 + $0x14] sm:$0xf]
  %v399 = vld [vmem:[%s6 + $0x18] sm:$0xf]
  %v400 = vld [vmem:[%s6 + $0x1c] sm:$0xf]
  %v401 = vld [vmem:[%s6 + $0x20] sm:$0xf]
  %v402 = vld [vmem:[%s6 + $0x24] sm:$0xf]
  %v403 = vld [vmem:[%s6 + $0x28] sm:$0xf]
  %v404 = vld [vmem:[%s6 + $0x2c] sm:$0xf]
  %v405 = vld [vmem:[%s6 + $0x30] sm:$0xf]
  %v406 = vld [vmem:[%s6 + $0x34] sm:$0xf]
  %v407 = vld [vmem:[%s6 + $0x38] sm:$0xf]
  %v408 = vld [vmem:[%s6 + $0x3c] sm:$0xf]
  %v425 = vunpack.c.l.b16 %v393
  %v426 = vunpack.c.l.b16 %v394
  %v427 = vunpack.c.l.b16 %v395
  %v428 = vunpack.c.l.b16 %v396
  %v429 = vunpack.c.l.b16 %v397
  %v430 = vunpack.c.l.b16 %v398
  %v431 = vunpack.c.l.b16 %v399
  %v432 = vunpack.c.l.b16 %v400
  %v433 = vunpack.c.l.b16 %v401
  %v434 = vunpack.c.l.b16 %v402
  %v435 = vunpack.c.l.b16 %v403
  %v436 = vunpack.c.l.b16 %v404
  %v437 = vunpack.c.l.b16 %v405
  %v438 = vunpack.c.l.b16 %v406
  %v439 = vunpack.c.l.b16 %v407
  %v440 = vunpack.c.l.b16 %v408
  %v441 = vpack.c.b16 %v426, %v425
  %v442 = vpack.c.b16 %v428, %v427
  %v443 = vpack.c.b16 %v430, %v429
  %v444 = vpack.c.b16 %v432, %v431
  %v445 = vpack.c.b16 %v434, %v433
  %v446 = vpack.c.b16 %v436, %v435
  %v447 = vpack.c.b16 %v438, %v437
  %v448 = vpack.c.b16 %v440, %v439
  %457 = vmatpush.bf16.msra.mxu0 %v448
  %458 = vmatpush.bf16.msra.mxu0 %v447
  %459 = vmatpush.bf16.msra.mxu0 %v446
  %460 = vmatpush.bf16.msra.mxu0 %v445
  %461 = vmatpush.bf16.msra.mxu0 %v444
  %462 = vmatpush.bf16.msra.mxu0 %v443
  %463 = vmatpush.bf16.msra.mxu0 %v442
  %464 = vmatpush.bf16.msra.mxu0 %v441
  %465 = vmatmul.bf16.gmra.mxu0 %v389
  %v466 = vpop.f32.mrf.mxu0
  %v467 = vadd.f32 0.0, %v466
  %v468 = vpop.f32.mrf.mxu0
  %v469 = vadd.f32 0.0, %v468
  %470 = vmatmul.bf16.gmra.mxu0 %v390
  %v471 = vpop.f32.mrf.mxu0
  %v472 = vadd.f32 0.0, %v471
  %v473 = vpop.f32.mrf.mxu0
  %v474 = vadd.f32 0.0, %v473
  %475 = vmatmul.bf16.gmra.mxu0 %v391
  %v476 = vpop.f32.mrf.mxu0
  %v477 = vadd.f32 0.0, %v476
  %v478 = vpop.f32.mrf.mxu0
  %v479 = vadd.f32 0.0, %v478
  %480 = vmatmul.bf16.gmra.mxu0 %v392
  %v481 = vpop.f32.mrf.mxu0
  %v482 = vadd.f32 0.0, %v481
  %v483 = vpop.f32.mrf.mxu0
  %484 = vdwg.mxu0
  %485 = vst [vmem:[#allocation2] sm:$0xff] %v467
  %486 = vst [vmem:[#allocation2 + $0x8] sm:$0xff] %v469
  %487 = vst [vmem:[#allocation2 + $0x10] sm:$0xff] %v472
  %488 = vst [vmem:[#allocation2 + $0x18] sm:$0xff] %v474
  %489 = vst [vmem:[#allocation2 + $0x20] sm:$0xff] %v477
  %490 = vst [vmem:[#allocation2 + $0x28] sm:$0xff] %v479
  %491 = vst [vmem:[#allocation2 + $0x30] sm:$0x3] %v482
  %s492 = scalar_lea.vmem %s1, 28
  %v493 = vld [vmem:[%s492] sm:$0xf]
  %v494 = vld [vmem:[%s492 + $0x4] sm:$0xf]
  %v495 = vld [vmem:[%s492 + $0x8] sm:$0xf]
  %v496 = vld [vmem:[%s492 + $0xc] sm:$0xf]
  %v497 = vld [vmem:[%s492 + $0x10] sm:$0xf]
  %v498 = vld [vmem:[%s492 + $0x14] sm:$0xf]
  %v499 = vld [vmem:[%s492 + $0x18] sm:$0x1]
  %v507 = vunpack.c.l.b16 %v493
  %v508 = vunpack.c.l.b16 %v494
  %v509 = vunpack.c.l.b16 %v495
  %v510 = vunpack.c.l.b16 %v496
  %v511 = vunpack.c.l.b16 %v497
  %v512 = vunpack.c.l.b16 %v498
  %v513 = vunpack.c.l.b16 %v499
  %v514 = vpack.c.b16 %v508, %v507
  %v515 = vpack.c.b16 %v510, %v509
  %v516 = vpack.c.b16 %v512, %v511
  %v517 = vpack.c.b16 %v513, %v513
  %522 = vmatpush.bf16.msra.mxu0 %v314
  %523 = vmatpush.bf16.msra.mxu0 %v313
  %524 = vmatpush.bf16.msra.mxu0 %v312
  %525 = vmatpush.bf16.msra.mxu0 %v311
  %526 = vmatpush.bf16.msra.mxu0 %v310
  %527 = vmatpush.bf16.msra.mxu0 %v309
  %528 = vmatpush.bf16.msra.mxu0 %v308
  %529 = vmatpush.bf16.msra.mxu0 %v307
  %530 = vmatmul.bf16.gmra.mxu0 %v514
  %v531 = vpop.f32.mrf.mxu0
  %v532 = vadd.f32 %v323, %v531
  %v533 = vpop.f32.mrf.mxu0
  %v534 = vadd.f32 %v323, %v533
  %535 = vmatmul.bf16.gmra.mxu0 %v515
  %v536 = vpop.f32.mrf.mxu0
  %v537 = vadd.f32 %v323, %v536
  %v538 = vpop.f32.mrf.mxu0
  %v539 = vadd.f32 %v323, %v538
  %540 = vmatmul.bf16.gmra.mxu0 %v516
  %v541 = vpop.f32.mrf.mxu0
  %v542 = vadd.f32 %v323, %v541
  %v543 = vpop.f32.mrf.mxu0
  %v544 = vadd.f32 %v323, %v543
  %545 = vmatmul.bf16.gmra.mxu0 %v517
  %v546 = vpop.f32.mrf.mxu0
  %v547 = vadd.f32 %v323, %v546
  %v548 = vpop.f32.mrf.mxu0
  %549 = vdwg.mxu0
  %v550 = vmul.f32 %v532, 0.2
  %v551 = vmul.f32 %v534, 0.2
  %v552 = vmul.f32 %v537, 0.2
  %v553 = vmul.f32 %v539, 0.2
  %v554 = vmul.f32 %v542, 0.2
  %v555 = vmul.f32 %v544, 0.2
  %v556 = vmul.f32 %v547, 0.2
  %v557 = vmax.f32 %v532, %v550
  %v558 = vmax.f32 %v534, %v551
  %v559 = vmax.f32 %v537, %v552
  %v560 = vmax.f32 %v539, %v553
  %v561 = vmax.f32 %v542, %v554
  %v562 = vmax.f32 %v544, %v555
  %v563 = vmax.f32 %v547, %v556
  %v564 = vpack.c.bf16 %v558, %v557
  %v565 = vpack.c.bf16 %v560, %v559
  %v566 = vpack.c.bf16 %v562, %v561
  %v567 = vpack.c.bf16 %v563, %v563
  %s568 = scalar_lea.vmem %s6, 64
  %v569 = vld [vmem:[%s568] sm:$0xf]
  %v570 = vld [vmem:[%s568 + $0x4] sm:$0xf]
  %v571 = vld [vmem:[%s568 + $0x8] sm:$0xf]
  %v572 = vld [vmem:[%s568 + $0xc] sm:$0xf]
  %v573 = vld [vmem:[%s568 + $0x10] sm:$0xf]
  %v574 = vld [vmem:[%s568 + $0x14] sm:$0xf]
  %v575 = vld [vmem:[%s568 + $0x18] sm:$0xf]
  %v576 = vld [vmem:[%s568 + $0x1c] sm:$0xf]
  %v577 = vld [vmem:[%s568 + $0x20] sm:$0xf]
  %v578 = vld [vmem:[%s568 + $0x24] sm:$0xf]
  %v579 = vld [vmem:[%s568 + $0x28] sm:$0xf]
  %v580 = vld [vmem:[%s568 + $0x2c] sm:$0xf]
  %v581 = vld [vmem:[%s568 + $0x30] sm:$0xf]
  %v582 = vld [vmem:[%s568 + $0x34] sm:$0xf]
  %v583 = vld [vmem:[%s568 + $0x38] sm:$0xf]
  %v584 = vld [vmem:[%s568 + $0x3c] sm:$0xf]
  %v601 = vunpack.c.l.b16 %v569
  %v602 = vunpack.c.l.b16 %v570
  %v603 = vunpack.c.l.b16 %v571
  %v604 = vunpack.c.l.b16 %v572
  %v605 = vunpack.c.l.b16 %v573
  %v606 = vunpack.c.l.b16 %v574
  %v607 = vunpack.c.l.b16 %v575
  %v608 = vunpack.c.l.b16 %v576
  %v609 = vunpack.c.l.b16 %v577
  %v610 = vunpack.c.l.b16 %v578
  %v611 = vunpack.c.l.b16 %v579
  %v612 = vunpack.c.l.b16 %v580
  %v613 = vunpack.c.l.b16 %v581
  %v614 = vunpack.c.l.b16 %v582
  %v615 = vunpack.c.l.b16 %v583
  %v616 = vunpack.c.l.b16 %v584
  %v617 = vpack.c.b16 %v602, %v601
  %v618 = vpack.c.b16 %v604, %v603
  %v619 = vpack.c.b16 %v606, %v605
  %v620 = vpack.c.b16 %v608, %v607
  %v621 = vpack.c.b16 %v610, %v609
  %v622 = vpack.c.b16 %v612, %v611
  %v623 = vpack.c.b16 %v614, %v613
  %v624 = vpack.c.b16 %v616, %v615
  %633 = vmatpush.bf16.msra.mxu0 %v624
  %634 = vmatpush.bf16.msra.mxu0 %v623
  %635 = vmatpush.bf16.msra.mxu0 %v622
  %636 = vmatpush.bf16.msra.mxu0 %v621
  %637 = vmatpush.bf16.msra.mxu0 %v620
  %638 = vmatpush.bf16.msra.mxu0 %v619
  %639 = vmatpush.bf16.msra.mxu0 %v618
  %640 = vmatpush.bf16.msra.mxu0 %v617
  %641 = vmatmul.bf16.gmra.mxu0 %v564
  %v642 = vpop.f32.mrf.mxu0
  %v643 = vadd.f32 0.0, %v642
  %v644 = vpop.f32.mrf.mxu0
  %v645 = vadd.f32 0.0, %v644
  %646 = vmatmul.bf16.gmra.mxu0 %v565
  %v647 = vpop.f32.mrf.mxu0
  %v648 = vadd.f32 0.0, %v647
  %v649 = vpop.f32.mrf.mxu0
  %v650 = vadd.f32 0.0, %v649
  %651 = vmatmul.bf16.gmra.mxu0 %v566
  %v652 = vpop.f32.mrf.mxu0
  %v653 = vadd.f32 0.0, %v652
  %v654 = vpop.f32.mrf.mxu0
  %v655 = vadd.f32 0.0, %v654
  %656 = vmatmul.bf16.gmra.mxu0 %v567
  %v657 = vpop.f32.mrf.mxu0
  %v658 = vadd.f32 0.0, %v657
  %v659 = vpop.f32.mrf.mxu0
  %660 = vdwg.mxu0
  %v661 = vld [vmem:[#allocation2] sm:$0xff]
  %v662 = vld [vmem:[#allocation2 + $0x8] sm:$0xff]
  %v663 = vld [vmem:[#allocation2 + $0x10] sm:$0xff]
  %v664 = vld [vmem:[#allocation2 + $0x18] sm:$0xff]
  %v665 = vld [vmem:[#allocation2 + $0x20] sm:$0xff]
  %v666 = vld [vmem:[#allocation2 + $0x28] sm:$0xff]
  %v667 = vld [vmem:[#allocation2 + $0x30] sm:$0x3]
  %v668 = vadd.f32 %v661, %v643
  %v669 = vadd.f32 %v662, %v645
  %v670 = vadd.f32 %v663, %v648
  %v671 = vadd.f32 %v664, %v650
  %v672 = vadd.f32 %v665, %v653
  %v673 = vadd.f32 %v666, %v655
  %v674 = vadd.f32 %v667, %v658
  %675 = vst [vmem:[#allocation2] sm:$0xff] %v668
  %676 = vst [vmem:[#allocation2 + $0x8] sm:$0xff] %v669
  %677 = vst [vmem:[#allocation2 + $0x10] sm:$0xff] %v670
  %678 = vst [vmem:[#allocation2 + $0x18] sm:$0xff] %v671
  %679 = vst [vmem:[#allocation2 + $0x20] sm:$0xff] %v672
  %680 = vst [vmem:[#allocation2 + $0x28] sm:$0xff] %v673
  %681 = vst [vmem:[#allocation2 + $0x30] sm:$0x3] %v674
  %s682 = scalar_lea.vmem %s1, 56
  %v683 = vld [vmem:[%s682] sm:$0xf]
  %v684 = vld [vmem:[%s682 + $0x4] sm:$0xf]
  %v685 = vld [vmem:[%s682 + $0x8] sm:$0xf]
  %v686 = vld [vmem:[%s682 + $0xc] sm:$0xf]
  %v687 = vld [vmem:[%s682 + $0x10] sm:$0xf]
  %v688 = vld [vmem:[%s682 + $0x14] sm:$0xf]
  %v689 = vld [vmem:[%s682 + $0x18] sm:$0x1]
  %v697 = vunpack.c.l.b16 %v683
  %v698 = vunpack.c.l.b16 %v684
  %v699 = vunpack.c.l.b16 %v685
  %v700 = vunpack.c.l.b16 %v686
  %v701 = vunpack.c.l.b16 %v687
  %v702 = vunpack.c.l.b16 %v688
  %v703 = vunpack.c.l.b16 %v689
  %v704 = vpack.c.b16 %v698, %v697
  %v705 = vpack.c.b16 %v700, %v699
  %v706 = vpack.c.b16 %v702, %v701
  %v707 = vpack.c.b16 %v703, %v703
  %712 = vmatpush.bf16.msra.mxu0 %v314
  %713 = vmatpush.bf16.msra.mxu0 %v313
  %714 = vmatpush.bf16.msra.mxu0 %v312
  %715 = vmatpush.bf16.msra.mxu0 %v311
  %716 = vmatpush.bf16.msra.mxu0 %v310
  %717 = vmatpush.bf16.msra.mxu0 %v309
  %718 = vmatpush.bf16.msra.mxu0 %v308
  %719 = vmatpush.bf16.msra.mxu0 %v307
  %720 = vmatmul.bf16.gmra.mxu0 %v704
  %v721 = vpop.f32.mrf.mxu0
  %v722 = vadd.f32 %v323, %v721
  %v723 = vpop.f32.mrf.mxu0
  %v724 = vadd.f32 %v323, %v723
  %725 = vmatmul.bf16.gmra.mxu0 %v705
  %v726 = vpop.f32.mrf.mxu0
  %v727 = vadd.f32 %v323, %v726
  %v728 = vpop.f32.mrf.mxu0
  %v729 = vadd.f32 %v323, %v728
  %730 = vmatmul.bf16.gmra.mxu0 %v706
  %v731 = vpop.f32.mrf.mxu0
  %v732 = vadd.f32 %v323, %v731
  %v733 = vpop.f32.mrf.mxu0
  %v734 = vadd.f32 %v323, %v733
  %735 = vmatmul.bf16.gmra.mxu0 %v707
  %v736 = vpop.f32.mrf.mxu0
  %v737 = vadd.f32 %v323, %v736
  %v738 = vpop.f32.mrf.mxu0
  %739 = vdwg.mxu0
  %v740 = vmul.f32 %v722, 0.2
  %v741 = vmul.f32 %v724, 0.2
  %v742 = vmul.f32 %v727, 0.2
  %v743 = vmul.f32 %v729, 0.2
  %v744 = vmul.f32 %v732, 0.2
  %v745 = vmul.f32 %v734, 0.2
  %v746 = vmul.f32 %v737, 0.2
  %v747 = vmax.f32 %v722, %v740
  %v748 = vmax.f32 %v724, %v741
  %v749 = vmax.f32 %v727, %v742
  %v750 = vmax.f32 %v729, %v743
  %v751 = vmax.f32 %v732, %v744
  %v752 = vmax.f32 %v734, %v745
  %v753 = vmax.f32 %v737, %v746
  %v754 = vpack.c.bf16 %v748, %v747
  %v755 = vpack.c.bf16 %v750, %v749
  %v756 = vpack.c.bf16 %v752, %v751
  %v757 = vpack.c.bf16 %v753, %v753
  %s758 = scalar_lea.vmem %s6, 128
  %v759 = vld [vmem:[%s758] sm:$0xf]
  %v760 = vld [vmem:[%s758 + $0x4] sm:$0xf]
  %v761 = vld [vmem:[%s758 + $0x8] sm:$0xf]
  %v762 = vld [vmem:[%s758 + $0xc] sm:$0xf]
  %v763 = vld [vmem:[%s758 + $0x10] sm:$0xf]
  %v764 = vld [vmem:[%s758 + $0x14] sm:$0xf]
  %v765 = vld [vmem:[%s758 + $0x18] sm:$0xf]
  %v766 = vld [vmem:[%s758 + $0x1c] sm:$0xf]
  %v767 = vld [vmem:[%s758 + $0x20] sm:$0xf]
  %v768 = vld [vmem:[%s758 + $0x24] sm:$0xf]
  %v769 = vld [vmem:[%s758 + $0x28] sm:$0xf]
  %v770 = vld [vmem:[%s758 + $0x2c] sm:$0xf]
  %v771 = vld [vmem:[%s758 + $0x30] sm:$0xf]
  %v772 = vld [vmem:[%s758 + $0x34] sm:$0xf]
  %v773 = vld [vmem:[%s758 + $0x38] sm:$0xf]
  %v774 = vld [vmem:[%s758 + $0x3c] sm:$0xf]
  %v791 = vunpack.c.l.b16 %v759
  %v792 = vunpack.c.l.b16 %v760
  %v793 = vunpack.c.l.b16 %v761
  %v794 = vunpack.c.l.b16 %v762
  %v795 = vunpack.c.l.b16 %v763
  %v796 = vunpack.c.l.b16 %v764
  %v797 = vunpack.c.l.b16 %v765
  %v798 = vunpack.c.l.b16 %v766
  %v799 = vunpack.c.l.b16 %v767
  %v800 = vunpack.c.l.b16 %v768
  %v801 = vunpack.c.l.b16 %v769
  %v802 = vunpack.c.l.b16 %v770
  %v803 = vunpack.c.l.b16 %v771
  %v804 = vunpack.c.l.b16 %v772
  %v805 = vunpack.c.l.b16 %v773
  %v806 = vunpack.c.l.b16 %v774
  %v807 = vpack.c.b16 %v792, %v791
  %v808 = vpack.c.b16 %v794, %v793
  %v809 = vpack.c.b16 %v796, %v795
  %v810 = vpack.c.b16 %v798, %v797
  %v811 = vpack.c.b16 %v800, %v799
  %v812 = vpack.c.b16 %v802, %v801
  %v813 = vpack.c.b16 %v804, %v803
  %v814 = vpack.c.b16 %v806, %v805
  %823 = vmatpush.bf16.msra.mxu0 %v814
  %824 = vmatpush.bf16.msra.mxu0 %v813
  %825 = vmatpush.bf16.msra.mxu0 %v812
  %826 = vmatpush.bf16.msra.mxu0 %v811
  %827 = vmatpush.bf16.msra.mxu0 %v810
  %828 = vmatpush.bf16.msra.mxu0 %v809
  %829 = vmatpush.bf16.msra.mxu0 %v808
  %830 = vmatpush.bf16.msra.mxu0 %v807
  %831 = vmatmul.bf16.gmra.mxu0 %v754
  %v832 = vpop.f32.mrf.mxu0
  %v833 = vadd.f32 0.0, %v832
  %v834 = vpop.f32.mrf.mxu0
  %v835 = vadd.f32 0.0, %v834
  %836 = vmatmul.bf16.gmra.mxu0 %v755
  %v837 = vpop.f32.mrf.mxu0
  %v838 = vadd.f32 0.0, %v837
  %v839 = vpop.f32.mrf.mxu0
  %v840 = vadd.f32 0.0, %v839
  %841 = vmatmul.bf16.gmra.mxu0 %v756
  %v842 = vpop.f32.mrf.mxu0
  %v843 = vadd.f32 0.0, %v842
  %v844 = vpop.f32.mrf.mxu0
  %v845 = vadd.f32 0.0, %v844
  %846 = vmatmul.bf16.gmra.mxu0 %v757
  %v847 = vpop.f32.mrf.mxu0
  %v848 = vadd.f32 0.0, %v847
  %v849 = vpop.f32.mrf.mxu0
  %850 = vdwg.mxu0
  %v851 = vld [vmem:[#allocation2] sm:$0xff]
  %v852 = vld [vmem:[#allocation2 + $0x8] sm:$0xff]
  %v853 = vld [vmem:[#allocation2 + $0x10] sm:$0xff]
  %v854 = vld [vmem:[#allocation2 + $0x18] sm:$0xff]
  %v855 = vld [vmem:[#allocation2 + $0x20] sm:$0xff]
  %v856 = vld [vmem:[#allocation2 + $0x28] sm:$0xff]
  %v857 = vld [vmem:[#allocation2 + $0x30] sm:$0x3]
  %v858 = vadd.f32 %v851, %v833
  %v859 = vadd.f32 %v852, %v835
  %v860 = vadd.f32 %v853, %v838
  %v861 = vadd.f32 %v854, %v840
  %v862 = vadd.f32 %v855, %v843
  %v863 = vadd.f32 %v856, %v845
  %v864 = vadd.f32 %v857, %v848
  %865 = vst [vmem:[#allocation2] sm:$0xff] %v858
  %866 = vst [vmem:[#allocation2 + $0x8] sm:$0xff] %v859
  %867 = vst [vmem:[#allocation2 + $0x10] sm:$0xff] %v860
  %868 = vst [vmem:[#allocation2 + $0x18] sm:$0xff] %v861
  %869 = vst [vmem:[#allocation2 + $0x20] sm:$0xff] %v862
  %870 = vst [vmem:[#allocation2 + $0x28] sm:$0xff] %v863
  %871 = vst [vmem:[#allocation2 + $0x30] sm:$0x3] %v864
  %s872 = scalar_lea.vmem %s1, 84
  %v873 = vld [vmem:[%s872] sm:$0xf]
  %v874 = vld [vmem:[%s872 + $0x4] sm:$0xf]
  %v875 = vld [vmem:[%s872 + $0x8] sm:$0xf]
  %v876 = vld [vmem:[%s872 + $0xc] sm:$0xf]
  %v877 = vld [vmem:[%s872 + $0x10] sm:$0xf]
  %v878 = vld [vmem:[%s872 + $0x14] sm:$0xf]
  %v879 = vld [vmem:[%s872 + $0x18] sm:$0x1]
  %v887 = vunpack.c.l.b16 %v873
  %v888 = vunpack.c.l.b16 %v874
  %v889 = vunpack.c.l.b16 %v875
  %v890 = vunpack.c.l.b16 %v876
  %v891 = vunpack.c.l.b16 %v877
  %v892 = vunpack.c.l.b16 %v878
  %v893 = vunpack.c.l.b16 %v879
  %v894 = vpack.c.b16 %v888, %v887
  %v895 = vpack.c.b16 %v890, %v889
  %v896 = vpack.c.b16 %v892, %v891
  %v897 = vpack.c.b16 %v893, %v893
  %902 = vmatpush.bf16.msra.mxu0 %v314
  %903 = vmatpush.bf16.msra.mxu0 %v313
  %904 = vmatpush.bf16.msra.mxu0 %v312
  %905 = vmatpush.bf16.msra.mxu0 %v311
  %906 = vmatpush.bf16.msra.mxu0 %v310
  %907 = vmatpush.bf16.msra.mxu0 %v309
  %908 = vmatpush.bf16.msra.mxu0 %v308
  %909 = vmatpush.bf16.msra.mxu0 %v307
  %910 = vmatmul.bf16.gmra.mxu0 %v894
  %v911 = vpop.f32.mrf.mxu0
  %v912 = vadd.f32 %v323, %v911
  %v913 = vpop.f32.mrf.mxu0
  %v914 = vadd.f32 %v323, %v913
  %915 = vmatmul.bf16.gmra.mxu0 %v895
  %v916 = vpop.f32.mrf.mxu0
  %v917 = vadd.f32 %v323, %v916
  %v918 = vpop.f32.mrf.mxu0
  %v919 = vadd.f32 %v323, %v918
  %920 = vmatmul.bf16.gmra.mxu0 %v896
  %v921 = vpop.f32.mrf.mxu0
  %v922 = vadd.f32 %v323, %v921
  %v923 = vpop.f32.mrf.mxu0
  %v924 = vadd.f32 %v323, %v923
  %925 = vmatmul.bf16.gmra.mxu0 %v897
  %v926 = vpop.f32.mrf.mxu0
  %v927 = vadd.f32 %v323, %v926
  %v928 = vpop.f32.mrf.mxu0
  %929 = vdwg.mxu0
  %v930 = vmul.f32 %v912, 0.2
  %v931 = vmul.f32 %v914, 0.2
  %v932 = vmul.f32 %v917, 0.2
  %v933 = vmul.f32 %v919, 0.2
  %v934 = vmul.f32 %v922, 0.2
  %v935 = vmul.f32 %v924, 0.2
  %v936 = vmul.f32 %v927, 0.2
  %v937 = vmax.f32 %v912, %v930
  %v938 = vmax.f32 %v914, %v931
  %v939 = vmax.f32 %v917, %v932
  %v940 = vmax.f32 %v919, %v933
  %v941 = vmax.f32 %v922, %v934
  %v942 = vmax.f32 %v924, %v935
  %v943 = vmax.f32 %v927, %v936
  %v944 = vpack.c.bf16 %v938, %v937
  %v945 = vpack.c.bf16 %v940, %v939
  %v946 = vpack.c.bf16 %v942, %v941
  %v947 = vpack.c.bf16 %v943, %v943
  %s948 = scalar_lea.vmem %s6, 192
  %v949 = vld [vmem:[%s948] sm:$0xf]
  %v950 = vld [vmem:[%s948 + $0x4] sm:$0xf]
  %v951 = vld [vmem:[%s948 + $0x8] sm:$0xf]
  %v952 = vld [vmem:[%s948 + $0xc] sm:$0xf]
  %v953 = vld [vmem:[%s948 + $0x10] sm:$0xf]
  %v954 = vld [vmem:[%s948 + $0x14] sm:$0xf]
  %v955 = vld [vmem:[%s948 + $0x18] sm:$0xf]
  %v956 = vld [vmem:[%s948 + $0x1c] sm:$0xf]
  %v957 = vld [vmem:[%s948 + $0x20] sm:$0xf]
  %v958 = vld [vmem:[%s948 + $0x24] sm:$0xf]
  %v959 = vld [vmem:[%s948 + $0x28] sm:$0xf]
  %v960 = vld [vmem:[%s948 + $0x2c] sm:$0xf]
  %v961 = vld [vmem:[%s948 + $0x30] sm:$0xf]
  %v962 = vld [vmem:[%s948 + $0x34] sm:$0xf]
  %v963 = vld [vmem:[%s948 + $0x38] sm:$0xf]
  %v964 = vld [vmem:[%s948 + $0x3c] sm:$0xf]
  %v981 = vunpack.c.l.b16 %v949
  %v982 = vunpack.c.l.b16 %v950
  %v983 = vunpack.c.l.b16 %v951
  %v984 = vunpack.c.l.b16 %v952
  %v985 = vunpack.c.l.b16 %v953
  %v986 = vunpack.c.l.b16 %v954
  %v987 = vunpack.c.l.b16 %v955
  %v988 = vunpack.c.l.b16 %v956
  %v989 = vunpack.c.l.b16 %v957
  %v990 = vunpack.c.l.b16 %v958
  %v991 = vunpack.c.l.b16 %v959
  %v992 = vunpack.c.l.b16 %v960
  %v993 = vunpack.c.l.b16 %v961
  %v994 = vunpack.c.l.b16 %v962
  %v995 = vunpack.c.l.b16 %v963
  %v996 = vunpack.c.l.b16 %v964
  %v997 = vpack.c.b16 %v982, %v981
  %v998 = vpack.c.b16 %v984, %v983
  %v999 = vpack.c.b16 %v986, %v985
  %v1000 = vpack.c.b16 %v988, %v987
  %v1001 = vpack.c.b16 %v990, %v989
  %v1002 = vpack.c.b16 %v992, %v991
  %v1003 = vpack.c.b16 %v994, %v993
  %v1004 = vpack.c.b16 %v996, %v995
  %1013 = vmatpush.bf16.msra.mxu0 %v1004
  %1014 = vmatpush.bf16.msra.mxu0 %v1003
  %1015 = vmatpush.bf16.msra.mxu0 %v1002
  %1016 = vmatpush.bf16.msra.mxu0 %v1001
  %1017 = vmatpush.bf16.msra.mxu0 %v1000
  %1018 = vmatpush.bf16.msra.mxu0 %v999
  %1019 = vmatpush.bf16.msra.mxu0 %v998
  %1020 = vmatpush.bf16.msra.mxu0 %v997
  %1021 = vmatmul.bf16.gmra.mxu0 %v944
  %v1022 = vpop.f32.mrf.mxu0
  %v1023 = vadd.f32 0.0, %v1022
  %v1024 = vpop.f32.mrf.mxu0
  %v1025 = vadd.f32 0.0, %v1024
  %1026 = vmatmul.bf16.gmra.mxu0 %v945
  %v1027 = vpop.f32.mrf.mxu0
  %v1028 = vadd.f32 0.0, %v1027
  %v1029 = vpop.f32.mrf.mxu0
  %v1030 = vadd.f32 0.0, %v1029
  %1031 = vmatmul.bf16.gmra.mxu0 %v946
  %v1032 = vpop.f32.mrf.mxu0
  %v1033 = vadd.f32 0.0, %v1032
  %v1034 = vpop.f32.mrf.mxu0
  %v1035 = vadd.f32 0.0, %v1034
  %1036 = vmatmul.bf16.gmra.mxu0 %v947
  %v1037 = vpop.f32.mrf.mxu0
  %v1038 = vadd.f32 0.0, %v1037
  %v1039 = vpop.f32.mrf.mxu0
  %1040 = vdwg.mxu0
  %v1041 = vld [vmem:[#allocation2] sm:$0xff]
  %v1042 = vld [vmem:[#allocation2 + $0x8] sm:$0xff]
  %v1043 = vld [vmem:[#allocation2 + $0x10] sm:$0xff]
  %v1044 = vld [vmem:[#allocation2 + $0x18] sm:$0xff]
  %v1045 = vld [vmem:[#allocation2 + $0x20] sm:$0xff]
  %v1046 = vld [vmem:[#allocation2 + $0x28] sm:$0xff]
  %v1047 = vld [vmem:[#allocation2 + $0x30] sm:$0x3]
  %v1048 = vadd.f32 %v1041, %v1023
  %v1049 = vadd.f32 %v1042, %v1025
  %v1050 = vadd.f32 %v1043, %v1028
  %v1051 = vadd.f32 %v1044, %v1030
  %v1052 = vadd.f32 %v1045, %v1033
  %v1053 = vadd.f32 %v1046, %v1035
  %v1054 = vadd.f32 %v1047, %v1038
  %1055 = vst [vmem:[#allocation2] sm:$0xff] %v1048
  %1056 = vst [vmem:[#allocation2 + $0x8] sm:$0xff] %v1049
  %1057 = vst [vmem:[#allocation2 + $0x10] sm:$0xff] %v1050
  %1058 = vst [vmem:[#allocation2 + $0x18] sm:$0xff] %v1051
  %1059 = vst [vmem:[#allocation2 + $0x20] sm:$0xff] %v1052
  %1060 = vst [vmem:[#allocation2 + $0x28] sm:$0xff] %v1053
  %1061 = vst [vmem:[#allocation2 + $0x30] sm:$0x3] %v1054
  %v1062 = vld [vmem:[#allocation2] sm:$0xff]
  %v1063 = vld [vmem:[#allocation2 + $0x8] sm:$0xff]
  %v1064 = vld [vmem:[#allocation2 + $0x10] sm:$0xff]
  %v1065 = vld [vmem:[#allocation2 + $0x18] sm:$0xff]
  %v1066 = vld [vmem:[#allocation2 + $0x20] sm:$0xff]
  %v1067 = vld [vmem:[#allocation2 + $0x28] sm:$0xff]
  %v1068 = vld [vmem:[#allocation2 + $0x30] sm:$0x3]
  %v1069 = vadd.f32 %v1062, %v1063
  %v1070 = vadd.f32 %v1069, %v1064
  %v1071 = vadd.f32 %v1070, %v1065
  %v1072 = vadd.f32 %v1071, %v1066
  %v1073 = vadd.f32 %v1072, %v1067
  %vm1074 = vcmask 1041408
  %v1075 = vsel %vm1074, %v1068, 0.0
  %v1076 = vadd.f32 %v1073, %v1075
  %v1077 = vrot.slane %v1076, 4
  %v1078 = vadd.f32 %v1076, %v1077
  %v1079 = vrot.slane %v1078, 2
  %v1080 = vadd.f32 %v1078, %v1079
  %v1081 = vrot.slane %v1080, 1
  %v1082 = vadd.f32 %v1080, %v1081
  %v1083 = vmul.f32 %v1082, 0.02
  %v1084 = vsub.f32 %v1062, %v1083
  %v1085 = vsub.f32 %v1063, %v1083
  %v1086 = vsub.f32 %v1064, %v1083
  %v1087 = vsub.f32 %v1065, %v1083
  %v1088 = vsub.f32 %v1066, %v1083
  %v1089 = vsub.f32 %v1067, %v1083
  %v1090 = vsub.f32 %v1068, %v1083
  %v1091 = vmul.f32 %v1084, %v1084
  %v1092 = vmul.f32 %v1085, %v1085
  %v1093 = vmul.f32 %v1086, %v1086
  %v1094 = vmul.f32 %v1087, %v1087
  %v1095 = vmul.f32 %v1088, %v1088
  %v1096 = vmul.f32 %v1089, %v1089
  %v1097 = vmul.f32 %v1090, %v1090
  %v1098 = vadd.f32 %v1091, %v1092
  %v1099 = vadd.f32 %v1098, %v1093
  %v1100 = vadd.f32 %v1099, %v1094
  %v1101 = vadd.f32 %v1100, %v1095
  %v1102 = vadd.f32 %v1101, %v1096
  %v1103 = vsel %vm1074, %v1097, 0.0
  %v1104 = vadd.f32 %v1102, %v1103
  %v1105 = vrot.slane %v1104, 4
  %v1106 = vadd.f32 %v1104, %v1105
  %v1107 = vrot.slane %v1106, 2
  %v1108 = vadd.f32 %v1106, %v1107
  %v1109 = vrot.slane %v1108, 1
  %v1110 = vadd.f32 %v1108, %v1109
  %v1111 = vmul.f32 %v1110, 0.02
  %v1112 = vmax.f32 %v1111, 0.0
  %v1113 = vld [vmem:[%s7] sm:$0x1]
  %v1114 = vadd.f32 %v1112, 1e-05
  %v1115 = vrsqrt.pop %v1114
  %v1116 = vmul.f32 %v1115, %v1114
  %v1117 = vmul.f32 %v1116, %v1115
  %v1118 = vmul.f32 0.5, %v1117
  %v1119 = vsub.f32 1.5, %v1118
  %v1120 = vmul.f32 %v1115, %v1119
  %vm1121 = vweird.f32 %v1114
  %vm1122 = vweird.f32 %v1115
  %vm1123 = vmor %vm1121, %vm1122
  %v1124 = vsel %vm1123, %v1115, %v1120
  %v1125 = vmul.f32 %v1113, %v1124
  %v1126 = vld [vmem:[%s8] sm:$0x1]
  %v1127 = vmul.f32 %v1083, %v1125
  %v1128 = vsub.f32 %v1126, %v1127
  %v1130 = vperm.slane %v1125, 0
  %v1132 = vmul.f32 %v1062, %v1130
  %v1133 = vmul.f32 %v1063, %v1130
  %v1134 = vmul.f32 %v1064, %v1130
  %v1135 = vmul.f32 %v1065, %v1130
  %v1136 = vmul.f32 %v1066, %v1130
  %v1137 = vmul.f32 %v1067, %v1130
  %v1138 = vmul.f32 %v1068, %v1130
  %v1140 = vperm.slane %v1128, 0
  %v1142 = vadd.f32 %v1132, %v1140
  %v1143 = vadd.f32 %v1133, %v1140
  %v1144 = vadd.f32 %v1134, %v1140
  %v1145 = vadd.f32 %v1135, %v1140
  %v1146 = vadd.f32 %v1136, %v1140
  %v1147 = vadd.f32 %v1137, %v1140
  %v1148 = vadd.f32 %v1138, %v1140
  %v1149 = vmul.f32 %v1142, 0.2
  %v1150 = vmul.f32 %v1143, 0.2
  %v1151 = vmul.f32 %v1144, 0.2
  %v1152 = vmul.f32 %v1145, 0.2
  %v1153 = vmul.f32 %v1146, 0.2
  %v1154 = vmul.f32 %v1147, 0.2
  %v1155 = vmul.f32 %v1148, 0.2
  %v1156 = vmax.f32 %v1142, %v1149
  %v1157 = vmax.f32 %v1143, %v1150
  %v1158 = vmax.f32 %v1144, %v1151
  %v1159 = vmax.f32 %v1145, %v1152
  %v1160 = vmax.f32 %v1146, %v1153
  %v1161 = vmax.f32 %v1147, %v1154
  %v1162 = vmax.f32 %v1148, %v1155
  %v1163 = vpack.c.bf16 %v1156, %v1156
  %v1164 = vpack.c.bf16 %v1157, %v1157
  %v1165 = vpack.c.bf16 %v1158, %v1158
  %v1166 = vpack.c.bf16 %v1159, %v1159
  %v1167 = vpack.c.bf16 %v1160, %v1160
  %v1168 = vpack.c.bf16 %v1161, %v1161
  %v1169 = vpack.c.bf16 %v1162, %v1162
  %1170 = vst [vmem:[#allocation3] sm:$0xf] %v1163
  %1171 = vst [vmem:[#allocation3 + $0x4] sm:$0xf] %v1164
  %1172 = vst [vmem:[#allocation3 + $0x8] sm:$0xf] %v1165
  %1173 = vst [vmem:[#allocation3 + $0xc] sm:$0xf] %v1166
  %1174 = vst [vmem:[#allocation3 + $0x10] sm:$0xf] %v1167
  %1175 = vst [vmem:[#allocation3 + $0x14] sm:$0xf] %v1168
  %1176 = vst [vmem:[#allocation3 + $0x18] sm:$0x1] %v1169
  %v1177 = vld [vmem:[#allocation3] sm:$0x1]
  %v1178 = vld [vmem:[%s9] sm:$0xf]
  %v1179 = vld [vmem:[%s9 + $0x4] sm:$0xf]
  %v1180 = vld [vmem:[%s9 + $0x8] sm:$0xf]
  %v1181 = vld [vmem:[%s9 + $0xc] sm:$0xf]
  %v1182 = vld [vmem:[%s9 + $0x10] sm:$0xf]
  %v1183 = vld [vmem:[%s9 + $0x14] sm:$0xf]
  %v1184 = vld [vmem:[%s9 + $0x18] sm:$0xf]
  %v1185 = vld [vmem:[%s9 + $0x1c] sm:$0xf]
  %v1186 = vld [vmem:[%s9 + $0x20] sm:$0xf]
  %v1187 = vld [vmem:[%s9 + $0x24] sm:$0xf]
  %v1188 = vld [vmem:[%s9 + $0x28] sm:$0xf]
  %v1189 = vld [vmem:[%s9 + $0x2c] sm:$0xf]
  %v1190 = vld [vmem:[%s9 + $0x30] sm:$0xf]
  %v1191 = vld [vmem:[%s9 + $0x34] sm:$0xf]
  %v1192 = vld [vmem:[%s9 + $0x38] sm:$0xf]
  %v1193 = vld [vmem:[%s9 + $0x3c] sm:$0xf]
  %v1194 = vld [vmem:[#allocation3] sm:$0x2]
  %s1195 = scalar_lea.vmem %s9, 64
  %v1196 = vld [vmem:[%s1195] sm:$0xf]
  %v1197 = vld [vmem:[%s1195 + $0x4] sm:$0xf]
  %v1198 = vld [vmem:[%s1195 + $0x8] sm:$0xf]
  %v1199 = vld [vmem:[%s1195 + $0xc] sm:$0xf]
  %v1200 = vld [vmem:[%s1195 + $0x10] sm:$0xf]
  %v1201 = vld [vmem:[%s1195 + $0x14] sm:$0xf]
  %v1202 = vld [vmem:[%s1195 + $0x18] sm:$0xf]
  %v1203 = vld [vmem:[%s1195 + $0x1c] sm:$0xf]
  %v1204 = vld [vmem:[%s1195 + $0x20] sm:$0xf]
  %v1205 = vld [vmem:[%s1195 + $0x24] sm:$0xf]
  %v1206 = vld [vmem:[%s1195 + $0x28] sm:$0xf]
  %v1207 = vld [vmem:[%s1195 + $0x2c] sm:$0xf]
  %v1208 = vld [vmem:[%s1195 + $0x30] sm:$0xf]
  %v1209 = vld [vmem:[%s1195 + $0x34] sm:$0xf]
  %v1210 = vld [vmem:[%s1195 + $0x38] sm:$0xf]
  %v1211 = vld [vmem:[%s1195 + $0x3c] sm:$0xf]
  %v1213 = vunpack.c.l.b16 %v1194
  %v1214 = vpack.c.b16 %v1213, %v1213
  %v1215 = vrot.slane %v1214, 1
  %v1233 = vunpack.c.l.b16 %v1196
  %v1234 = vunpack.c.l.b16 %v1197
  %v1235 = vunpack.c.l.b16 %v1198
  %v1236 = vunpack.c.l.b16 %v1199
  %v1237 = vunpack.c.l.b16 %v1200
  %v1238 = vunpack.c.l.b16 %v1201
  %v1239 = vunpack.c.l.b16 %v1202
  %v1240 = vunpack.c.l.b16 %v1203
  %v1241 = vunpack.c.l.b16 %v1204
  %v1242 = vunpack.c.l.b16 %v1205
  %v1243 = vunpack.c.l.b16 %v1206
  %v1244 = vunpack.c.l.b16 %v1207
  %v1245 = vunpack.c.l.b16 %v1208
  %v1246 = vunpack.c.l.b16 %v1209
  %v1247 = vunpack.c.l.b16 %v1210
  %v1248 = vunpack.c.l.b16 %v1211
  %v1249 = vpack.c.b16 %v1234, %v1233
  %v1250 = vpack.c.b16 %v1236, %v1235
  %v1251 = vpack.c.b16 %v1238, %v1237
  %v1252 = vpack.c.b16 %v1240, %v1239
  %v1253 = vpack.c.b16 %v1242, %v1241
  %v1254 = vpack.c.b16 %v1244, %v1243
  %v1255 = vpack.c.b16 %v1246, %v1245
  %v1256 = vpack.c.b16 %v1248, %v1247
  %1265 = vmatpush.bf16.msra.mxu0 %v1256
  %1266 = vmatpush.bf16.msra.mxu0 %v1255
  %1267 = vmatpush.bf16.msra.mxu0 %v1254
  %1268 = vmatpush.bf16.msra.mxu0 %v1253
  %1269 = vmatpush.bf16.msra.mxu0 %v1252
  %1270 = vmatpush.bf16.msra.mxu0 %v1251
  %1271 = vmatpush.bf16.msra.mxu0 %v1250
  %1272 = vmatpush.bf16.msra.mxu0 %v1249
  %1273 = vmatmul.bf16.gmra.mxu0 %v1215
  %v1274 = vpop.f32.mrf.mxu0
  %v1275 = vadd.f32 0.0, %v1274
  %v1276 = vpop.f32.mrf.mxu0
  %1277 = vdwg.mxu0
  %v1294 = vunpack.c.l.b16 %v1178
  %v1295 = vunpack.c.l.b16 %v1179
  %v1296 = vunpack.c.l.b16 %v1180
  %v1297 = vunpack.c.l.b16 %v1181
  %v1298 = vunpack.c.l.b16 %v1182
  %v1299 = vunpack.c.l.b16 %v1183
  %v1300 = vunpack.c.l.b16 %v1184
  %v1301 = vunpack.c.l.b16 %v1185
  %v1302 = vunpack.c.l.b16 %v1186
  %v1303 = vunpack.c.l.b16 %v1187
  %v1304 = vunpack.c.l.b16 %v1188
  %v1305 = vunpack.c.l.b16 %v1189
  %v1306 = vunpack.c.l.b16 %v1190
  %v1307 = vunpack.c.l.b16 %v1191
  %v1308 = vunpack.c.l.b16 %v1192
  %v1309 = vunpack.c.l.b16 %v1193
  %v1310 = vpack.c.b16 %v1295, %v1294
  %v1311 = vpack.c.b16 %v1297, %v1296
  %v1312 = vpack.c.b16 %v1299, %v1298
  %v1313 = vpack.c.b16 %v1301, %v1300
  %v1314 = vpack.c.b16 %v1303, %v1302
  %v1315 = vpack.c.b16 %v1305, %v1304
  %v1316 = vpack.c.b16 %v1307, %v1306
  %v1317 = vpack.c.b16 %v1309, %v1308
  %1326 = vmatpush.bf16.msra.mxu0 %v1317
  %1327 = vmatpush.bf16.msra.mxu0 %v1316
  %1328 = vmatpush.bf16.msra.mxu0 %v1315
  %1329 = vmatpush.bf16.msra.mxu0 %v1314
  %1330 = vmatpush.bf16.msra.mxu0 %v1313
  %1331 = vmatpush.bf16.msra.mxu0 %v1312
  %1332 = vmatpush.bf16.msra.mxu0 %v1311
  %1333 = vmatpush.bf16.msra.mxu0 %v1310
  %1334 = vmatmul.bf16.gmra.mxu0 %v1177
  %v1335 = vpop.f32.mrf.mxu0
  %v1336 = vadd.f32 %v1275, %v1335
  %v1337 = vpop.f32.mrf.mxu0
  %1338 = vdwg.mxu0
  %v1339 = vld [vmem:[#allocation3] sm:$0x4]
  %s1340 = scalar_lea.vmem %s9, 128
  %v1341 = vld [vmem:[%s1340] sm:$0xf]
  %v1342 = vld [vmem:[%s1340 + $0x4] sm:$0xf]
  %v1343 = vld [vmem:[%s1340 + $0x8] sm:$0xf]
  %v1344 = vld [vmem:[%s1340 + $0xc] sm:$0xf]
  %v1345 = vld [vmem:[%s1340 + $0x10] sm:$0xf]
  %v1346 = vld [vmem:[%s1340 + $0x14] sm:$0xf]
  %v1347 = vld [vmem:[%s1340 + $0x18] sm:$0xf]
  %v1348 = vld [vmem:[%s1340 + $0x1c] sm:$0xf]
  %v1349 = vld [vmem:[%s1340 + $0x20] sm:$0xf]
  %v1350 = vld [vmem:[%s1340 + $0x24] sm:$0xf]
  %v1351 = vld [vmem:[%s1340 + $0x28] sm:$0xf]
  %v1352 = vld [vmem:[%s1340 + $0x2c] sm:$0xf]
  %v1353 = vld [vmem:[%s1340 + $0x30] sm:$0xf]
  %v1354 = vld [vmem:[%s1340 + $0x34] sm:$0xf]
  %v1355 = vld [vmem:[%s1340 + $0x38] sm:$0xf]
  %v1356 = vld [vmem:[%s1340 + $0x3c] sm:$0xf]
  %v1358 = vunpack.c.l.b16 %v1339
  %v1359 = vpack.c.b16 %v1358, %v1358
  %v1360 = vrot.slane %v1359, 2
  %v1378 = vunpack.c.l.b16 %v1341
  %v1379 = vunpack.c.l.b16 %v1342
  %v1380 = vunpack.c.l.b16 %v1343
  %v1381 = vunpack.c.l.b16 %v1344
  %v1382 = vunpack.c.l.b16 %v1345
  %v1383 = vunpack.c.l.b16 %v1346
  %v1384 = vunpack.c.l.b16 %v1347
  %v1385 = vunpack.c.l.b16 %v1348
  %v1386 = vunpack.c.l.b16 %v1349
  %v1387 = vunpack.c.l.b16 %v1350
  %v1388 = vunpack.c.l.b16 %v1351
  %v1389 = vunpack.c.l.b16 %v1352
  %v1390 = vunpack.c.l.b16 %v1353
  %v1391 = vunpack.c.l.b16 %v1354
  %v1392 = vunpack.c.l.b16 %v1355
  %v1393 = vunpack.c.l.b16 %v1356
  %v1394 = vpack.c.b16 %v1379, %v1378
  %v1395 = vpack.c.b16 %v1381, %v1380
  %v1396 = vpack.c.b16 %v1383, %v1382
  %v1397 = vpack.c.b16 %v1385, %v1384
  %v1398 = vpack.c.b16 %v1387, %v1386
  %v1399 = vpack.c.b16 %v1389, %v1388
  %v1400 = vpack.c.b16 %v1391, %v1390
  %v1401 = vpack.c.b16 %v1393, %v1392
  %1410 = vmatpush.bf16.msra.mxu0 %v1401
  %1411 = vmatpush.bf16.msra.mxu0 %v1400
  %1412 = vmatpush.bf16.msra.mxu0 %v1399
  %1413 = vmatpush.bf16.msra.mxu0 %v1398
  %1414 = vmatpush.bf16.msra.mxu0 %v1397
  %1415 = vmatpush.bf16.msra.mxu0 %v1396
  %1416 = vmatpush.bf16.msra.mxu0 %v1395
  %1417 = vmatpush.bf16.msra.mxu0 %v1394
  %1418 = vmatmul.bf16.gmra.mxu0 %v1360
  %v1419 = vpop.f32.mrf.mxu0
  %v1420 = vadd.f32 0.0, %v1419
  %v1421 = vpop.f32.mrf.mxu0
  %1422 = vdwg.mxu0
  %v1423 = vadd.f32 %v1336, %v1420
  %v1424 = vld [vmem:[#allocation3] sm:$0x8]
  %s1425 = scalar_lea.vmem %s9, 192
  %v1426 = vld [vmem:[%s1425] sm:$0xf]
  %v1427 = vld [vmem:[%s1425 + $0x4] sm:$0xf]
  %v1428 = vld [vmem:[%s1425 + $0x8] sm:$0xf]
  %v1429 = vld [vmem:[%s1425 + $0xc] sm:$0xf]
  %v1430 = vld [vmem:[%s1425 + $0x10] sm:$0xf]
  %v1431 = vld [vmem:[%s1425 + $0x14] sm:$0xf]
  %v1432 = vld [vmem:[%s1425 + $0x18] sm:$0xf]
  %v1433 = vld [vmem:[%s1425 + $0x1c] sm:$0xf]
  %v1434 = vld [vmem:[%s1425 + $0x20] sm:$0xf]
  %v1435 = vld [vmem:[%s1425 + $0x24] sm:$0xf]
  %v1436 = vld [vmem:[%s1425 + $0x28] sm:$0xf]
  %v1437 = vld [vmem:[%s1425 + $0x2c] sm:$0xf]
  %v1438 = vld [vmem:[%s1425 + $0x30] sm:$0xf]
  %v1439 = vld [vmem:[%s1425 + $0x34] sm:$0xf]
  %v1440 = vld [vmem:[%s1425 + $0x38] sm:$0xf]
  %v1441 = vld [vmem:[%s1425 + $0x3c] sm:$0xf]
  %v1443 = vunpack.c.l.b16 %v1424
  %v1444 = vpack.c.b16 %v1443, %v1443
  %v1445 = vrot.slane %v1444, 3
  %v1463 = vunpack.c.l.b16 %v1426
  %v1464 = vunpack.c.l.b16 %v1427
  %v1465 = vunpack.c.l.b16 %v1428
  %v1466 = vunpack.c.l.b16 %v1429
  %v1467 = vunpack.c.l.b16 %v1430
  %v1468 = vunpack.c.l.b16 %v1431
  %v1469 = vunpack.c.l.b16 %v1432
  %v1470 = vunpack.c.l.b16 %v1433
  %v1471 = vunpack.c.l.b16 %v1434
  %v1472 = vunpack.c.l.b16 %v1435
  %v1473 = vunpack.c.l.b16 %v1436
  %v1474 = vunpack.c.l.b16 %v1437
  %v1475 = vunpack.c.l.b16 %v1438
  %v1476 = vunpack.c.l.b16 %v1439
  %v1477 = vunpack.c.l.b16 %v1440
  %v1478 = vunpack.c.l.b16 %v1441
  %v1479 = vpack.c.b16 %v1464, %v1463
  %v1480 = vpack.c.b16 %v1466, %v1465
  %v1481 = vpack.c.b16 %v1468, %v1467
  %v1482 = vpack.c.b16 %v1470, %v1469
  %v1483 = vpack.c.b16 %v1472, %v1471
  %v1484 = vpack.c.b16 %v1474, %v1473
  %v1485 = vpack.c.b16 %v1476, %v1475
  %v1486 = vpack.c.b16 %v1478, %v1477
  %1495 = vmatpush.bf16.msra.mxu0 %v1486
  %1496 = vmatpush.bf16.msra.mxu0 %v1485
  %1497 = vmatpush.bf16.msra.mxu0 %v1484
  %1498 = vmatpush.bf16.msra.mxu0 %v1483
  %1499 = vmatpush.bf16.msra.mxu0 %v1482
  %1500 = vmatpush.bf16.msra.mxu0 %v1481
  %1501 = vmatpush.bf16.msra.mxu0 %v1480
  %1502 = vmatpush.bf16.msra.mxu0 %v1479
  %1503 = vmatmul.bf16.gmra.mxu0 %v1445
  %v1504 = vpop.f32.mrf.mxu0
  %v1505 = vadd.f32 0.0, %v1504
  %v1506 = vpop.f32.mrf.mxu0
  %1507 = vdwg.mxu0
  %v1508 = vadd.f32 %v1423, %v1505
  %v1509 = vld [vmem:[#allocation3 + $0x4] sm:$0x1]
  %s1510 = scalar_lea.vmem %s9, 256
  %v1511 = vld [vmem:[%s1510] sm:$0xf]
  %v1512 = vld [vmem:[%s1510 + $0x4] sm:$0xf]
  %v1513 = vld [vmem:[%s1510 + $0x8] sm:$0xf]
  %v1514 = vld [vmem:[%s1510 + $0xc] sm:$0xf]
  %v1515 = vld [vmem:[%s1510 + $0x10] sm:$0xf]
  %v1516 = vld [vmem:[%s1510 + $0x14] sm:$0xf]
  %v1517 = vld [vmem:[%s1510 + $0x18] sm:$0xf]
  %v1518 = vld [vmem:[%s1510 + $0x1c] sm:$0xf]
  %v1519 = vld [vmem:[%s1510 + $0x20] sm:$0xf]
  %v1520 = vld [vmem:[%s1510 + $0x24] sm:$0xf]
  %v1521 = vld [vmem:[%s1510 + $0x28] sm:$0xf]
  %v1522 = vld [vmem:[%s1510 + $0x2c] sm:$0xf]
  %v1523 = vld [vmem:[%s1510 + $0x30] sm:$0xf]
  %v1524 = vld [vmem:[%s1510 + $0x34] sm:$0xf]
  %v1525 = vld [vmem:[%s1510 + $0x38] sm:$0xf]
  %v1526 = vld [vmem:[%s1510 + $0x3c] sm:$0xf]
  %v1543 = vunpack.c.l.b16 %v1511
  %v1544 = vunpack.c.l.b16 %v1512
  %v1545 = vunpack.c.l.b16 %v1513
  %v1546 = vunpack.c.l.b16 %v1514
  %v1547 = vunpack.c.l.b16 %v1515
  %v1548 = vunpack.c.l.b16 %v1516
  %v1549 = vunpack.c.l.b16 %v1517
  %v1550 = vunpack.c.l.b16 %v1518
  %v1551 = vunpack.c.l.b16 %v1519
  %v1552 = vunpack.c.l.b16 %v1520
  %v1553 = vunpack.c.l.b16 %v1521
  %v1554 = vunpack.c.l.b16 %v1522
  %v1555 = vunpack.c.l.b16 %v1523
  %v1556 = vunpack.c.l.b16 %v1524
  %v1557 = vunpack.c.l.b16 %v1525
  %v1558 = vunpack.c.l.b16 %v1526
  %v1559 = vpack.c.b16 %v1544, %v1543
  %v1560 = vpack.c.b16 %v1546, %v1545
  %v1561 = vpack.c.b16 %v1548, %v1547
  %v1562 = vpack.c.b16 %v1550, %v1549
  %v1563 = vpack.c.b16 %v1552, %v1551
  %v1564 = vpack.c.b16 %v1554, %v1553
  %v1565 = vpack.c.b16 %v1556, %v1555
  %v1566 = vpack.c.b16 %v1558, %v1557
  %1575 = vmatpush.bf16.msra.mxu0 %v1566
  %1576 = vmatpush.bf16.msra.mxu0 %v1565
  %1577 = vmatpush.bf16.msra.mxu0 %v1564
  %1578 = vmatpush.bf16.msra.mxu0 %v1563
  %1579 = vmatpush.bf16.msra.mxu0 %v1562
  %1580 = vmatpush.bf16.msra.mxu0 %v1561
  %1581 = vmatpush.bf16.msra.mxu0 %v1560
  %1582 = vmatpush.bf16.msra.mxu0 %v1559
  %1583 = vmatmul.bf16.gmra.mxu0 %v1509
  %v1584 = vpop.f32.mrf.mxu0
  %v1585 = vadd.f32 0.0, %v1584
  %v1586 = vpop.f32.mrf.mxu0
  %1587 = vdwg.mxu0
  %v1588 = vadd.f32 %v1508, %v1585
  %v1589 = vld [vmem:[#allocation3 + $0x4] sm:$0x2]
  %s1590 = scalar_lea.vmem %s9, 320
  %v1591 = vld [vmem:[%s1590] sm:$0xf]
  %v1592 = vld [vmem:[%s1590 + $0x4] sm:$0xf]
  %v1593 = vld [vmem:[%s1590 + $0x8] sm:$0xf]
  %v1594 = vld [vmem:[%s1590 + $0xc] sm:$0xf]
  %v1595 = vld [vmem:[%s1590 + $0x10] sm:$0xf]
  %v1596 = vld [vmem:[%s1590 + $0x14] sm:$0xf]
  %v1597 = vld [vmem:[%s1590 + $0x18] sm:$0xf]
  %v1598 = vld [vmem:[%s1590 + $0x1c] sm:$0xf]
  %v1599 = vld [vmem:[%s1590 + $0x20] sm:$0xf]
  %v1600 = vld [vmem:[%s1590 + $0x24] sm:$0xf]
  %v1601 = vld [vmem:[%s1590 + $0x28] sm:$0xf]
  %v1602 = vld [vmem:[%s1590 + $0x2c] sm:$0xf]
  %v1603 = vld [vmem:[%s1590 + $0x30] sm:$0xf]
  %v1604 = vld [vmem:[%s1590 + $0x34] sm:$0xf]
  %v1605 = vld [vmem:[%s1590 + $0x38] sm:$0xf]
  %v1606 = vld [vmem:[%s1590 + $0x3c] sm:$0xf]
  %v1608 = vunpack.c.l.b16 %v1589
  %v1609 = vpack.c.b16 %v1608, %v1608
  %v1610 = vrot.slane %v1609, 1
  %v1628 = vunpack.c.l.b16 %v1591
  %v1629 = vunpack.c.l.b16 %v1592
  %v1630 = vunpack.c.l.b16 %v1593
  %v1631 = vunpack.c.l.b16 %v1594
  %v1632 = vunpack.c.l.b16 %v1595
  %v1633 = vunpack.c.l.b16 %v1596
  %v1634 = vunpack.c.l.b16 %v1597
  %v1635 = vunpack.c.l.b16 %v1598
  %v1636 = vunpack.c.l.b16 %v1599
  %v1637 = vunpack.c.l.b16 %v1600
  %v1638 = vunpack.c.l.b16 %v1601
  %v1639 = vunpack.c.l.b16 %v1602
  %v1640 = vunpack.c.l.b16 %v1603
  %v1641 = vunpack.c.l.b16 %v1604
  %v1642 = vunpack.c.l.b16 %v1605
  %v1643 = vunpack.c.l.b16 %v1606
  %v1644 = vpack.c.b16 %v1629, %v1628
  %v1645 = vpack.c.b16 %v1631, %v1630
  %v1646 = vpack.c.b16 %v1633, %v1632
  %v1647 = vpack.c.b16 %v1635, %v1634
  %v1648 = vpack.c.b16 %v1637, %v1636
  %v1649 = vpack.c.b16 %v1639, %v1638
  %v1650 = vpack.c.b16 %v1641, %v1640
  %v1651 = vpack.c.b16 %v1643, %v1642
  %1660 = vmatpush.bf16.msra.mxu0 %v1651
  %1661 = vmatpush.bf16.msra.mxu0 %v1650
  %1662 = vmatpush.bf16.msra.mxu0 %v1649
  %1663 = vmatpush.bf16.msra.mxu0 %v1648
  %1664 = vmatpush.bf16.msra.mxu0 %v1647
  %1665 = vmatpush.bf16.msra.mxu0 %v1646
  %1666 = vmatpush.bf16.msra.mxu0 %v1645
  %1667 = vmatpush.bf16.msra.mxu0 %v1644
  %1668 = vmatmul.bf16.gmra.mxu0 %v1610
  %v1669 = vpop.f32.mrf.mxu0
  %v1670 = vadd.f32 0.0, %v1669
  %v1671 = vpop.f32.mrf.mxu0
  %1672 = vdwg.mxu0
  %v1673 = vadd.f32 %v1588, %v1670
  %v1674 = vld [vmem:[#allocation3 + $0x4] sm:$0x4]
  %s1675 = scalar_lea.vmem %s9, 384
  %v1676 = vld [vmem:[%s1675] sm:$0xf]
  %v1677 = vld [vmem:[%s1675 + $0x4] sm:$0xf]
  %v1678 = vld [vmem:[%s1675 + $0x8] sm:$0xf]
  %v1679 = vld [vmem:[%s1675 + $0xc] sm:$0xf]
  %v1680 = vld [vmem:[%s1675 + $0x10] sm:$0xf]
  %v1681 = vld [vmem:[%s1675 + $0x14] sm:$0xf]
  %v1682 = vld [vmem:[%s1675 + $0x18] sm:$0xf]
  %v1683 = vld [vmem:[%s1675 + $0x1c] sm:$0xf]
  %v1684 = vld [vmem:[%s1675 + $0x20] sm:$0xf]
  %v1685 = vld [vmem:[%s1675 + $0x24] sm:$0xf]
  %v1686 = vld [vmem:[%s1675 + $0x28] sm:$0xf]
  %v1687 = vld [vmem:[%s1675 + $0x2c] sm:$0xf]
  %v1688 = vld [vmem:[%s1675 + $0x30] sm:$0xf]
  %v1689 = vld [vmem:[%s1675 + $0x34] sm:$0xf]
  %v1690 = vld [vmem:[%s1675 + $0x38] sm:$0xf]
  %v1691 = vld [vmem:[%s1675 + $0x3c] sm:$0xf]
  %v1693 = vunpack.c.l.b16 %v1674
  %v1694 = vpack.c.b16 %v1693, %v1693
  %v1695 = vrot.slane %v1694, 2
  %v1713 = vunpack.c.l.b16 %v1676
  %v1714 = vunpack.c.l.b16 %v1677
  %v1715 = vunpack.c.l.b16 %v1678
  %v1716 = vunpack.c.l.b16 %v1679
  %v1717 = vunpack.c.l.b16 %v1680
  %v1718 = vunpack.c.l.b16 %v1681
  %v1719 = vunpack.c.l.b16 %v1682
  %v1720 = vunpack.c.l.b16 %v1683
  %v1721 = vunpack.c.l.b16 %v1684
  %v1722 = vunpack.c.l.b16 %v1685
  %v1723 = vunpack.c.l.b16 %v1686
  %v1724 = vunpack.c.l.b16 %v1687
  %v1725 = vunpack.c.l.b16 %v1688
  %v1726 = vunpack.c.l.b16 %v1689
  %v1727 = vunpack.c.l.b16 %v1690
  %v1728 = vunpack.c.l.b16 %v1691
  %v1729 = vpack.c.b16 %v1714, %v1713
  %v1730 = vpack.c.b16 %v1716, %v1715
  %v1731 = vpack.c.b16 %v1718, %v1717
  %v1732 = vpack.c.b16 %v1720, %v1719
  %v1733 = vpack.c.b16 %v1722, %v1721
  %v1734 = vpack.c.b16 %v1724, %v1723
  %v1735 = vpack.c.b16 %v1726, %v1725
  %v1736 = vpack.c.b16 %v1728, %v1727
  %1745 = vmatpush.bf16.msra.mxu0 %v1736
  %1746 = vmatpush.bf16.msra.mxu0 %v1735
  %1747 = vmatpush.bf16.msra.mxu0 %v1734
  %1748 = vmatpush.bf16.msra.mxu0 %v1733
  %1749 = vmatpush.bf16.msra.mxu0 %v1732
  %1750 = vmatpush.bf16.msra.mxu0 %v1731
  %1751 = vmatpush.bf16.msra.mxu0 %v1730
  %1752 = vmatpush.bf16.msra.mxu0 %v1729
  %1753 = vmatmul.bf16.gmra.mxu0 %v1695
  %v1754 = vpop.f32.mrf.mxu0
  %v1755 = vadd.f32 0.0, %v1754
  %v1756 = vpop.f32.mrf.mxu0
  %1757 = vdwg.mxu0
  %v1758 = vadd.f32 %v1673, %v1755
  %v1759 = vld [vmem:[#allocation3 + $0x4] sm:$0x8]
  %s1760 = scalar_lea.vmem %s9, 448
  %v1761 = vld [vmem:[%s1760] sm:$0xf]
  %v1762 = vld [vmem:[%s1760 + $0x4] sm:$0xf]
  %v1763 = vld [vmem:[%s1760 + $0x8] sm:$0xf]
  %v1764 = vld [vmem:[%s1760 + $0xc] sm:$0xf]
  %v1765 = vld [vmem:[%s1760 + $0x10] sm:$0xf]
  %v1766 = vld [vmem:[%s1760 + $0x14] sm:$0xf]
  %v1767 = vld [vmem:[%s1760 + $0x18] sm:$0xf]
  %v1768 = vld [vmem:[%s1760 + $0x1c] sm:$0xf]
  %v1769 = vld [vmem:[%s1760 + $0x20] sm:$0xf]
  %v1770 = vld [vmem:[%s1760 + $0x24] sm:$0xf]
  %v1771 = vld [vmem:[%s1760 + $0x28] sm:$0xf]
  %v1772 = vld [vmem:[%s1760 + $0x2c] sm:$0xf]
  %v1773 = vld [vmem:[%s1760 + $0x30] sm:$0xf]
  %v1774 = vld [vmem:[%s1760 + $0x34] sm:$0xf]
  %v1775 = vld [vmem:[%s1760 + $0x38] sm:$0xf]
  %v1776 = vld [vmem:[%s1760 + $0x3c] sm:$0xf]
  %v1778 = vunpack.c.l.b16 %v1759
  %v1779 = vpack.c.b16 %v1778, %v1778
  %v1780 = vrot.slane %v1779, 3
  %v1798 = vunpack.c.l.b16 %v1761
  %v1799 = vunpack.c.l.b16 %v1762
  %v1800 = vunpack.c.l.b16 %v1763
  %v1801 = vunpack.c.l.b16 %v1764
  %v1802 = vunpack.c.l.b16 %v1765
  %v1803 = vunpack.c.l.b16 %v1766
  %v1804 = vunpack.c.l.b16 %v1767
  %v1805 = vunpack.c.l.b16 %v1768
  %v1806 = vunpack.c.l.b16 %v1769
  %v1807 = vunpack.c.l.b16 %v1770
  %v1808 = vunpack.c.l.b16 %v1771
  %v1809 = vunpack.c.l.b16 %v1772
  %v1810 = vunpack.c.l.b16 %v1773
  %v1811 = vunpack.c.l.b16 %v1774
  %v1812 = vunpack.c.l.b16 %v1775
  %v1813 = vunpack.c.l.b16 %v1776
  %v1814 = vpack.c.b16 %v1799, %v1798
  %v1815 = vpack.c.b16 %v1801, %v1800
  %v1816 = vpack.c.b16 %v1803, %v1802
  %v1817 = vpack.c.b16 %v1805, %v1804
  %v1818 = vpack.c.b16 %v1807, %v1806
  %v1819 = vpack.c.b16 %v1809, %v1808
  %v1820 = vpack.c.b16 %v1811, %v1810
  %v1821 = vpack.c.b16 %v1813, %v1812
  %1830 = vmatpush.bf16.msra.mxu0 %v1821
  %1831 = vmatpush.bf16.msra.mxu0 %v1820
  %1832 = vmatpush.bf16.msra.mxu0 %v1819
  %1833 = vmatpush.bf16.msra.mxu0 %v1818
  %1834 = vmatpush.bf16.msra.mxu0 %v1817
  %1835 = vmatpush.bf16.msra.mxu0 %v1816
  %1836 = vmatpush.bf16.msra.mxu0 %v1815
  %1837 = vmatpush.bf16.msra.mxu0 %v1814
  %1838 = vmatmul.bf16.gmra.mxu0 %v1780
  %v1839 = vpop.f32.mrf.mxu0
  %v1840 = vadd.f32 0.0, %v1839
  %v1841 = vpop.f32.mrf.mxu0
  %1842 = vdwg.mxu0
  %v1843 = vadd.f32 %v1758, %v1840
  %v1844 = vld [vmem:[#allocation3 + $0x8] sm:$0x1]
  %s1845 = scalar_lea.vmem %s9, 512
  %v1846 = vld [vmem:[%s1845] sm:$0xf]
  %v1847 = vld [vmem:[%s1845 + $0x4] sm:$0xf]
  %v1848 = vld [vmem:[%s1845 + $0x8] sm:$0xf]
  %v1849 = vld [vmem:[%s1845 + $0xc] sm:$0xf]
  %v1850 = vld [vmem:[%s1845 + $0x10] sm:$0xf]
  %v1851 = vld [vmem:[%s1845 + $0x14] sm:$0xf]
  %v1852 = vld [vmem:[%s1845 + $0x18] sm:$0xf]
  %v1853 = vld [vmem:[%s1845 + $0x1c] sm:$0xf]
  %v1854 = vld [vmem:[%s1845 + $0x20] sm:$0xf]
  %v1855 = vld [vmem:[%s1845 + $0x24] sm:$0xf]
  %v1856 = vld [vmem:[%s1845 + $0x28] sm:$0xf]
  %v1857 = vld [vmem:[%s1845 + $0x2c] sm:$0xf]
  %v1858 = vld [vmem:[%s1845 + $0x30] sm:$0xf]
  %v1859 = vld [vmem:[%s1845 + $0x34] sm:$0xf]
  %v1860 = vld [vmem:[%s1845 + $0x38] sm:$0xf]
  %v1861 = vld [vmem:[%s1845 + $0x3c] sm:$0xf]
  %v1878 = vunpack.c.l.b16 %v1846
  %v1879 = vunpack.c.l.b16 %v1847
  %v1880 = vunpack.c.l.b16 %v1848
  %v1881 = vunpack.c.l.b16 %v1849
  %v1882 = vunpack.c.l.b16 %v1850
  %v1883 = vunpack.c.l.b16 %v1851
  %v1884 = vunpack.c.l.b16 %v1852
  %v1885 = vunpack.c.l.b16 %v1853
  %v1886 = vunpack.c.l.b16 %v1854
  %v1887 = vunpack.c.l.b16 %v1855
  %v1888 = vunpack.c.l.b16 %v1856
  %v1889 = vunpack.c.l.b16 %v1857
  %v1890 = vunpack.c.l.b16 %v1858
  %v1891 = vunpack.c.l.b16 %v1859
  %v1892 = vunpack.c.l.b16 %v1860
  %v1893 = vunpack.c.l.b16 %v1861
  %v1894 = vpack.c.b16 %v1879, %v1878
  %v1895 = vpack.c.b16 %v1881, %v1880
  %v1896 = vpack.c.b16 %v1883, %v1882
  %v1897 = vpack.c.b16 %v1885, %v1884
  %v1898 = vpack.c.b16 %v1887, %v1886
  %v1899 = vpack.c.b16 %v1889, %v1888
  %v1900 = vpack.c.b16 %v1891, %v1890
  %v1901 = vpack.c.b16 %v1893, %v1892
  %1910 = vmatpush.bf16.msra.mxu0 %v1901
  %1911 = vmatpush.bf16.msra.mxu0 %v1900
  %1912 = vmatpush.bf16.msra.mxu0 %v1899
  %1913 = vmatpush.bf16.msra.mxu0 %v1898
  %1914 = vmatpush.bf16.msra.mxu0 %v1897
  %1915 = vmatpush.bf16.msra.mxu0 %v1896
  %1916 = vmatpush.bf16.msra.mxu0 %v1895
  %1917 = vmatpush.bf16.msra.mxu0 %v1894
  %1918 = vmatmul.bf16.gmra.mxu0 %v1844
  %v1919 = vpop.f32.mrf.mxu0
  %v1920 = vadd.f32 0.0, %v1919
  %v1921 = vpop.f32.mrf.mxu0
  %1922 = vdwg.mxu0
  %v1923 = vadd.f32 %v1843, %v1920
  %v1924 = vld [vmem:[#allocation3 + $0x8] sm:$0x2]
  %s1925 = scalar_lea.vmem %s9, 576
  %v1926 = vld [vmem:[%s1925] sm:$0xf]
  %v1927 = vld [vmem:[%s1925 + $0x4] sm:$0xf]
  %v1928 = vld [vmem:[%s1925 + $0x8] sm:$0xf]
  %v1929 = vld [vmem:[%s1925 + $0xc] sm:$0xf]
  %v1930 = vld [vmem:[%s1925 + $0x10] sm:$0xf]
  %v1931 = vld [vmem:[%s1925 + $0x14] sm:$0xf]
  %v1932 = vld [vmem:[%s1925 + $0x18] sm:$0xf]
  %v1933 = vld [vmem:[%s1925 + $0x1c] sm:$0xf]
  %v1934 = vld [vmem:[%s1925 + $0x20] sm:$0xf]
  %v1935 = vld [vmem:[%s1925 + $0x24] sm:$0xf]
  %v1936 = vld [vmem:[%s1925 + $0x28] sm:$0xf]
  %v1937 = vld [vmem:[%s1925 + $0x2c] sm:$0xf]
  %v1938 = vld [vmem:[%s1925 + $0x30] sm:$0xf]
  %v1939 = vld [vmem:[%s1925 + $0x34] sm:$0xf]
  %v1940 = vld [vmem:[%s1925 + $0x38] sm:$0xf]
  %v1941 = vld [vmem:[%s1925 + $0x3c] sm:$0xf]
  %v1943 = vunpack.c.l.b16 %v1924
  %v1944 = vpack.c.b16 %v1943, %v1943
  %v1945 = vrot.slane %v1944, 1
  %v1963 = vunpack.c.l.b16 %v1926
  %v1964 = vunpack.c.l.b16 %v1927
  %v1965 = vunpack.c.l.b16 %v1928
  %v1966 = vunpack.c.l.b16 %v1929
  %v1967 = vunpack.c.l.b16 %v1930
  %v1968 = vunpack.c.l.b16 %v1931
  %v1969 = vunpack.c.l.b16 %v1932
  %v1970 = vunpack.c.l.b16 %v1933
  %v1971 = vunpack.c.l.b16 %v1934
  %v1972 = vunpack.c.l.b16 %v1935
  %v1973 = vunpack.c.l.b16 %v1936
  %v1974 = vunpack.c.l.b16 %v1937
  %v1975 = vunpack.c.l.b16 %v1938
  %v1976 = vunpack.c.l.b16 %v1939
  %v1977 = vunpack.c.l.b16 %v1940
  %v1978 = vunpack.c.l.b16 %v1941
  %v1979 = vpack.c.b16 %v1964, %v1963
  %v1980 = vpack.c.b16 %v1966, %v1965
  %v1981 = vpack.c.b16 %v1968, %v1967
  %v1982 = vpack.c.b16 %v1970, %v1969
  %v1983 = vpack.c.b16 %v1972, %v1971
  %v1984 = vpack.c.b16 %v1974, %v1973
  %v1985 = vpack.c.b16 %v1976, %v1975
  %v1986 = vpack.c.b16 %v1978, %v1977
  %1995 = vmatpush.bf16.msra.mxu0 %v1986
  %1996 = vmatpush.bf16.msra.mxu0 %v1985
  %1997 = vmatpush.bf16.msra.mxu0 %v1984
  %1998 = vmatpush.bf16.msra.mxu0 %v1983
  %1999 = vmatpush.bf16.msra.mxu0 %v1982
  %2000 = vmatpush.bf16.msra.mxu0 %v1981
  %2001 = vmatpush.bf16.msra.mxu0 %v1980
  %2002 = vmatpush.bf16.msra.mxu0 %v1979
  %2003 = vmatmul.bf16.gmra.mxu0 %v1945
  %v2004 = vpop.f32.mrf.mxu0
  %v2005 = vadd.f32 0.0, %v2004
  %v2006 = vpop.f32.mrf.mxu0
  %2007 = vdwg.mxu0
  %v2008 = vadd.f32 %v1923, %v2005
  %v2009 = vld [vmem:[#allocation3 + $0x8] sm:$0x4]
  %s2010 = scalar_lea.vmem %s9, 640
  %v2011 = vld [vmem:[%s2010] sm:$0xf]
  %v2012 = vld [vmem:[%s2010 + $0x4] sm:$0xf]
  %v2013 = vld [vmem:[%s2010 + $0x8] sm:$0xf]
  %v2014 = vld [vmem:[%s2010 + $0xc] sm:$0xf]
  %v2015 = vld [vmem:[%s2010 + $0x10] sm:$0xf]
  %v2016 = vld [vmem:[%s2010 + $0x14] sm:$0xf]
  %v2017 = vld [vmem:[%s2010 + $0x18] sm:$0xf]
  %v2018 = vld [vmem:[%s2010 + $0x1c] sm:$0xf]
  %v2019 = vld [vmem:[%s2010 + $0x20] sm:$0xf]
  %v2020 = vld [vmem:[%s2010 + $0x24] sm:$0xf]
  %v2021 = vld [vmem:[%s2010 + $0x28] sm:$0xf]
  %v2022 = vld [vmem:[%s2010 + $0x2c] sm:$0xf]
  %v2023 = vld [vmem:[%s2010 + $0x30] sm:$0xf]
  %v2024 = vld [vmem:[%s2010 + $0x34] sm:$0xf]
  %v2025 = vld [vmem:[%s2010 + $0x38] sm:$0xf]
  %v2026 = vld [vmem:[%s2010 + $0x3c] sm:$0xf]
  %v2028 = vunpack.c.l.b16 %v2009
  %v2029 = vpack.c.b16 %v2028, %v2028
  %v2030 = vrot.slane %v2029, 2
  %v2048 = vunpack.c.l.b16 %v2011
  %v2049 = vunpack.c.l.b16 %v2012
  %v2050 = vunpack.c.l.b16 %v2013
  %v2051 = vunpack.c.l.b16 %v2014
  %v2052 = vunpack.c.l.b16 %v2015
  %v2053 = vunpack.c.l.b16 %v2016
  %v2054 = vunpack.c.l.b16 %v2017
  %v2055 = vunpack.c.l.b16 %v2018
  %v2056 = vunpack.c.l.b16 %v2019
  %v2057 = vunpack.c.l.b16 %v2020
  %v2058 = vunpack.c.l.b16 %v2021
  %v2059 = vunpack.c.l.b16 %v2022
  %v2060 = vunpack.c.l.b16 %v2023
  %v2061 = vunpack.c.l.b16 %v2024
  %v2062 = vunpack.c.l.b16 %v2025
  %v2063 = vunpack.c.l.b16 %v2026
  %v2064 = vpack.c.b16 %v2049, %v2048
  %v2065 = vpack.c.b16 %v2051, %v2050
  %v2066 = vpack.c.b16 %v2053, %v2052
  %v2067 = vpack.c.b16 %v2055, %v2054
  %v2068 = vpack.c.b16 %v2057, %v2056
  %v2069 = vpack.c.b16 %v2059, %v2058
  %v2070 = vpack.c.b16 %v2061, %v2060
  %v2071 = vpack.c.b16 %v2063, %v2062
  %2080 = vmatpush.bf16.msra.mxu0 %v2071
  %2081 = vmatpush.bf16.msra.mxu0 %v2070
  %2082 = vmatpush.bf16.msra.mxu0 %v2069
  %2083 = vmatpush.bf16.msra.mxu0 %v2068
  %2084 = vmatpush.bf16.msra.mxu0 %v2067
  %2085 = vmatpush.bf16.msra.mxu0 %v2066
  %2086 = vmatpush.bf16.msra.mxu0 %v2065
  %2087 = vmatpush.bf16.msra.mxu0 %v2064
  %2088 = vmatmul.bf16.gmra.mxu0 %v2030
  %v2089 = vpop.f32.mrf.mxu0
  %v2090 = vadd.f32 0.0, %v2089
  %v2091 = vpop.f32.mrf.mxu0
  %2092 = vdwg.mxu0
  %v2093 = vadd.f32 %v2008, %v2090
  %v2094 = vld [vmem:[#allocation3 + $0x8] sm:$0x8]
  %s2095 = scalar_lea.vmem %s9, 704
  %v2096 = vld [vmem:[%s2095] sm:$0xf]
  %v2097 = vld [vmem:[%s2095 + $0x4] sm:$0xf]
  %v2098 = vld [vmem:[%s2095 + $0x8] sm:$0xf]
  %v2099 = vld [vmem:[%s2095 + $0xc] sm:$0xf]
  %v2100 = vld [vmem:[%s2095 + $0x10] sm:$0xf]
  %v2101 = vld [vmem:[%s2095 + $0x14] sm:$0xf]
  %v2102 = vld [vmem:[%s2095 + $0x18] sm:$0xf]
  %v2103 = vld [vmem:[%s2095 + $0x1c] sm:$0xf]
  %v2104 = vld [vmem:[%s2095 + $0x20] sm:$0xf]
  %v2105 = vld [vmem:[%s2095 + $0x24] sm:$0xf]
  %v2106 = vld [vmem:[%s2095 + $0x28] sm:$0xf]
  %v2107 = vld [vmem:[%s2095 + $0x2c] sm:$0xf]
  %v2108 = vld [vmem:[%s2095 + $0x30] sm:$0xf]
  %v2109 = vld [vmem:[%s2095 + $0x34] sm:$0xf]
  %v2110 = vld [vmem:[%s2095 + $0x38] sm:$0xf]
  %v2111 = vld [vmem:[%s2095 + $0x3c] sm:$0xf]
  %v2113 = vunpack.c.l.b16 %v2094
  %v2114 = vpack.c.b16 %v2113, %v2113
  %v2115 = vrot.slane %v2114, 3
  %v2133 = vunpack.c.l.b16 %v2096
  %v2134 = vunpack.c.l.b16 %v2097
  %v2135 = vunpack.c.l.b16 %v2098
  %v2136 = vunpack.c.l.b16 %v2099
  %v2137 = vunpack.c.l.b16 %v2100
  %v2138 = vunpack.c.l.b16 %v2101
  %v2139 = vunpack.c.l.b16 %v2102
  %v2140 = vunpack.c.l.b16 %v2103
  %v2141 = vunpack.c.l.b16 %v2104
  %v2142 = vunpack.c.l.b16 %v2105
  %v2143 = vunpack.c.l.b16 %v2106
  %v2144 = vunpack.c.l.b16 %v2107
  %v2145 = vunpack.c.l.b16 %v2108
  %v2146 = vunpack.c.l.b16 %v2109
  %v2147 = vunpack.c.l.b16 %v2110
  %v2148 = vunpack.c.l.b16 %v2111
  %v2149 = vpack.c.b16 %v2134, %v2133
  %v2150 = vpack.c.b16 %v2136, %v2135
  %v2151 = vpack.c.b16 %v2138, %v2137
  %v2152 = vpack.c.b16 %v2140, %v2139
  %v2153 = vpack.c.b16 %v2142, %v2141
  %v2154 = vpack.c.b16 %v2144, %v2143
  %v2155 = vpack.c.b16 %v2146, %v2145
  %v2156 = vpack.c.b16 %v2148, %v2147
  %2165 = vmatpush.bf16.msra.mxu0 %v2156
  %2166 = vmatpush.bf16.msra.mxu0 %v2155
  %2167 = vmatpush.bf16.msra.mxu0 %v2154
  %2168 = vmatpush.bf16.msra.mxu0 %v2153
  %2169 = vmatpush.bf16.msra.mxu0 %v2152
  %2170 = vmatpush.bf16.msra.mxu0 %v2151
  %2171 = vmatpush.bf16.msra.mxu0 %v2150
  %2172 = vmatpush.bf16.msra.mxu0 %v2149
  %2173 = vmatmul.bf16.gmra.mxu0 %v2115
  %v2174 = vpop.f32.mrf.mxu0
  %v2175 = vadd.f32 0.0, %v2174
  %v2176 = vpop.f32.mrf.mxu0
  %2177 = vdwg.mxu0
  %v2178 = vadd.f32 %v2093, %v2175
  %v2179 = vld [vmem:[#allocation3 + $0xc] sm:$0x1]
  %s2180 = scalar_lea.vmem %s9, 768
  %v2181 = vld [vmem:[%s2180] sm:$0xf]
  %v2182 = vld [vmem:[%s2180 + $0x4] sm:$0xf]
  %v2183 = vld [vmem:[%s2180 + $0x8] sm:$0xf]
  %v2184 = vld [vmem:[%s2180 + $0xc] sm:$0xf]
  %v2185 = vld [vmem:[%s2180 + $0x10] sm:$0xf]
  %v2186 = vld [vmem:[%s2180 + $0x14] sm:$0xf]
  %v2187 = vld [vmem:[%s2180 + $0x18] sm:$0xf]
  %v2188 = vld [vmem:[%s2180 + $0x1c] sm:$0xf]
  %v2189 = vld [vmem:[%s2180 + $0x20] sm:$0xf]
  %v2190 = vld [vmem:[%s2180 + $0x24] sm:$0xf]
  %v2191 = vld [vmem:[%s2180 + $0x28] sm:$0xf]
  %v2192 = vld [vmem:[%s2180 + $0x2c] sm:$0xf]
  %v2193 = vld [vmem:[%s2180 + $0x30] sm:$0xf]
  %v2194 = vld [vmem:[%s2180 + $0x34] sm:$0xf]
  %v2195 = vld [vmem:[%s2180 + $0x38] sm:$0xf]
  %v2196 = vld [vmem:[%s2180 + $0x3c] sm:$0xf]
  %v2213 = vunpack.c.l.b16 %v2181
  %v2214 = vunpack.c.l.b16 %v2182
  %v2215 = vunpack.c.l.b16 %v2183
  %v2216 = vunpack.c.l.b16 %v2184
  %v2217 = vunpack.c.l.b16 %v2185
  %v2218 = vunpack.c.l.b16 %v2186
  %v2219 = vunpack.c.l.b16 %v2187
  %v2220 = vunpack.c.l.b16 %v2188
  %v2221 = vunpack.c.l.b16 %v2189
  %v2222 = vunpack.c.l.b16 %v2190
  %v2223 = vunpack.c.l.b16 %v2191
  %v2224 = vunpack.c.l.b16 %v2192
  %v2225 = vunpack.c.l.b16 %v2193
  %v2226 = vunpack.c.l.b16 %v2194
  %v2227 = vunpack.c.l.b16 %v2195
  %v2228 = vunpack.c.l.b16 %v2196
  %v2229 = vpack.c.b16 %v2214, %v2213
  %v2230 = vpack.c.b16 %v2216, %v2215
  %v2231 = vpack.c.b16 %v2218, %v2217
  %v2232 = vpack.c.b16 %v2220, %v2219
  %v2233 = vpack.c.b16 %v2222, %v2221
  %v2234 = vpack.c.b16 %v2224, %v2223
  %v2235 = vpack.c.b16 %v2226, %v2225
  %v2236 = vpack.c.b16 %v2228, %v2227
  %2245 = vmatpush.bf16.msra.mxu0 %v2236
  %2246 = vmatpush.bf16.msra.mxu0 %v2235
  %2247 = vmatpush.bf16.msra.mxu0 %v2234
  %2248 = vmatpush.bf16.msra.mxu0 %v2233
  %2249 = vmatpush.bf16.msra.mxu0 %v2232
  %2250 = vmatpush.bf16.msra.mxu0 %v2231
  %2251 = vmatpush.bf16.msra.mxu0 %v2230
  %2252 = vmatpush.bf16.msra.mxu0 %v2229
  %2253 = vmatmul.bf16.gmra.mxu0 %v2179
  %v2254 = vpop.f32.mrf.mxu0
  %v2255 = vadd.f32 0.0, %v2254
  %v2256 = vpop.f32.mrf.mxu0
  %2257 = vdwg.mxu0
  %v2258 = vadd.f32 %v2178, %v2255
  %v2259 = vld [vmem:[#allocation3 + $0xc] sm:$0x2]
  %s2260 = scalar_lea.vmem %s9, 832
  %v2261 = vld [vmem:[%s2260] sm:$0xf]
  %v2262 = vld [vmem:[%s2260 + $0x4] sm:$0xf]
  %v2263 = vld [vmem:[%s2260 + $0x8] sm:$0xf]
  %v2264 = vld [vmem:[%s2260 + $0xc] sm:$0xf]
  %v2265 = vld [vmem:[%s2260 + $0x10] sm:$0xf]
  %v2266 = vld [vmem:[%s2260 + $0x14] sm:$0xf]
  %v2267 = vld [vmem:[%s2260 + $0x18] sm:$0xf]
  %v2268 = vld [vmem:[%s2260 + $0x1c] sm:$0xf]
  %v2269 = vld [vmem:[%s2260 + $0x20] sm:$0xf]
  %v2270 = vld [vmem:[%s2260 + $0x24] sm:$0xf]
  %v2271 = vld [vmem:[%s2260 + $0x28] sm:$0xf]
  %v2272 = vld [vmem:[%s2260 + $0x2c] sm:$0xf]
  %v2273 = vld [vmem:[%s2260 + $0x30] sm:$0xf]
  %v2274 = vld [vmem:[%s2260 + $0x34] sm:$0xf]
  %v2275 = vld [vmem:[%s2260 + $0x38] sm:$0xf]
  %v2276 = vld [vmem:[%s2260 + $0x3c] sm:$0xf]
  %v2278 = vunpack.c.l.b16 %v2259
  %v2279 = vpack.c.b16 %v2278, %v2278
  %v2280 = vrot.slane %v2279, 1
  %v2298 = vunpack.c.l.b16 %v2261
  %v2299 = vunpack.c.l.b16 %v2262
  %v2300 = vunpack.c.l.b16 %v2263
  %v2301 = vunpack.c.l.b16 %v2264
  %v2302 = vunpack.c.l.b16 %v2265
  %v2303 = vunpack.c.l.b16 %v2266
  %v2304 = vunpack.c.l.b16 %v2267
  %v2305 = vunpack.c.l.b16 %v2268
  %v2306 = vunpack.c.l.b16 %v2269
  %v2307 = vunpack.c.l.b16 %v2270
  %v2308 = vunpack.c.l.b16 %v2271
  %v2309 = vunpack.c.l.b16 %v2272
  %v2310 = vunpack.c.l.b16 %v2273
  %v2311 = vunpack.c.l.b16 %v2274
  %v2312 = vunpack.c.l.b16 %v2275
  %v2313 = vunpack.c.l.b16 %v2276
  %v2314 = vpack.c.b16 %v2299, %v2298
  %v2315 = vpack.c.b16 %v2301, %v2300
  %v2316 = vpack.c.b16 %v2303, %v2302
  %v2317 = vpack.c.b16 %v2305, %v2304
  %v2318 = vpack.c.b16 %v2307, %v2306
  %v2319 = vpack.c.b16 %v2309, %v2308
  %v2320 = vpack.c.b16 %v2311, %v2310
  %v2321 = vpack.c.b16 %v2313, %v2312
  %2330 = vmatpush.bf16.msra.mxu0 %v2321
  %2331 = vmatpush.bf16.msra.mxu0 %v2320
  %2332 = vmatpush.bf16.msra.mxu0 %v2319
  %2333 = vmatpush.bf16.msra.mxu0 %v2318
  %2334 = vmatpush.bf16.msra.mxu0 %v2317
  %2335 = vmatpush.bf16.msra.mxu0 %v2316
  %2336 = vmatpush.bf16.msra.mxu0 %v2315
  %2337 = vmatpush.bf16.msra.mxu0 %v2314
  %2338 = vmatmul.bf16.gmra.mxu0 %v2280
  %v2339 = vpop.f32.mrf.mxu0
  %v2340 = vadd.f32 0.0, %v2339
  %v2341 = vpop.f32.mrf.mxu0
  %2342 = vdwg.mxu0
  %v2343 = vadd.f32 %v2258, %v2340
  %v2344 = vld [vmem:[#allocation3 + $0xc] sm:$0x4]
  %s2345 = scalar_lea.vmem %s9, 896
  %v2346 = vld [vmem:[%s2345] sm:$0xf]
  %v2347 = vld [vmem:[%s2345 + $0x4] sm:$0xf]
  %v2348 = vld [vmem:[%s2345 + $0x8] sm:$0xf]
  %v2349 = vld [vmem:[%s2345 + $0xc] sm:$0xf]
  %v2350 = vld [vmem:[%s2345 + $0x10] sm:$0xf]
  %v2351 = vld [vmem:[%s2345 + $0x14] sm:$0xf]
  %v2352 = vld [vmem:[%s2345 + $0x18] sm:$0xf]
  %v2353 = vld [vmem:[%s2345 + $0x1c] sm:$0xf]
  %v2354 = vld [vmem:[%s2345 + $0x20] sm:$0xf]
  %v2355 = vld [vmem:[%s2345 + $0x24] sm:$0xf]
  %v2356 = vld [vmem:[%s2345 + $0x28] sm:$0xf]
  %v2357 = vld [vmem:[%s2345 + $0x2c] sm:$0xf]
  %v2358 = vld [vmem:[%s2345 + $0x30] sm:$0xf]
  %v2359 = vld [vmem:[%s2345 + $0x34] sm:$0xf]
  %v2360 = vld [vmem:[%s2345 + $0x38] sm:$0xf]
  %v2361 = vld [vmem:[%s2345 + $0x3c] sm:$0xf]
  %v2363 = vunpack.c.l.b16 %v2344
  %v2364 = vpack.c.b16 %v2363, %v2363
  %v2365 = vrot.slane %v2364, 2
  %v2383 = vunpack.c.l.b16 %v2346
  %v2384 = vunpack.c.l.b16 %v2347
  %v2385 = vunpack.c.l.b16 %v2348
  %v2386 = vunpack.c.l.b16 %v2349
  %v2387 = vunpack.c.l.b16 %v2350
  %v2388 = vunpack.c.l.b16 %v2351
  %v2389 = vunpack.c.l.b16 %v2352
  %v2390 = vunpack.c.l.b16 %v2353
  %v2391 = vunpack.c.l.b16 %v2354
  %v2392 = vunpack.c.l.b16 %v2355
  %v2393 = vunpack.c.l.b16 %v2356
  %v2394 = vunpack.c.l.b16 %v2357
  %v2395 = vunpack.c.l.b16 %v2358
  %v2396 = vunpack.c.l.b16 %v2359
  %v2397 = vunpack.c.l.b16 %v2360
  %v2398 = vunpack.c.l.b16 %v2361
  %v2399 = vpack.c.b16 %v2384, %v2383
  %v2400 = vpack.c.b16 %v2386, %v2385
  %v2401 = vpack.c.b16 %v2388, %v2387
  %v2402 = vpack.c.b16 %v2390, %v2389
  %v2403 = vpack.c.b16 %v2392, %v2391
  %v2404 = vpack.c.b16 %v2394, %v2393
  %v2405 = vpack.c.b16 %v2396, %v2395
  %v2406 = vpack.c.b16 %v2398, %v2397
  %2415 = vmatpush.bf16.msra.mxu0 %v2406
  %2416 = vmatpush.bf16.msra.mxu0 %v2405
  %2417 = vmatpush.bf16.msra.mxu0 %v2404
  %2418 = vmatpush.bf16.msra.mxu0 %v2403
  %2419 = vmatpush.bf16.msra.mxu0 %v2402
  %2420 = vmatpush.bf16.msra.mxu0 %v2401
  %2421 = vmatpush.bf16.msra.mxu0 %v2400
  %2422 = vmatpush.bf16.msra.mxu0 %v2399
  %2423 = vmatmul.bf16.gmra.mxu0 %v2365
  %v2424 = vpop.f32.mrf.mxu0
  %v2425 = vadd.f32 0.0, %v2424
  %v2426 = vpop.f32.mrf.mxu0
  %2427 = vdwg.mxu0
  %v2428 = vadd.f32 %v2343, %v2425
  %v2429 = vld [vmem:[#allocation3 + $0xc] sm:$0x8]
  %s2430 = scalar_lea.vmem %s9, 960
  %v2431 = vld [vmem:[%s2430] sm:$0xf]
  %v2432 = vld [vmem:[%s2430 + $0x4] sm:$0xf]
  %v2433 = vld [vmem:[%s2430 + $0x8] sm:$0xf]
  %v2434 = vld [vmem:[%s2430 + $0xc] sm:$0xf]
  %v2435 = vld [vmem:[%s2430 + $0x10] sm:$0xf]
  %v2436 = vld [vmem:[%s2430 + $0x14] sm:$0xf]
  %v2437 = vld [vmem:[%s2430 + $0x18] sm:$0xf]
  %v2438 = vld [vmem:[%s2430 + $0x1c] sm:$0xf]
  %v2439 = vld [vmem:[%s2430 + $0x20] sm:$0xf]
  %v2440 = vld [vmem:[%s2430 + $0x24] sm:$0xf]
  %v2441 = vld [vmem:[%s2430 + $0x28] sm:$0xf]
  %v2442 = vld [vmem:[%s2430 + $0x2c] sm:$0xf]
  %v2443 = vld [vmem:[%s2430 + $0x30] sm:$0xf]
  %v2444 = vld [vmem:[%s2430 + $0x34] sm:$0xf]
  %v2445 = vld [vmem:[%s2430 + $0x38] sm:$0xf]
  %v2446 = vld [vmem:[%s2430 + $0x3c] sm:$0xf]
  %v2448 = vunpack.c.l.b16 %v2429
  %v2449 = vpack.c.b16 %v2448, %v2448
  %v2450 = vrot.slane %v2449, 3
  %v2468 = vunpack.c.l.b16 %v2431
  %v2469 = vunpack.c.l.b16 %v2432
  %v2470 = vunpack.c.l.b16 %v2433
  %v2471 = vunpack.c.l.b16 %v2434
  %v2472 = vunpack.c.l.b16 %v2435
  %v2473 = vunpack.c.l.b16 %v2436
  %v2474 = vunpack.c.l.b16 %v2437
  %v2475 = vunpack.c.l.b16 %v2438
  %v2476 = vunpack.c.l.b16 %v2439
  %v2477 = vunpack.c.l.b16 %v2440
  %v2478 = vunpack.c.l.b16 %v2441
  %v2479 = vunpack.c.l.b16 %v2442
  %v2480 = vunpack.c.l.b16 %v2443
  %v2481 = vunpack.c.l.b16 %v2444
  %v2482 = vunpack.c.l.b16 %v2445
  %v2483 = vunpack.c.l.b16 %v2446
  %v2484 = vpack.c.b16 %v2469, %v2468
  %v2485 = vpack.c.b16 %v2471, %v2470
  %v2486 = vpack.c.b16 %v2473, %v2472
  %v2487 = vpack.c.b16 %v2475, %v2474
  %v2488 = vpack.c.b16 %v2477, %v2476
  %v2489 = vpack.c.b16 %v2479, %v2478
  %v2490 = vpack.c.b16 %v2481, %v2480
  %v2491 = vpack.c.b16 %v2483, %v2482
  %2500 = vmatpush.bf16.msra.mxu0 %v2491
  %2501 = vmatpush.bf16.msra.mxu0 %v2490
  %2502 = vmatpush.bf16.msra.mxu0 %v2489
  %2503 = vmatpush.bf16.msra.mxu0 %v2488
  %2504 = vmatpush.bf16.msra.mxu0 %v2487
  %2505 = vmatpush.bf16.msra.mxu0 %v2486
  %2506 = vmatpush.bf16.msra.mxu0 %v2485
  %2507 = vmatpush.bf16.msra.mxu0 %v2484
  %2508 = vmatmul.bf16.gmra.mxu0 %v2450
  %v2509 = vpop.f32.mrf.mxu0
  %v2510 = vadd.f32 0.0, %v2509
  %v2511 = vpop.f32.mrf.mxu0
  %2512 = vdwg.mxu0
  %v2513 = vadd.f32 %v2428, %v2510
  %v2514 = vld [vmem:[#allocation3 + $0x10] sm:$0x1]
  %s2515 = scalar_lea.vmem %s9, 1024
  %v2516 = vld [vmem:[%s2515] sm:$0xf]
  %v2517 = vld [vmem:[%s2515 + $0x4] sm:$0xf]
  %v2518 = vld [vmem:[%s2515 + $0x8] sm:$0xf]
  %v2519 = vld [vmem:[%s2515 + $0xc] sm:$0xf]
  %v2520 = vld [vmem:[%s2515 + $0x10] sm:$0xf]
  %v2521 = vld [vmem:[%s2515 + $0x14] sm:$0xf]
  %v2522 = vld [vmem:[%s2515 + $0x18] sm:$0xf]
  %v2523 = vld [vmem:[%s2515 + $0x1c] sm:$0xf]
  %v2524 = vld [vmem:[%s2515 + $0x20] sm:$0xf]
  %v2525 = vld [vmem:[%s2515 + $0x24] sm:$0xf]
  %v2526 = vld [vmem:[%s2515 + $0x28] sm:$0xf]
  %v2527 = vld [vmem:[%s2515 + $0x2c] sm:$0xf]
  %v2528 = vld [vmem:[%s2515 + $0x30] sm:$0xf]
  %v2529 = vld [vmem:[%s2515 + $0x34] sm:$0xf]
  %v2530 = vld [vmem:[%s2515 + $0x38] sm:$0xf]
  %v2531 = vld [vmem:[%s2515 + $0x3c] sm:$0xf]
  %v2548 = vunpack.c.l.b16 %v2516
  %v2549 = vunpack.c.l.b16 %v2517
  %v2550 = vunpack.c.l.b16 %v2518
  %v2551 = vunpack.c.l.b16 %v2519
  %v2552 = vunpack.c.l.b16 %v2520
  %v2553 = vunpack.c.l.b16 %v2521
  %v2554 = vunpack.c.l.b16 %v2522
  %v2555 = vunpack.c.l.b16 %v2523
  %v2556 = vunpack.c.l.b16 %v2524
  %v2557 = vunpack.c.l.b16 %v2525
  %v2558 = vunpack.c.l.b16 %v2526
  %v2559 = vunpack.c.l.b16 %v2527
  %v2560 = vunpack.c.l.b16 %v2528
  %v2561 = vunpack.c.l.b16 %v2529
  %v2562 = vunpack.c.l.b16 %v2530
  %v2563 = vunpack.c.l.b16 %v2531
  %v2564 = vpack.c.b16 %v2549, %v2548
  %v2565 = vpack.c.b16 %v2551, %v2550
  %v2566 = vpack.c.b16 %v2553, %v2552
  %v2567 = vpack.c.b16 %v2555, %v2554
  %v2568 = vpack.c.b16 %v2557, %v2556
  %v2569 = vpack.c.b16 %v2559, %v2558
  %v2570 = vpack.c.b16 %v2561, %v2560
  %v2571 = vpack.c.b16 %v2563, %v2562
  %2580 = vmatpush.bf16.msra.mxu0 %v2571
  %2581 = vmatpush.bf16.msra.mxu0 %v2570
  %2582 = vmatpush.bf16.msra.mxu0 %v2569
  %2583 = vmatpush.bf16.msra.mxu0 %v2568
  %2584 = vmatpush.bf16.msra.mxu0 %v2567
  %2585 = vmatpush.bf16.msra.mxu0 %v2566
  %2586 = vmatpush.bf16.msra.mxu0 %v2565
  %2587 = vmatpush.bf16.msra.mxu0 %v2564
  %2588 = vmatmul.bf16.gmra.mxu0 %v2514
  %v2589 = vpop.f32.mrf.mxu0
  %v2590 = vadd.f32 0.0, %v2589
  %v2591 = vpop.f32.mrf.mxu0
  %2592 = vdwg.mxu0
  %v2593 = vadd.f32 %v2513, %v2590
  %v2594 = vld [vmem:[#allocation3 + $0x10] sm:$0x2]
  %s2595 = scalar_lea.vmem %s9, 1088
  %v2596 = vld [vmem:[%s2595] sm:$0xf]
  %v2597 = vld [vmem:[%s2595 + $0x4] sm:$0xf]
  %v2598 = vld [vmem:[%s2595 + $0x8] sm:$0xf]
  %v2599 = vld [vmem:[%s2595 + $0xc] sm:$0xf]
  %v2600 = vld [vmem:[%s2595 + $0x10] sm:$0xf]
  %v2601 = vld [vmem:[%s2595 + $0x14] sm:$0xf]
  %v2602 = vld [vmem:[%s2595 + $0x18] sm:$0xf]
  %v2603 = vld [vmem:[%s2595 + $0x1c] sm:$0xf]
  %v2604 = vld [vmem:[%s2595 + $0x20] sm:$0xf]
  %v2605 = vld [vmem:[%s2595 + $0x24] sm:$0xf]
  %v2606 = vld [vmem:[%s2595 + $0x28] sm:$0xf]
  %v2607 = vld [vmem:[%s2595 + $0x2c] sm:$0xf]
  %v2608 = vld [vmem:[%s2595 + $0x30] sm:$0xf]
  %v2609 = vld [vmem:[%s2595 + $0x34] sm:$0xf]
  %v2610 = vld [vmem:[%s2595 + $0x38] sm:$0xf]
  %v2611 = vld [vmem:[%s2595 + $0x3c] sm:$0xf]
  %v2613 = vunpack.c.l.b16 %v2594
  %v2614 = vpack.c.b16 %v2613, %v2613
  %v2615 = vrot.slane %v2614, 1
  %v2633 = vunpack.c.l.b16 %v2596
  %v2634 = vunpack.c.l.b16 %v2597
  %v2635 = vunpack.c.l.b16 %v2598
  %v2636 = vunpack.c.l.b16 %v2599
  %v2637 = vunpack.c.l.b16 %v2600
  %v2638 = vunpack.c.l.b16 %v2601
  %v2639 = vunpack.c.l.b16 %v2602
  %v2640 = vunpack.c.l.b16 %v2603
  %v2641 = vunpack.c.l.b16 %v2604
  %v2642 = vunpack.c.l.b16 %v2605
  %v2643 = vunpack.c.l.b16 %v2606
  %v2644 = vunpack.c.l.b16 %v2607
  %v2645 = vunpack.c.l.b16 %v2608
  %v2646 = vunpack.c.l.b16 %v2609
  %v2647 = vunpack.c.l.b16 %v2610
  %v2648 = vunpack.c.l.b16 %v2611
  %v2649 = vpack.c.b16 %v2634, %v2633
  %v2650 = vpack.c.b16 %v2636, %v2635
  %v2651 = vpack.c.b16 %v2638, %v2637
  %v2652 = vpack.c.b16 %v2640, %v2639
  %v2653 = vpack.c.b16 %v2642, %v2641
  %v2654 = vpack.c.b16 %v2644, %v2643
  %v2655 = vpack.c.b16 %v2646, %v2645
  %v2656 = vpack.c.b16 %v2648, %v2647
  %2665 = vmatpush.bf16.msra.mxu0 %v2656
  %2666 = vmatpush.bf16.msra.mxu0 %v2655
  %2667 = vmatpush.bf16.msra.mxu0 %v2654
  %2668 = vmatpush.bf16.msra.mxu0 %v2653
  %2669 = vmatpush.bf16.msra.mxu0 %v2652
  %2670 = vmatpush.bf16.msra.mxu0 %v2651
  %2671 = vmatpush.bf16.msra.mxu0 %v2650
  %2672 = vmatpush.bf16.msra.mxu0 %v2649
  %2673 = vmatmul.bf16.gmra.mxu0 %v2615
  %v2674 = vpop.f32.mrf.mxu0
  %v2675 = vadd.f32 0.0, %v2674
  %v2676 = vpop.f32.mrf.mxu0
  %2677 = vdwg.mxu0
  %v2678 = vadd.f32 %v2593, %v2675
  %v2679 = vld [vmem:[#allocation3 + $0x10] sm:$0x4]
  %s2680 = scalar_lea.vmem %s9, 1152
  %v2681 = vld [vmem:[%s2680] sm:$0xf]
  %v2682 = vld [vmem:[%s2680 + $0x4] sm:$0xf]
  %v2683 = vld [vmem:[%s2680 + $0x8] sm:$0xf]
  %v2684 = vld [vmem:[%s2680 + $0xc] sm:$0xf]
  %v2685 = vld [vmem:[%s2680 + $0x10] sm:$0xf]
  %v2686 = vld [vmem:[%s2680 + $0x14] sm:$0xf]
  %v2687 = vld [vmem:[%s2680 + $0x18] sm:$0xf]
  %v2688 = vld [vmem:[%s2680 + $0x1c] sm:$0xf]
  %v2689 = vld [vmem:[%s2680 + $0x20] sm:$0xf]
  %v2690 = vld [vmem:[%s2680 + $0x24] sm:$0xf]
  %v2691 = vld [vmem:[%s2680 + $0x28] sm:$0xf]
  %v2692 = vld [vmem:[%s2680 + $0x2c] sm:$0xf]
  %v2693 = vld [vmem:[%s2680 + $0x30] sm:$0xf]
  %v2694 = vld [vmem:[%s2680 + $0x34] sm:$0xf]
  %v2695 = vld [vmem:[%s2680 + $0x38] sm:$0xf]
  %v2696 = vld [vmem:[%s2680 + $0x3c] sm:$0xf]
  %v2698 = vunpack.c.l.b16 %v2679
  %v2699 = vpack.c.b16 %v2698, %v2698
  %v2700 = vrot.slane %v2699, 2
  %v2718 = vunpack.c.l.b16 %v2681
  %v2719 = vunpack.c.l.b16 %v2682
  %v2720 = vunpack.c.l.b16 %v2683
  %v2721 = vunpack.c.l.b16 %v2684
  %v2722 = vunpack.c.l.b16 %v2685
  %v2723 = vunpack.c.l.b16 %v2686
  %v2724 = vunpack.c.l.b16 %v2687
  %v2725 = vunpack.c.l.b16 %v2688
  %v2726 = vunpack.c.l.b16 %v2689
  %v2727 = vunpack.c.l.b16 %v2690
  %v2728 = vunpack.c.l.b16 %v2691
  %v2729 = vunpack.c.l.b16 %v2692
  %v2730 = vunpack.c.l.b16 %v2693
  %v2731 = vunpack.c.l.b16 %v2694
  %v2732 = vunpack.c.l.b16 %v2695
  %v2733 = vunpack.c.l.b16 %v2696
  %v2734 = vpack.c.b16 %v2719, %v2718
  %v2735 = vpack.c.b16 %v2721, %v2720
  %v2736 = vpack.c.b16 %v2723, %v2722
  %v2737 = vpack.c.b16 %v2725, %v2724
  %v2738 = vpack.c.b16 %v2727, %v2726
  %v2739 = vpack.c.b16 %v2729, %v2728
  %v2740 = vpack.c.b16 %v2731, %v2730
  %v2741 = vpack.c.b16 %v2733, %v2732
  %2750 = vmatpush.bf16.msra.mxu0 %v2741
  %2751 = vmatpush.bf16.msra.mxu0 %v2740
  %2752 = vmatpush.bf16.msra.mxu0 %v2739
  %2753 = vmatpush.bf16.msra.mxu0 %v2738
  %2754 = vmatpush.bf16.msra.mxu0 %v2737
  %2755 = vmatpush.bf16.msra.mxu0 %v2736
  %2756 = vmatpush.bf16.msra.mxu0 %v2735
  %2757 = vmatpush.bf16.msra.mxu0 %v2734
  %2758 = vmatmul.bf16.gmra.mxu0 %v2700
  %v2759 = vpop.f32.mrf.mxu0
  %v2760 = vadd.f32 0.0, %v2759
  %v2761 = vpop.f32.mrf.mxu0
  %2762 = vdwg.mxu0
  %v2763 = vadd.f32 %v2678, %v2760
  %v2764 = vld [vmem:[#allocation3 + $0x10] sm:$0x8]
  %s2765 = scalar_lea.vmem %s9, 1216
  %v2766 = vld [vmem:[%s2765] sm:$0xf]
  %v2767 = vld [vmem:[%s2765 + $0x4] sm:$0xf]
  %v2768 = vld [vmem:[%s2765 + $0x8] sm:$0xf]
  %v2769 = vld [vmem:[%s2765 + $0xc] sm:$0xf]
  %v2770 = vld [vmem:[%s2765 + $0x10] sm:$0xf]
  %v2771 = vld [vmem:[%s2765 + $0x14] sm:$0xf]
  %v2772 = vld [vmem:[%s2765 + $0x18] sm:$0xf]
  %v2773 = vld [vmem:[%s2765 + $0x1c] sm:$0xf]
  %v2774 = vld [vmem:[%s2765 + $0x20] sm:$0xf]
  %v2775 = vld [vmem:[%s2765 + $0x24] sm:$0xf]
  %v2776 = vld [vmem:[%s2765 + $0x28] sm:$0xf]
  %v2777 = vld [vmem:[%s2765 + $0x2c] sm:$0xf]
  %v2778 = vld [vmem:[%s2765 + $0x30] sm:$0xf]
  %v2779 = vld [vmem:[%s2765 + $0x34] sm:$0xf]
  %v2780 = vld [vmem:[%s2765 + $0x38] sm:$0xf]
  %v2781 = vld [vmem:[%s2765 + $0x3c] sm:$0xf]
  %v2783 = vunpack.c.l.b16 %v2764
  %v2784 = vpack.c.b16 %v2783, %v2783
  %v2785 = vrot.slane %v2784, 3
  %v2803 = vunpack.c.l.b16 %v2766
  %v2804 = vunpack.c.l.b16 %v2767
  %v2805 = vunpack.c.l.b16 %v2768
  %v2806 = vunpack.c.l.b16 %v2769
  %v2807 = vunpack.c.l.b16 %v2770
  %v2808 = vunpack.c.l.b16 %v2771
  %v2809 = vunpack.c.l.b16 %v2772
  %v2810 = vunpack.c.l.b16 %v2773
  %v2811 = vunpack.c.l.b16 %v2774
  %v2812 = vunpack.c.l.b16 %v2775
  %v2813 = vunpack.c.l.b16 %v2776
  %v2814 = vunpack.c.l.b16 %v2777
  %v2815 = vunpack.c.l.b16 %v2778
  %v2816 = vunpack.c.l.b16 %v2779
  %v2817 = vunpack.c.l.b16 %v2780
  %v2818 = vunpack.c.l.b16 %v2781
  %v2819 = vpack.c.b16 %v2804, %v2803
  %v2820 = vpack.c.b16 %v2806, %v2805
  %v2821 = vpack.c.b16 %v2808, %v2807
  %v2822 = vpack.c.b16 %v2810, %v2809
  %v2823 = vpack.c.b16 %v2812, %v2811
  %v2824 = vpack.c.b16 %v2814, %v2813
  %v2825 = vpack.c.b16 %v2816, %v2815
  %v2826 = vpack.c.b16 %v2818, %v2817
  %2835 = vmatpush.bf16.msra.mxu0 %v2826
  %2836 = vmatpush.bf16.msra.mxu0 %v2825
  %2837 = vmatpush.bf16.msra.mxu0 %v2824
  %2838 = vmatpush.bf16.msra.mxu0 %v2823
  %2839 = vmatpush.bf16.msra.mxu0 %v2822
  %2840 = vmatpush.bf16.msra.mxu0 %v2821
  %2841 = vmatpush.bf16.msra.mxu0 %v2820
  %2842 = vmatpush.bf16.msra.mxu0 %v2819
  %2843 = vmatmul.bf16.gmra.mxu0 %v2785
  %v2844 = vpop.f32.mrf.mxu0
  %v2845 = vadd.f32 0.0, %v2844
  %v2846 = vpop.f32.mrf.mxu0
  %2847 = vdwg.mxu0
  %v2848 = vadd.f32 %v2763, %v2845
  %v2849 = vld [vmem:[#allocation3 + $0x14] sm:$0x1]
  %s2850 = scalar_lea.vmem %s9, 1280
  %v2851 = vld [vmem:[%s2850] sm:$0xf]
  %v2852 = vld [vmem:[%s2850 + $0x4] sm:$0xf]
  %v2853 = vld [vmem:[%s2850 + $0x8] sm:$0xf]
  %v2854 = vld [vmem:[%s2850 + $0xc] sm:$0xf]
  %v2855 = vld [vmem:[%s2850 + $0x10] sm:$0xf]
  %v2856 = vld [vmem:[%s2850 + $0x14] sm:$0xf]
  %v2857 = vld [vmem:[%s2850 + $0x18] sm:$0xf]
  %v2858 = vld [vmem:[%s2850 + $0x1c] sm:$0xf]
  %v2859 = vld [vmem:[%s2850 + $0x20] sm:$0xf]
  %v2860 = vld [vmem:[%s2850 + $0x24] sm:$0xf]
  %v2861 = vld [vmem:[%s2850 + $0x28] sm:$0xf]
  %v2862 = vld [vmem:[%s2850 + $0x2c] sm:$0xf]
  %v2863 = vld [vmem:[%s2850 + $0x30] sm:$0xf]
  %v2864 = vld [vmem:[%s2850 + $0x34] sm:$0xf]
  %v2865 = vld [vmem:[%s2850 + $0x38] sm:$0xf]
  %v2866 = vld [vmem:[%s2850 + $0x3c] sm:$0xf]
  %v2883 = vunpack.c.l.b16 %v2851
  %v2884 = vunpack.c.l.b16 %v2852
  %v2885 = vunpack.c.l.b16 %v2853
  %v2886 = vunpack.c.l.b16 %v2854
  %v2887 = vunpack.c.l.b16 %v2855
  %v2888 = vunpack.c.l.b16 %v2856
  %v2889 = vunpack.c.l.b16 %v2857
  %v2890 = vunpack.c.l.b16 %v2858
  %v2891 = vunpack.c.l.b16 %v2859
  %v2892 = vunpack.c.l.b16 %v2860
  %v2893 = vunpack.c.l.b16 %v2861
  %v2894 = vunpack.c.l.b16 %v2862
  %v2895 = vunpack.c.l.b16 %v2863
  %v2896 = vunpack.c.l.b16 %v2864
  %v2897 = vunpack.c.l.b16 %v2865
  %v2898 = vunpack.c.l.b16 %v2866
  %v2899 = vpack.c.b16 %v2884, %v2883
  %v2900 = vpack.c.b16 %v2886, %v2885
  %v2901 = vpack.c.b16 %v2888, %v2887
  %v2902 = vpack.c.b16 %v2890, %v2889
  %v2903 = vpack.c.b16 %v2892, %v2891
  %v2904 = vpack.c.b16 %v2894, %v2893
  %v2905 = vpack.c.b16 %v2896, %v2895
  %v2906 = vpack.c.b16 %v2898, %v2897
  %2915 = vmatpush.bf16.msra.mxu0 %v2906
  %2916 = vmatpush.bf16.msra.mxu0 %v2905
  %2917 = vmatpush.bf16.msra.mxu0 %v2904
  %2918 = vmatpush.bf16.msra.mxu0 %v2903
  %2919 = vmatpush.bf16.msra.mxu0 %v2902
  %2920 = vmatpush.bf16.msra.mxu0 %v2901
  %2921 = vmatpush.bf16.msra.mxu0 %v2900
  %2922 = vmatpush.bf16.msra.mxu0 %v2899
  %2923 = vmatmul.bf16.gmra.mxu0 %v2849
  %v2924 = vpop.f32.mrf.mxu0
  %v2925 = vadd.f32 0.0, %v2924
  %v2926 = vpop.f32.mrf.mxu0
  %2927 = vdwg.mxu0
  %v2928 = vadd.f32 %v2848, %v2925
  %v2929 = vld [vmem:[#allocation3 + $0x14] sm:$0x2]
  %s2930 = scalar_lea.vmem %s9, 1344
  %v2931 = vld [vmem:[%s2930] sm:$0xf]
  %v2932 = vld [vmem:[%s2930 + $0x4] sm:$0xf]
  %v2933 = vld [vmem:[%s2930 + $0x8] sm:$0xf]
  %v2934 = vld [vmem:[%s2930 + $0xc] sm:$0xf]
  %v2935 = vld [vmem:[%s2930 + $0x10] sm:$0xf]
  %v2936 = vld [vmem:[%s2930 + $0x14] sm:$0xf]
  %v2937 = vld [vmem:[%s2930 + $0x18] sm:$0xf]
  %v2938 = vld [vmem:[%s2930 + $0x1c] sm:$0xf]
  %v2939 = vld [vmem:[%s2930 + $0x20] sm:$0xf]
  %v2940 = vld [vmem:[%s2930 + $0x24] sm:$0xf]
  %v2941 = vld [vmem:[%s2930 + $0x28] sm:$0xf]
  %v2942 = vld [vmem:[%s2930 + $0x2c] sm:$0xf]
  %v2943 = vld [vmem:[%s2930 + $0x30] sm:$0xf]
  %v2944 = vld [vmem:[%s2930 + $0x34] sm:$0xf]
  %v2945 = vld [vmem:[%s2930 + $0x38] sm:$0xf]
  %v2946 = vld [vmem:[%s2930 + $0x3c] sm:$0xf]
  %v2948 = vunpack.c.l.b16 %v2929
  %v2949 = vpack.c.b16 %v2948, %v2948
  %v2950 = vrot.slane %v2949, 1
  %v2968 = vunpack.c.l.b16 %v2931
  %v2969 = vunpack.c.l.b16 %v2932
  %v2970 = vunpack.c.l.b16 %v2933
  %v2971 = vunpack.c.l.b16 %v2934
  %v2972 = vunpack.c.l.b16 %v2935
  %v2973 = vunpack.c.l.b16 %v2936
  %v2974 = vunpack.c.l.b16 %v2937
  %v2975 = vunpack.c.l.b16 %v2938
  %v2976 = vunpack.c.l.b16 %v2939
  %v2977 = vunpack.c.l.b16 %v2940
  %v2978 = vunpack.c.l.b16 %v2941
  %v2979 = vunpack.c.l.b16 %v2942
  %v2980 = vunpack.c.l.b16 %v2943
  %v2981 = vunpack.c.l.b16 %v2944
  %v2982 = vunpack.c.l.b16 %v2945
  %v2983 = vunpack.c.l.b16 %v2946
  %v2984 = vpack.c.b16 %v2969, %v2968
  %v2985 = vpack.c.b16 %v2971, %v2970
  %v2986 = vpack.c.b16 %v2973, %v2972
  %v2987 = vpack.c.b16 %v2975, %v2974
  %v2988 = vpack.c.b16 %v2977, %v2976
  %v2989 = vpack.c.b16 %v2979, %v2978
  %v2990 = vpack.c.b16 %v2981, %v2980
  %v2991 = vpack.c.b16 %v2983, %v2982
  %3000 = vmatpush.bf16.msra.mxu0 %v2991
  %3001 = vmatpush.bf16.msra.mxu0 %v2990
  %3002 = vmatpush.bf16.msra.mxu0 %v2989
  %3003 = vmatpush.bf16.msra.mxu0 %v2988
  %3004 = vmatpush.bf16.msra.mxu0 %v2987
  %3005 = vmatpush.bf16.msra.mxu0 %v2986
  %3006 = vmatpush.bf16.msra.mxu0 %v2985
  %3007 = vmatpush.bf16.msra.mxu0 %v2984
  %3008 = vmatmul.bf16.gmra.mxu0 %v2950
  %v3009 = vpop.f32.mrf.mxu0
  %v3010 = vadd.f32 0.0, %v3009
  %v3011 = vpop.f32.mrf.mxu0
  %3012 = vdwg.mxu0
  %v3013 = vadd.f32 %v2928, %v3010
  %v3014 = vld [vmem:[#allocation3 + $0x14] sm:$0x4]
  %s3015 = scalar_lea.vmem %s9, 1408
  %v3016 = vld [vmem:[%s3015] sm:$0xf]
  %v3017 = vld [vmem:[%s3015 + $0x4] sm:$0xf]
  %v3018 = vld [vmem:[%s3015 + $0x8] sm:$0xf]
  %v3019 = vld [vmem:[%s3015 + $0xc] sm:$0xf]
  %v3020 = vld [vmem:[%s3015 + $0x10] sm:$0xf]
  %v3021 = vld [vmem:[%s3015 + $0x14] sm:$0xf]
  %v3022 = vld [vmem:[%s3015 + $0x18] sm:$0xf]
  %v3023 = vld [vmem:[%s3015 + $0x1c] sm:$0xf]
  %v3024 = vld [vmem:[%s3015 + $0x20] sm:$0xf]
  %v3025 = vld [vmem:[%s3015 + $0x24] sm:$0xf]
  %v3026 = vld [vmem:[%s3015 + $0x28] sm:$0xf]
  %v3027 = vld [vmem:[%s3015 + $0x2c] sm:$0xf]
  %v3028 = vld [vmem:[%s3015 + $0x30] sm:$0xf]
  %v3029 = vld [vmem:[%s3015 + $0x34] sm:$0xf]
  %v3030 = vld [vmem:[%s3015 + $0x38] sm:$0xf]
  %v3031 = vld [vmem:[%s3015 + $0x3c] sm:$0xf]
  %v3033 = vunpack.c.l.b16 %v3014
  %v3034 = vpack.c.b16 %v3033, %v3033
  %v3035 = vrot.slane %v3034, 2
  %v3053 = vunpack.c.l.b16 %v3016
  %v3054 = vunpack.c.l.b16 %v3017
  %v3055 = vunpack.c.l.b16 %v3018
  %v3056 = vunpack.c.l.b16 %v3019
  %v3057 = vunpack.c.l.b16 %v3020
  %v3058 = vunpack.c.l.b16 %v3021
  %v3059 = vunpack.c.l.b16 %v3022
  %v3060 = vunpack.c.l.b16 %v3023
  %v3061 = vunpack.c.l.b16 %v3024
  %v3062 = vunpack.c.l.b16 %v3025
  %v3063 = vunpack.c.l.b16 %v3026
  %v3064 = vunpack.c.l.b16 %v3027
  %v3065 = vunpack.c.l.b16 %v3028
  %v3066 = vunpack.c.l.b16 %v3029
  %v3067 = vunpack.c.l.b16 %v3030
  %v3068 = vunpack.c.l.b16 %v3031
  %v3069 = vpack.c.b16 %v3054, %v3053
  %v3070 = vpack.c.b16 %v3056, %v3055
  %v3071 = vpack.c.b16 %v3058, %v3057
  %v3072 = vpack.c.b16 %v3060, %v3059
  %v3073 = vpack.c.b16 %v3062, %v3061
  %v3074 = vpack.c.b16 %v3064, %v3063
  %v3075 = vpack.c.b16 %v3066, %v3065
  %v3076 = vpack.c.b16 %v3068, %v3067
  %3085 = vmatpush.bf16.msra.mxu0 %v3076
  %3086 = vmatpush.bf16.msra.mxu0 %v3075
  %3087 = vmatpush.bf16.msra.mxu0 %v3074
  %3088 = vmatpush.bf16.msra.mxu0 %v3073
  %3089 = vmatpush.bf16.msra.mxu0 %v3072
  %3090 = vmatpush.bf16.msra.mxu0 %v3071
  %3091 = vmatpush.bf16.msra.mxu0 %v3070
  %3092 = vmatpush.bf16.msra.mxu0 %v3069
  %3093 = vmatmul.bf16.gmra.mxu0 %v3035
  %v3094 = vpop.f32.mrf.mxu0
  %v3095 = vadd.f32 0.0, %v3094
  %v3096 = vpop.f32.mrf.mxu0
  %3097 = vdwg.mxu0
  %v3098 = vadd.f32 %v3013, %v3095
  %v3099 = vld [vmem:[#allocation3 + $0x14] sm:$0x8]
  %s3100 = scalar_lea.vmem %s9, 1472
  %v3101 = vld [vmem:[%s3100] sm:$0xf]
  %v3102 = vld [vmem:[%s3100 + $0x4] sm:$0xf]
  %v3103 = vld [vmem:[%s3100 + $0x8] sm:$0xf]
  %v3104 = vld [vmem:[%s3100 + $0xc] sm:$0xf]
  %v3105 = vld [vmem:[%s3100 + $0x10] sm:$0xf]
  %v3106 = vld [vmem:[%s3100 + $0x14] sm:$0xf]
  %v3107 = vld [vmem:[%s3100 + $0x18] sm:$0xf]
  %v3108 = vld [vmem:[%s3100 + $0x1c] sm:$0xf]
  %v3109 = vld [vmem:[%s3100 + $0x20] sm:$0xf]
  %v3110 = vld [vmem:[%s3100 + $0x24] sm:$0xf]
  %v3111 = vld [vmem:[%s3100 + $0x28] sm:$0xf]
  %v3112 = vld [vmem:[%s3100 + $0x2c] sm:$0xf]
  %v3113 = vld [vmem:[%s3100 + $0x30] sm:$0xf]
  %v3114 = vld [vmem:[%s3100 + $0x34] sm:$0xf]
  %v3115 = vld [vmem:[%s3100 + $0x38] sm:$0xf]
  %v3116 = vld [vmem:[%s3100 + $0x3c] sm:$0xf]
  %v3118 = vunpack.c.l.b16 %v3099
  %v3119 = vpack.c.b16 %v3118, %v3118
  %v3120 = vrot.slane %v3119, 3
  %v3138 = vunpack.c.l.b16 %v3101
  %v3139 = vunpack.c.l.b16 %v3102
  %v3140 = vunpack.c.l.b16 %v3103
  %v3141 = vunpack.c.l.b16 %v3104
  %v3142 = vunpack.c.l.b16 %v3105
  %v3143 = vunpack.c.l.b16 %v3106
  %v3144 = vunpack.c.l.b16 %v3107
  %v3145 = vunpack.c.l.b16 %v3108
  %v3146 = vunpack.c.l.b16 %v3109
  %v3147 = vunpack.c.l.b16 %v3110
  %v3148 = vunpack.c.l.b16 %v3111
  %v3149 = vunpack.c.l.b16 %v3112
  %v3150 = vunpack.c.l.b16 %v3113
  %v3151 = vunpack.c.l.b16 %v3114
  %v3152 = vunpack.c.l.b16 %v3115
  %v3153 = vunpack.c.l.b16 %v3116
  %v3154 = vpack.c.b16 %v3139, %v3138
  %v3155 = vpack.c.b16 %v3141, %v3140
  %v3156 = vpack.c.b16 %v3143, %v3142
  %v3157 = vpack.c.b16 %v3145, %v3144
  %v3158 = vpack.c.b16 %v3147, %v3146
  %v3159 = vpack.c.b16 %v3149, %v3148
  %v3160 = vpack.c.b16 %v3151, %v3150
  %v3161 = vpack.c.b16 %v3153, %v3152
  %3170 = vmatpush.bf16.msra.mxu0 %v3161
  %3171 = vmatpush.bf16.msra.mxu0 %v3160
  %3172 = vmatpush.bf16.msra.mxu0 %v3159
  %3173 = vmatpush.bf16.msra.mxu0 %v3158
  %3174 = vmatpush.bf16.msra.mxu0 %v3157
  %3175 = vmatpush.bf16.msra.mxu0 %v3156
  %3176 = vmatpush.bf16.msra.mxu0 %v3155
  %3177 = vmatpush.bf16.msra.mxu0 %v3154
  %3178 = vmatmul.bf16.gmra.mxu0 %v3120
  %v3179 = vpop.f32.mrf.mxu0
  %v3180 = vadd.f32 0.0, %v3179
  %v3181 = vpop.f32.mrf.mxu0
  %3182 = vdwg.mxu0
  %v3183 = vadd.f32 %v3098, %v3180
  %v3184 = vld [vmem:[#allocation3 + $0x18] sm:$0x1]
  %s3185 = scalar_lea.vmem %s9, 1536
  %v3186 = vld [vmem:[%s3185] sm:$0xf]
  %v3187 = vld [vmem:[%s3185 + $0x4] sm:$0xf]
  %v3188 = vld [vmem:[%s3185 + $0x8] sm:$0xf]
  %v3189 = vld [vmem:[%s3185 + $0xc] sm:$0xf]
  %v3190 = vld [vmem:[%s3185 + $0x10] sm:$0xf]
  %v3191 = vld [vmem:[%s3185 + $0x14] sm:$0xf]
  %v3192 = vld [vmem:[%s3185 + $0x18] sm:$0xf]
  %v3193 = vld [vmem:[%s3185 + $0x1c] sm:$0xf]
  %v3194 = vld [vmem:[%s3185 + $0x20] sm:$0xf]
  %v3195 = vld [vmem:[%s3185 + $0x24] sm:$0xf]
  %v3196 = vld [vmem:[%s3185 + $0x28] sm:$0xf]
  %v3197 = vld [vmem:[%s3185 + $0x2c] sm:$0xf]
  %v3198 = vld [vmem:[%s3185 + $0x30] sm:$0xf]
  %v3199 = vld [vmem:[%s3185 + $0x34] sm:$0xf]
  %v3200 = vld [vmem:[%s3185 + $0x38] sm:$0xf]
  %v3201 = vld [vmem:[%s3185 + $0x3c] sm:$0xf]
  %v3218 = vunpack.c.l.b16 %v3186
  %v3219 = vunpack.c.l.b16 %v3187
  %v3220 = vunpack.c.l.b16 %v3188
  %v3221 = vunpack.c.l.b16 %v3189
  %v3222 = vunpack.c.l.b16 %v3190
  %v3223 = vunpack.c.l.b16 %v3191
  %v3224 = vunpack.c.l.b16 %v3192
  %v3225 = vunpack.c.l.b16 %v3193
  %v3226 = vunpack.c.l.b16 %v3194
  %v3227 = vunpack.c.l.b16 %v3195
  %v3228 = vunpack.c.l.b16 %v3196
  %v3229 = vunpack.c.l.b16 %v3197
  %v3230 = vunpack.c.l.b16 %v3198
  %v3231 = vunpack.c.l.b16 %v3199
  %v3232 = vunpack.c.l.b16 %v3200
  %v3233 = vunpack.c.l.b16 %v3201
  %v3234 = vpack.c.b16 %v3219, %v3218
  %v3235 = vpack.c.b16 %v3221, %v3220
  %v3236 = vpack.c.b16 %v3223, %v3222
  %v3237 = vpack.c.b16 %v3225, %v3224
  %v3238 = vpack.c.b16 %v3227, %v3226
  %v3239 = vpack.c.b16 %v3229, %v3228
  %v3240 = vpack.c.b16 %v3231, %v3230
  %v3241 = vpack.c.b16 %v3233, %v3232
  %3250 = vmatpush.bf16.msra.mxu0 %v3241
  %3251 = vmatpush.bf16.msra.mxu0 %v3240
  %3252 = vmatpush.bf16.msra.mxu0 %v3239
  %3253 = vmatpush.bf16.msra.mxu0 %v3238
  %3254 = vmatpush.bf16.msra.mxu0 %v3237
  %3255 = vmatpush.bf16.msra.mxu0 %v3236
  %3256 = vmatpush.bf16.msra.mxu0 %v3235
  %3257 = vmatpush.bf16.msra.mxu0 %v3234
  %3258 = vmatmul.bf16.gmra.mxu0 %v3184
  %v3259 = vpop.f32.mrf.mxu0
  %v3260 = vadd.f32 0.0, %v3259
  %v3261 = vpop.f32.mrf.mxu0
  %3262 = vdwg.mxu0
  %v3263 = vadd.f32 %v3183, %v3260
  %v3264 = vsel %vm1074, %v3263, 0.0
  %v3265 = vrot.slane %v3264, 4
  %v3266 = vadd.f32 %v3264, %v3265
  %v3267 = vrot.slane %v3266, 2
  %v3268 = vadd.f32 %v3266, %v3267
  %v3269 = vrot.slane %v3268, 1
  %v3270 = vadd.f32 %v3268, %v3269
  %v3271 = vmul.f32 %v3270, 0.5
  %v3272 = vsub.f32 %v3263, %v3271
  %v3273 = vmul.f32 %v3272, %v3272
  %v3274 = vsel %vm1074, %v3273, 0.0
  %v3275 = vrot.slane %v3274, 4
  %v3276 = vadd.f32 %v3274, %v3275
  %v3277 = vrot.slane %v3276, 2
  %v3278 = vadd.f32 %v3276, %v3277
  %v3279 = vrot.slane %v3278, 1
  %v3280 = vadd.f32 %v3278, %v3279
  %v3281 = vmul.f32 %v3280, 0.5
  %v3282 = vmax.f32 %v3281, 0.0
  %v3283 = vld [vmem:[%s10] sm:$0x1]
  %v3284 = vadd.f32 %v3282, 1e-05
  %v3285 = vrsqrt.pop %v3284
  %v3286 = vmul.f32 %v3285, %v3284
  %v3287 = vmul.f32 %v3286, %v3285
  %v3288 = vmul.f32 0.5, %v3287
  %v3289 = vsub.f32 1.5, %v3288
  %v3290 = vmul.f32 %v3285, %v3289
  %vm3291 = vweird.f32 %v3284
  %vm3292 = vweird.f32 %v3285
  %vm3293 = vmor %vm3291, %vm3292
  %v3294 = vsel %vm3293, %v3285, %v3290
  %v3295 = vmul.f32 %v3283, %v3294
  %v3296 = vld [vmem:[%s11] sm:$0x1]
  %v3297 = vmul.f32 %v3271, %v3295
  %v3298 = vsub.f32 %v3296, %v3297
  %v3300 = vperm.slane %v3295, 0
  %v3302 = vmul.f32 %v3263, %v3300
  %v3304 = vperm.slane %v3298, 0
  %v3306 = vadd.f32 %v3302, %v3304
  %v3307 = vmul.f32 %v3306, 0.2
  %v3308 = vmax.f32 %v3306, %v3307
  %v3309 = vpack.c.bf16 %v3308, %v3308
  %v3310 = vld [vmem:[%s12] sm:$0xf]
  %v3311 = vld [vmem:[%s12 + $0x4] sm:$0xf]
  %v3312 = vld [vmem:[%s12 + $0x8] sm:$0xf]
  %v3313 = vld [vmem:[%s12 + $0xc] sm:$0xf]
  %v3314 = vld [vmem:[%s12 + $0x10] sm:$0xf]
  %v3315 = vld [vmem:[%s12 + $0x14] sm:$0xf]
  %v3316 = vld [vmem:[%s12 + $0x18] sm:$0xf]
  %v3317 = vld [vmem:[%s12 + $0x1c] sm:$0xf]
  %v3318 = vld [vmem:[%s12 + $0x20] sm:$0xf]
  %v3319 = vld [vmem:[%s12 + $0x24] sm:$0xf]
  %v3320 = vld [vmem:[%s12 + $0x28] sm:$0xf]
  %v3321 = vld [vmem:[%s12 + $0x2c] sm:$0xf]
  %v3322 = vld [vmem:[%s12 + $0x30] sm:$0xf]
  %v3323 = vld [vmem:[%s12 + $0x34] sm:$0xf]
  %v3324 = vld [vmem:[%s12 + $0x38] sm:$0xf]
  %v3325 = vld [vmem:[%s12 + $0x3c] sm:$0xf]
  %v3326 = vld [vmem:[%s13] sm:$0x1]
  %v3328 = vperm.slane %v3326, 0
  %v3346 = vunpack.c.l.b16 %v3310
  %v3347 = vunpack.c.l.b16 %v3311
  %v3348 = vunpack.c.l.b16 %v3312
  %v3349 = vunpack.c.l.b16 %v3313
  %v3350 = vunpack.c.l.b16 %v3314
  %v3351 = vunpack.c.l.b16 %v3315
  %v3352 = vunpack.c.l.b16 %v3316
  %v3353 = vunpack.c.l.b16 %v3317
  %v3354 = vunpack.c.l.b16 %v3318
  %v3355 = vunpack.c.l.b16 %v3319
  %v3356 = vunpack.c.l.b16 %v3320
  %v3357 = vunpack.c.l.b16 %v3321
  %v3358 = vunpack.c.l.b16 %v3322
  %v3359 = vunpack.c.l.b16 %v3323
  %v3360 = vunpack.c.l.b16 %v3324
  %v3361 = vunpack.c.l.b16 %v3325
  %v3362 = vpack.c.b16 %v3347, %v3346
  %v3363 = vpack.c.b16 %v3349, %v3348
  %v3364 = vpack.c.b16 %v3351, %v3350
  %v3365 = vpack.c.b16 %v3353, %v3352
  %v3366 = vpack.c.b16 %v3355, %v3354
  %v3367 = vpack.c.b16 %v3357, %v3356
  %v3368 = vpack.c.b16 %v3359, %v3358
  %v3369 = vpack.c.b16 %v3361, %v3360
  %3378 = vmatpush.bf16.msra.mxu0 %v3369
  %3379 = vmatpush.bf16.msra.mxu0 %v3368
  %3380 = vmatpush.bf16.msra.mxu0 %v3367
  %3381 = vmatpush.bf16.msra.mxu0 %v3366
  %3382 = vmatpush.bf16.msra.mxu0 %v3365
  %3383 = vmatpush.bf16.msra.mxu0 %v3364
  %3384 = vmatpush.bf16.msra.mxu0 %v3363
  %3385 = vmatpush.bf16.msra.mxu0 %v3362
  %3386 = vmatmul.bf16.gmra.mxu0 %v3309
  %v3387 = vpop.f32.mrf.mxu0
  %v3388 = vadd.f32 %v3328, %v3387
  %v3389 = vpop.f32.mrf.mxu0
  %3390 = vdwg.mxu0
  %3391 = vst [vmem:[%s14] sm:$0x3] %v3388
  // Predicated region
  $region58: #{discriminator_forward.1} parent=0 // pred_check
    _
  $region59: #{discriminator_forward.1} parent=0 // pred_check_branch
    %3393 = sbr.rel (0) target = $region61
  $region60: #{discriminator_forward.1} parent=0 // pred_region
    _
  $region61: #{discriminator_forward.1} parent=0 // pred_fallthru
    _
  // Predicated region
  $region62: #{discriminator_forward.1} parent=0 // pred_check
    _
  $region63: #{discriminator_forward.1} parent=0 // pred_check_branch
    %3395 = sbr.rel (0) target = $region65
  $region64: #{discriminator_forward.1} parent=0 // pred_region
    _
  $region65: #{discriminator_forward.1} parent=0 // pred_fallthru
    _

</llo_original>
